<compile_context>
chip_gen: v7x
topology: tpu7x:2x2x1
jax: 0.10.0
libtpu: 0.0.40
codegen_flags: <defaults>
</compile_context>

<pallas_src>
from functools import partial

import jax
import jax.numpy as jnp
from jax.experimental import pallas as pl
from jax.experimental.pallas import tpu as pltpu

K = 3              # conv kernel size
NUM_GROUPS = 8
EPS = 1e-5
BLOCK_BATCH = 4    # samples lane-packed per grid step (BLOCK_BATCH * C = 128 lanes)


def _tcn_kernel(x_ref,
                w1_ref, b1_ref, g1g_ref, g1b_ref,
                w2_ref, b2_ref, g2g_ref, g2b_ref,
                dsb_ref,
                w3_ref, b3_ref, g3g_ref, g3b_ref,
                w4_ref, b4_ref, g4g_ref, g4b_ref,
                wfc_ref, bfc_ref, m2_ref, mt2_ref,
                out_ref, *, cg):
    """One grid step == BLOCK_BATCH lane-packed samples; all activations in VMEM."""
    T = x_ref.shape[1]
    CP = out_ref.shape[2]            # packed channel width (BLOCK_BATCH * C = 128)
    inv_n = 1.0 / (T * cg)           # elements per GroupNorm group

    # Time-row index, built once, reused by every causal mask.
    row = jax.lax.broadcasted_iota(jnp.int32, (T, CP), 0)

    def shift_time(v, s):
        # Causal delay by s steps along time (sublane axis): XLU roll + zero mask.
        rolled = pltpu.roll(v, s, 0)
        return jnp.where(row >= s, rolled, 0.0)

    def relu(v):
        return jnp.maximum(v, 0.0)

    def group_norm(h, gamma, beta):
        # Single-pass stats (fine in f32 for O(1) activations): one packed matmul
        # for [sum || sum_sq] -> per-group stats, one to broadcast [mean || rstd]
        # back to channels.  All concats / slices are 128-lane aligned.
        s = jnp.sum(h, axis=0, keepdims=True)                               # (1, CP)
        ss = jnp.sum(h * h, axis=0, keepdims=True)                          # (1, CP)
        stats = jnp.concatenate([s, ss], axis=1)                            # (1, 2CP)
        g = jnp.dot(stats, m2_ref[...],
                    preferred_element_type=jnp.float32) * inv_n             # (1, 2CP)
        mean = g[:, :CP]
        var = g[:, CP:] - mean * mean
        rstd = jax.lax.rsqrt(var + EPS)
        back = jnp.dot(jnp.concatenate([mean, rstd], axis=1), mt2_ref[...],
                       preferred_element_type=jnp.float32)                  # (1, 2CP)
        return (h - back[:, :CP]) * back[:, CP:] * gamma + beta

    def conv_combine(y_all, bias, d):
        # y_all holds the three per-tap partial outputs in lane chunks
        # [shift 2d | shift d | shift 0]; combine with causal time shifts.
        return (shift_time(y_all[:, 0:CP], 2 * d)
                + shift_time(y_all[:, CP:2 * CP], d)
                + y_all[:, 2 * CP:3 * CP]
                + bias)

    x = x_ref[0]                                                            # (T, Bblk)

    # ---- TemporalBlock 0 (Cin=1 -> C, dilation 1) ---------------------------
    # conv1's three taps and the 1x1 downsample fused into ONE matmul.
    y_all = jnp.dot(x, w1_ref[...], preferred_element_type=jnp.float32)     # (T, 4CP)
    h = conv_combine(y_all, b1_ref[...], d=1)
    res = y_all[:, 3 * CP:4 * CP] + dsb_ref[...]
    h = relu(group_norm(h, g1g_ref[...], g1b_ref[...]))
    # TODO(synk): nn.Dropout(p=0.2) omitted (inference/eval semantics).
    y_all = jnp.dot(h, w2_ref[...], preferred_element_type=jnp.float32)     # (T, 3CP)
    h = conv_combine(y_all, b2_ref[...], d=1)
    h = relu(group_norm(h, g2g_ref[...], g2b_ref[...]))
    y0 = relu(h + res)

    # ---- TemporalBlock 1 (C -> C, dilation 2, identity residual) ------------
    y_all = jnp.dot(y0, w3_ref[...], preferred_element_type=jnp.float32)
    h = conv_combine(y_all, b3_ref[...], d=2)
    h = relu(group_norm(h, g3g_ref[...], g3b_ref[...]))
    y_all = jnp.dot(h, w4_ref[...], preferred_element_type=jnp.float32)
    h = conv_combine(y_all, b4_ref[...], d=2)
    h = relu(group_norm(h, g4g_ref[...], g4b_ref[...]))
    y1 = relu(h + y0)

    # ---- Linear head: one lane-dense (T, 128) writeback ---------------------
    out_ref[0] = (jnp.dot(y1, wfc_ref[...], preferred_element_type=jnp.float32)
                  + bfc_ref[...])


def _pack_params(params, bblk):
    """Pack per-sample weights into block-diagonal / lane-tiled form so BLOCK_BATCH
    samples share the 128-lane vector width."""
    (b0c1_w, b0c1_b, b0g1_g, b0g1_b, b0c2_w, b0c2_b, b0g2_g, b0g2_b,
     b0ds_w, b0ds_b,
     b1c1_w, b1c1_b, b1g1_g, b1g1_b, b1c2_w, b1c2_b, b1g2_g, b1g2_b,
     fc_w, fc_b) = params
    C, NC = fc_w.shape
    ncp = C                                   # padded per-sample head width
    CP = bblk * C
    NG = bblk * NUM_GROUPS
    cg = C // NUM_GROUPS

    eye = jnp.eye(bblk, dtype=jnp.float32)
    bd = lambda w: jnp.kron(eye, w)           # block-diagonal lane packing
    tile = lambda v: jnp.tile(v, (1, bblk))   # (1, C) -> (1, bblk*C)

    # Tap order [shift 2d | shift d | shift 0]; conv1 also carries the downsample.
    w1 = jnp.concatenate([bd(b0c1_w[0]), bd(b0c1_w[1]), bd(b0c1_w[2]),
                          bd(b0ds_w)], axis=1)                    # (bblk, 4*CP)
    w2 = jnp.concatenate([bd(b0c2_w[0]), bd(b0c2_w[1]), bd(b0c2_w[2])], axis=1)
    w3 = jnp.concatenate([bd(b1c1_w[0]), bd(b1c1_w[1]), bd(b1c1_w[2])], axis=1)
    w4 = jnp.concatenate([bd(b1c2_w[0]), bd(b1c2_w[1]), bd(b1c2_w[2])], axis=1)

    wfc = bd(jnp.pad(fc_w, ((0, 0), (0, ncp - NC))))              # (CP, CP)
    bfc = tile(jnp.pad(fc_b, ((0, 0), (0, ncp - NC))))            # (1, CP)

    # GroupNorm packed group-membership matrices (lane-aligned, padded to CP).
    m = jnp.kron(jnp.eye(NG, dtype=jnp.float32),
                 jnp.ones((cg, 1), jnp.float32))                  # (CP, NG)
    m_pad = jnp.pad(m, ((0, 0), (0, CP - NG)))                    # (CP, CP)
    mt_pad = jnp.pad(m.T, ((0, CP - NG), (0, 0)))                 # (CP, CP)
    eye2 = jnp.eye(2, dtype=jnp.float32)
    m2 = jnp.kron(eye2, m_pad)                                    # (2CP, 2CP)
    mt2 = jnp.kron(eye2, mt_pad)                                  # (2CP, 2CP)

    return (w1, tile(b0c1_b), tile(b0g1_g), tile(b0g1_b),
            w2, tile(b0c2_b), tile(b0g2_g), tile(b0g2_b),
            tile(b0ds_b),
            w3, tile(b1c1_b), tile(b1g1_g), tile(b1g1_b),
            w4, tile(b1c2_b), tile(b1g2_g), tile(b1g2_b),
            wfc, bfc, m2, mt2)


def tcn_forward(x, params, block_batch=BLOCK_BATCH):
    """x: (B, T, input_channels=1) float32 -> (B, T, num_classes) float32."""
    B, T, Cin = x.shape
    assert Cin == 1, "kernel assumes input_channels == 1 (module default)"
    C = params[2].shape[1]        # gn gamma: (1, C)
    NC = params[-1].shape[1]      # fc bias:  (1, NC)
    bblk = block_batch
    CP = bblk * C
    ncp = C
    assert NC <= ncp

    # Pad batch to a multiple of the lane-pack factor and lane-pack the input.
    nblk = (B + bblk - 1) // bblk
    Bp = nblk * bblk
    x2 = x[..., 0]                                          # (B, T)
    if Bp != B:
        x2 = jnp.pad(x2, ((0, Bp - B), (0, 0)))
    x_pk = jnp.transpose(x2.reshape(nblk, bblk, T), (0, 2, 1))   # (nblk, T, bblk)

    packed = _pack_params(params, bblk)

    def full_spec(a):
        nd = a.ndim
        return pl.BlockSpec(a.shape, lambda g: (0,) * nd)

    # Advisory cost hint for the XLA scheduler around the custom call.
    flops = nblk * (2 * T * bblk * (4 * CP)          # fused conv1 + downsample
                    + 3 * (2 * T * CP * (3 * CP))    # three C->C dilated convs
                    + 2 * T * CP * CP                # fc head
                    + 4 * 2 * (2 * (2 * CP) * (2 * CP)))  # GroupNorm matmuls
    transcendentals = nblk * 4 * 2 * CP
    bytes_accessed = 4 * (int(x_pk.size) + nblk * T * CP
                          + sum(int(p.size) for p in packed))

    out_pk = pl.pallas_call(
        partial(_tcn_kernel, cg=C // NUM_GROUPS),
        out_shape=jax.ShapeDtypeStruct((nblk, T, CP), jnp.float32),
        grid_spec=pltpu.PrefetchScalarGridSpec(
            num_scalar_prefetch=0,
            grid=(nblk,),
            in_specs=[pl.BlockSpec((1, T, bblk), lambda g: (g, 0, 0))]
                     + [full_spec(p) for p in packed],
            out_specs=pl.BlockSpec((1, T, CP), lambda g: (g, 0, 0)),
        ),
        compiler_params=pltpu.CompilerParams(
            dimension_semantics=("parallel",)),       # batch blocks independent
        cost_estimate=pl.CostEstimate(flops=int(flops),
                                      transcendentals=int(transcendentals),
                                      bytes_accessed=int(bytes_accessed)),
    )(x_pk, *packed)

    # (nblk, T, bblk*ncp) -> (B, T, NC): slice padded head, un-pack lanes.
    out = out_pk.reshape(nblk, T, bblk, ncp)[..., :NC]
    out = jnp.transpose(out, (0, 2, 1, 3)).reshape(Bp, T, NC)
    return out[:B]


# ----------------------------- pure-JAX reference -----------------------------

def _shift_time(v, s):
    if s == 0:
        return v
    return jnp.concatenate([jnp.zeros_like(v[:, :s, :]), v[:, :-s, :]], axis=1)


def _causal_conv_ref(h, w_taps, b, d):
    # h: (B, T, Cin); w_taps: (K, Cin, Cout); b: (1, Cout)
    out = b[None]
    for j, s in enumerate((2 * d, d, 0)):
        out = out + jnp.einsum('btc,cd->btd', _shift_time(h, s), w_taps[j],
                               precision=jax.lax.Precision.HIGHEST)
    return out


def _group_norm_ref(h, gamma, beta, groups=NUM_GROUPS, eps=EPS):
    B, T, C = h.shape
    hg = h.reshape(B, T, groups, C // groups)
    mean = hg.mean(axis=(1, 3), keepdims=True)
    var = ((hg - mean) ** 2).mean(axis=(1, 3), keepdims=True)
    hn = ((hg - mean) / jnp.sqrt(var + eps)).reshape(B, T, C)
    return hn * gamma + beta


def tcn_reference(x, params):
    (b0c1_w, b0c1_b, b0g1_g, b0g1_b, b0c2_w, b0c2_b, b0g2_g, b0g2_b,
     b0ds_w, b0ds_b,
     b1c1_w, b1c1_b, b1g1_g, b1g1_b, b1c2_w, b1c2_b, b1g2_g, b1g2_b,
     fc_w, fc_b) = params
    relu = jax.nn.relu
    h = _causal_conv_ref(x, b0c1_w, b0c1_b, d=1)
    h = relu(_group_norm_ref(h, b0g1_g, b0g1_b))
    h = _causal_conv_ref(h, b0c2_w, b0c2_b, d=1)
    h = relu(_group_norm_ref(h, b0g2_g, b0g2_b))
    res = jnp.einsum('btc,cd->btd', x, b0ds_w,
                     precision=jax.lax.Precision.HIGHEST) + b0ds_b
    y0 = relu(h + res)
    h = _causal_conv_ref(y0, b1c1_w, b1c1_b, d=2)
    h = relu(_group_norm_ref(h, b1g1_g, b1g1_b))
    h = _causal_conv_ref(h, b1c2_w, b1c2_b, d=2)
    h = relu(_group_norm_ref(h, b1g2_g, b1g2_b))
    y1 = relu(h + y0)
    return jnp.einsum('btc,cd->btd', y1, fc_w,
                      precision=jax.lax.Precision.HIGHEST) + fc_b


def make_params(key, in_channels=1, channels=32, num_classes=6):
    """Deterministic synthetic parameters in kernel-friendly layout.

    Conv weights are stored per-tap, pre-transposed to (K, Cin, Cout); the 1x1
    downsample is (Cin, Cout); the final Linear is (C, num_classes).  GroupNorm
    affine params are slightly randomized to exercise that path.
    """
    Cin, C, NC = in_channels, channels, num_classes
    ks = jax.random.split(key, 12)
    gk = jax.random.split(ks[11], 8)
    kaiming = lambda k, shp, fan_in: (jax.random.normal(k, shp, jnp.float32)
                                      * jnp.sqrt(2.0 / fan_in))
    gn_g = lambda k: 1.0 + 0.1 * jax.random.normal(k, (1, C), jnp.float32)
    gn_b = lambda k: 0.1 * jax.random.normal(k, (1, C), jnp.float32)
    s = 1.0 / jnp.sqrt(jnp.float32(C))
    return (
        # TemporalBlock 0
        kaiming(ks[0], (K, Cin, C), Cin * K),                       # conv1 W
        jnp.zeros((1, C), jnp.float32),                             # conv1 b
        gn_g(gk[0]), gn_b(gk[1]),                                   # gn1
        kaiming(ks[1], (K, C, C), C * K),                           # conv2 W
        jnp.zeros((1, C), jnp.float32),                             # conv2 b
        gn_g(gk[2]), gn_b(gk[3]),                                   # gn2
        kaiming(ks[2], (Cin, C), Cin),                              # downsample W
        jax.random.uniform(ks[3], (1, C), jnp.float32, -1.0, 1.0),  # downsample b
        # TemporalBlock 1
        kaiming(ks[4], (K, C, C), C * K),
        jnp.zeros((1, C), jnp.float32),
        gn_g(gk[4]), gn_b(gk[5]),
        kaiming(ks[5], (K, C, C), C * K),
        jnp.zeros((1, C), jnp.float32),
        gn_g(gk[6]), gn_b(gk[7]),
        # final Linear
        jax.random.uniform(ks[6], (C, NC), jnp.float32, -s, s),
        jax.random.uniform(ks[7], (1, NC), jnp.float32, -s, s),
    )


if __name__ == "__main__":
    # Shapes consistent with TCNModel(input_channels=1, num_channels=[32, 32],
    # kernel_size=3, num_classes=6, n_ahead=None).  B=8 -> grid of 2 lane-packed
    # blocks so both v7x TensorCores get work.
    B, T, Cin, C, NC = 8, 16, 1, 32, 6

    key = jax.random.PRNGKey(0)
    kx, kp = jax.random.split(key)
    x = jax.random.normal(kx, (B, T, Cin), dtype=jnp.float32)
    params = make_params(kp, Cin, C, NC)

    fwd = jax.jit(tcn_forward)
    out = fwd(x, params)
    jax.block_until_ready(out)

    ref = tcn_reference(x, params)
    assert out.shape == (B, T, NC), out.shape
    max_err = float(jnp.max(jnp.abs(out - ref)))
    assert jnp.allclose(out, ref, atol=1e-3, rtol=1e-3), max_err

    print("KERNEL_OK")
</pallas_src>

<mosaic_0001>
module attributes {stable_mosaic.version = 11 : i64} {
  func.func @_tcn_kernel(%arg0: i32, %arg1: memref<1x16x4xf32, #tpu.memory_space<vmem>>, %arg2: memref<4x512xf32, #tpu.memory_space<vmem>>, %arg3: memref<1x128xf32, #tpu.memory_space<vmem>>, %arg4: memref<1x128xf32, #tpu.memory_space<vmem>>, %arg5: memref<1x128xf32, #tpu.memory_space<vmem>>, %arg6: memref<128x384xf32, #tpu.memory_space<vmem>>, %arg7: memref<1x128xf32, #tpu.memory_space<vmem>>, %arg8: memref<1x128xf32, #tpu.memory_space<vmem>>, %arg9: memref<1x128xf32, #tpu.memory_space<vmem>>, %arg10: memref<1x128xf32, #tpu.memory_space<vmem>>, %arg11: memref<128x384xf32, #tpu.memory_space<vmem>>, %arg12: memref<1x128xf32, #tpu.memory_space<vmem>>, %arg13: memref<1x128xf32, #tpu.memory_space<vmem>>, %arg14: memref<1x128xf32, #tpu.memory_space<vmem>>, %arg15: memref<128x384xf32, #tpu.memory_space<vmem>>, %arg16: memref<1x128xf32, #tpu.memory_space<vmem>>, %arg17: memref<1x128xf32, #tpu.memory_space<vmem>>, %arg18: memref<1x128xf32, #tpu.memory_space<vmem>>, %arg19: memref<128x128xf32, #tpu.memory_space<vmem>>, %arg20: memref<1x128xf32, #tpu.memory_space<vmem>>, %arg21: memref<256x256xf32, #tpu.memory_space<vmem>>, %arg22: memref<256x256xf32, #tpu.memory_space<vmem>>, %arg23: memref<1x16x128xf32, #tpu.memory_space<vmem>>) attributes {dimension_semantics = [#tpu.dimension_semantics<parallel>], iteration_bounds = array<i64: 2>, scalar_prefetch = 0 : i64, scratch_operands = 0 : i64, tpu.core_type = #tpu.core_type<tc>, window_params = [{transform_indices = @transform_0, window_bounds = array<i64: 1, 16, 4>}, {pipeline_mode = #tpu.pipeline_mode<synchronous>, transform_indices = @transform_1, window_bounds = array<i64: 4, 512>}, {pipeline_mode = #tpu.pipeline_mode<synchronous>, transform_indices = @transform_2, window_bounds = array<i64: 1, 128>}, {pipeline_mode = #tpu.pipeline_mode<synchronous>, transform_indices = @transform_3, window_bounds = array<i64: 1, 128>}, {pipeline_mode = #tpu.pipeline_mode<synchronous>, transform_indices = @transform_4, window_bounds = array<i64: 1, 128>}, {pipeline_mode = #tpu.pipeline_mode<synchronous>, transform_indices = @transform_5, window_bounds = array<i64: 128, 384>}, {pipeline_mode = #tpu.pipeline_mode<synchronous>, transform_indices = @transform_6, window_bounds = array<i64: 1, 128>}, {pipeline_mode = #tpu.pipeline_mode<synchronous>, transform_indices = @transform_7, window_bounds = array<i64: 1, 128>}, {pipeline_mode = #tpu.pipeline_mode<synchronous>, transform_indices = @transform_8, window_bounds = array<i64: 1, 128>}, {pipeline_mode = #tpu.pipeline_mode<synchronous>, transform_indices = @transform_9, window_bounds = array<i64: 1, 128>}, {pipeline_mode = #tpu.pipeline_mode<synchronous>, transform_indices = @transform_10, window_bounds = array<i64: 128, 384>}, {pipeline_mode = #tpu.pipeline_mode<synchronous>, transform_indices = @transform_11, window_bounds = array<i64: 1, 128>}, {pipeline_mode = #tpu.pipeline_mode<synchronous>, transform_indices = @transform_12, window_bounds = array<i64: 1, 128>}, {pipeline_mode = #tpu.pipeline_mode<synchronous>, transform_indices = @transform_13, window_bounds = array<i64: 1, 128>}, {pipeline_mode = #tpu.pipeline_mode<synchronous>, transform_indices = @transform_14, window_bounds = array<i64: 128, 384>}, {pipeline_mode = #tpu.pipeline_mode<synchronous>, transform_indices = @transform_15, window_bounds = array<i64: 1, 128>}, {pipeline_mode = #tpu.pipeline_mode<synchronous>, transform_indices = @transform_16, window_bounds = array<i64: 1, 128>}, {pipeline_mode = #tpu.pipeline_mode<synchronous>, transform_indices = @transform_17, window_bounds = array<i64: 1, 128>}, {pipeline_mode = #tpu.pipeline_mode<synchronous>, transform_indices = @transform_18, window_bounds = array<i64: 128, 128>}, {pipeline_mode = #tpu.pipeline_mode<synchronous>, transform_indices = @transform_19, window_bounds = array<i64: 1, 128>}, {pipeline_mode = #tpu.pipeline_mode<synchronous>, transform_indices = @transform_20, window_bounds = array<i64: 256, 256>}, {pipeline_mode = #tpu.pipeline_mode<synchronous>, transform_indices = @transform_21, window_bounds = array<i64: 256, 256>}, {transform_indices = @transform_22, window_bounds = array<i64: 1, 16, 128>}]} {
    %0 = tpu.iota {dimensions = array<i32: 0>} : vector<16x128xi32>
    %c0 = arith.constant 0 : index
    %c0_0 = arith.constant 0 : index
    %c0_1 = arith.constant 0 : index
    %1 = vector.load %arg1[%c0, %c0_0, %c0_1] : memref<1x16x4xf32, #tpu.memory_space<vmem>>, vector<1x16x4xf32>
    %2 = vector.shape_cast %1 : vector<1x16x4xf32> to vector<16x4xf32>
    %c0_2 = arith.constant 0 : index
    %c0_3 = arith.constant 0 : index
    %3 = vector.load %arg2[%c0_2, %c0_3] : memref<4x512xf32, #tpu.memory_space<vmem>>, vector<4x512xf32>
    %cst = arith.constant dense<0.000000e+00> : vector<16x512xf32>
    %4 = tpu.matmul %2, %3, %cst {dimension_numbers = #tpu.dot_dimension_numbers<[1], [0], [0], [1], [0, 0, 1, 1], [], []>} : vector<16x4xf32>, vector<4x512xf32>, vector<16x512xf32> -> vector<16x512xf32>
    %c0_4 = arith.constant 0 : index
    %c0_5 = arith.constant 0 : index
    %5 = vector.load %arg3[%c0_4, %c0_5] : memref<1x128xf32, #tpu.memory_space<vmem>>, vector<1x128xf32>
    %6 = vector.extract_strided_slice %4 {offsets = [0, 0], sizes = [16, 128], strides = [1, 1]} : vector<16x512xf32> to vector<16x128xf32>
    %c2_i32 = arith.constant 2 : i32
    %7 = tpu.dynamic_rotate %6 by %c2_i32 dim 0 : vector<16x128xf32>, i32 -> vector<16x128xf32>
    %c2_i32_6 = arith.constant 2 : i32
    %8 = vector.broadcast %c2_i32_6 : i32 to vector<16x128xi32>
    %9 = arith.cmpi sge, %0, %8 : vector<16x128xi32>
    %cst_7 = arith.constant 0.000000e+00 : f32
    %10 = vector.broadcast %cst_7 : f32 to vector<16x128xf32>
    %11 = arith.select %9, %7, %10 : vector<16x128xi1>, vector<16x128xf32>
    %12 = vector.extract_strided_slice %4 {offsets = [0, 128], sizes = [16, 128], strides = [1, 1]} : vector<16x512xf32> to vector<16x128xf32>
    %c1_i32 = arith.constant 1 : i32
    %13 = tpu.dynamic_rotate %12 by %c1_i32 dim 0 : vector<16x128xf32>, i32 -> vector<16x128xf32>
    %c1_i32_8 = arith.constant 1 : i32
    %14 = vector.broadcast %c1_i32_8 : i32 to vector<16x128xi32>
    %15 = arith.cmpi sge, %0, %14 : vector<16x128xi32>
    %cst_9 = arith.constant 0.000000e+00 : f32
    %16 = vector.broadcast %cst_9 : f32 to vector<16x128xf32>
    %17 = arith.select %15, %13, %16 : vector<16x128xi1>, vector<16x128xf32>
    %18 = arith.addf %11, %17 : vector<16x128xf32>
    %19 = vector.extract_strided_slice %4 {offsets = [0, 256], sizes = [16, 128], strides = [1, 1]} : vector<16x512xf32> to vector<16x128xf32>
    %20 = arith.addf %18, %19 : vector<16x128xf32>
    %21 = vector.broadcast %5 : vector<1x128xf32> to vector<16x128xf32>
    %22 = arith.addf %20, %21 : vector<16x128xf32>
    %23 = vector.extract_strided_slice %4 {offsets = [0, 384], sizes = [16, 128], strides = [1, 1]} : vector<16x512xf32> to vector<16x128xf32>
    %c0_10 = arith.constant 0 : index
    %c0_11 = arith.constant 0 : index
    %24 = vector.load %arg10[%c0_10, %c0_11] : memref<1x128xf32, #tpu.memory_space<vmem>>, vector<1x128xf32>
    %25 = vector.broadcast %24 : vector<1x128xf32> to vector<16x128xf32>
    %26 = arith.addf %23, %25 : vector<16x128xf32>
    %c0_12 = arith.constant 0 : index
    %c0_13 = arith.constant 0 : index
    %27 = vector.load %arg4[%c0_12, %c0_13] : memref<1x128xf32, #tpu.memory_space<vmem>>, vector<1x128xf32>
    %c0_14 = arith.constant 0 : index
    %c0_15 = arith.constant 0 : index
    %28 = vector.load %arg5[%c0_14, %c0_15] : memref<1x128xf32, #tpu.memory_space<vmem>>, vector<1x128xf32>
    %cst_16 = arith.constant dense<0.000000e+00> : vector<128xf32>
    %29 = vector.multi_reduction <add>, %22, %cst_16 [0] : vector<16x128xf32> to vector<128xf32>
    %30 = vector.shape_cast %29 : vector<128xf32> to vector<1x128xf32>
    %31 = arith.mulf %22, %22 : vector<16x128xf32>
    %cst_17 = arith.constant dense<0.000000e+00> : vector<128xf32>
    %32 = vector.multi_reduction <add>, %31, %cst_17 [0] : vector<16x128xf32> to vector<128xf32>
    %33 = vector.shape_cast %32 : vector<128xf32> to vector<1x128xf32>
    %34 = tpu.concatenate %30, %33 in 1 : vector<1x128xf32>, vector<1x128xf32> -> vector<1x256xf32>
    %c0_18 = arith.constant 0 : index
    %c0_19 = arith.constant 0 : index
    %35 = vector.load %arg21[%c0_18, %c0_19] : memref<256x256xf32, #tpu.memory_space<vmem>>, vector<256x256xf32>
    %cst_20 = arith.constant dense<0.000000e+00> : vector<1x256xf32>
    %36 = tpu.matmul %34, %35, %cst_20 {dimension_numbers = #tpu.dot_dimension_numbers<[1], [0], [0], [1], [0, 0, 1, 1], [], []>} : vector<1x256xf32>, vector<256x256xf32>, vector<1x256xf32> -> vector<1x256xf32>
    %cst_21 = arith.constant 1.562500e-02 : f32
    %37 = vector.broadcast %cst_21 : f32 to vector<1x256xf32>
    %38 = arith.mulf %36, %37 : vector<1x256xf32>
    %39 = vector.extract_strided_slice %38 {offsets = [0, 0], sizes = [1, 128], strides = [1, 1]} : vector<1x256xf32> to vector<1x128xf32>
    %40 = vector.extract_strided_slice %38 {offsets = [0, 128], sizes = [1, 128], strides = [1, 1]} : vector<1x256xf32> to vector<1x128xf32>
    %41 = arith.mulf %39, %39 : vector<1x128xf32>
    %42 = arith.subf %40, %41 : vector<1x128xf32>
    %cst_22 = arith.constant 9.99999974E-6 : f32
    %43 = vector.broadcast %cst_22 : f32 to vector<1x128xf32>
    %44 = arith.addf %42, %43 : vector<1x128xf32>
    %45 = math.rsqrt %44 : vector<1x128xf32>
    %46 = tpu.concatenate %39, %45 in 1 : vector<1x128xf32>, vector<1x128xf32> -> vector<1x256xf32>
    %c0_23 = arith.constant 0 : index
    %c0_24 = arith.constant 0 : index
    %47 = vector.load %arg22[%c0_23, %c0_24] : memref<256x256xf32, #tpu.memory_space<vmem>>, vector<256x256xf32>
    %cst_25 = arith.constant dense<0.000000e+00> : vector<1x256xf32>
    %48 = tpu.matmul %46, %47, %cst_25 {dimension_numbers = #tpu.dot_dimension_numbers<[1], [0], [0], [1], [0, 0, 1, 1], [], []>} : vector<1x256xf32>, vector<256x256xf32>, vector<1x256xf32> -> vector<1x256xf32>
    %49 = vector.extract_strided_slice %48 {offsets = [0, 0], sizes = [1, 128], strides = [1, 1]} : vector<1x256xf32> to vector<1x128xf32>
    %50 = vector.broadcast %49 : vector<1x128xf32> to vector<16x128xf32>
    %51 = arith.subf %22, %50 : vector<16x128xf32>
    %52 = vector.extract_strided_slice %48 {offsets = [0, 128], sizes = [1, 128], strides = [1, 1]} : vector<1x256xf32> to vector<1x128xf32>
    %53 = vector.broadcast %52 : vector<1x128xf32> to vector<16x128xf32>
    %54 = arith.mulf %51, %53 : vector<16x128xf32>
    %55 = vector.broadcast %27 : vector<1x128xf32> to vector<16x128xf32>
    %56 = arith.mulf %54, %55 : vector<16x128xf32>
    %57 = vector.broadcast %28 : vector<1x128xf32> to vector<16x128xf32>
    %58 = arith.addf %56, %57 : vector<16x128xf32>
    %cst_26 = arith.constant 0.000000e+00 : f32
    %59 = vector.broadcast %cst_26 : f32 to vector<16x128xf32>
    %60 = arith.maximumf %58, %59 : vector<16x128xf32>
    %c0_27 = arith.constant 0 : index
    %c0_28 = arith.constant 0 : index
    %61 = vector.load %arg6[%c0_27, %c0_28] : memref<128x384xf32, #tpu.memory_space<vmem>>, vector<128x384xf32>
    %cst_29 = arith.constant dense<0.000000e+00> : vector<16x384xf32>
    %62 = tpu.matmul %60, %61, %cst_29 {dimension_numbers = #tpu.dot_dimension_numbers<[1], [0], [0], [1], [0, 0, 1, 1], [], []>} : vector<16x128xf32>, vector<128x384xf32>, vector<16x384xf32> -> vector<16x384xf32>
    %c0_30 = arith.constant 0 : index
    %c0_31 = arith.constant 0 : index
    %63 = vector.load %arg7[%c0_30, %c0_31] : memref<1x128xf32, #tpu.memory_space<vmem>>, vector<1x128xf32>
    %64 = vector.extract_strided_slice %62 {offsets = [0, 0], sizes = [16, 128], strides = [1, 1]} : vector<16x384xf32> to vector<16x128xf32>
    %c2_i32_32 = arith.constant 2 : i32
    %65 = tpu.dynamic_rotate %64 by %c2_i32_32 dim 0 : vector<16x128xf32>, i32 -> vector<16x128xf32>
    %c2_i32_33 = arith.constant 2 : i32
    %66 = vector.broadcast %c2_i32_33 : i32 to vector<16x128xi32>
    %67 = arith.cmpi sge, %0, %66 : vector<16x128xi32>
    %cst_34 = arith.constant 0.000000e+00 : f32
    %68 = vector.broadcast %cst_34 : f32 to vector<16x128xf32>
    %69 = arith.select %67, %65, %68 : vector<16x128xi1>, vector<16x128xf32>
    %70 = vector.extract_strided_slice %62 {offsets = [0, 128], sizes = [16, 128], strides = [1, 1]} : vector<16x384xf32> to vector<16x128xf32>
    %c1_i32_35 = arith.constant 1 : i32
    %71 = tpu.dynamic_rotate %70 by %c1_i32_35 dim 0 : vector<16x128xf32>, i32 -> vector<16x128xf32>
    %c1_i32_36 = arith.constant 1 : i32
    %72 = vector.broadcast %c1_i32_36 : i32 to vector<16x128xi32>
    %73 = arith.cmpi sge, %0, %72 : vector<16x128xi32>
    %cst_37 = arith.constant 0.000000e+00 : f32
    %74 = vector.broadcast %cst_37 : f32 to vector<16x128xf32>
    %75 = arith.select %73, %71, %74 : vector<16x128xi1>, vector<16x128xf32>
    %76 = arith.addf %69, %75 : vector<16x128xf32>
    %77 = vector.extract_strided_slice %62 {offsets = [0, 256], sizes = [16, 128], strides = [1, 1]} : vector<16x384xf32> to vector<16x128xf32>
    %78 = arith.addf %76, %77 : vector<16x128xf32>
    %79 = vector.broadcast %63 : vector<1x128xf32> to vector<16x128xf32>
    %80 = arith.addf %78, %79 : vector<16x128xf32>
    %c0_38 = arith.constant 0 : index
    %c0_39 = arith.constant 0 : index
    %81 = vector.load %arg8[%c0_38, %c0_39] : memref<1x128xf32, #tpu.memory_space<vmem>>, vector<1x128xf32>
    %c0_40 = arith.constant 0 : index
    %c0_41 = arith.constant 0 : index
    %82 = vector.load %arg9[%c0_40, %c0_41] : memref<1x128xf32, #tpu.memory_space<vmem>>, vector<1x128xf32>
    %cst_42 = arith.constant dense<0.000000e+00> : vector<128xf32>
    %83 = vector.multi_reduction <add>, %80, %cst_42 [0] : vector<16x128xf32> to vector<128xf32>
    %84 = vector.shape_cast %83 : vector<128xf32> to vector<1x128xf32>
    %85 = arith.mulf %80, %80 : vector<16x128xf32>
    %cst_43 = arith.constant dense<0.000000e+00> : vector<128xf32>
    %86 = vector.multi_reduction <add>, %85, %cst_43 [0] : vector<16x128xf32> to vector<128xf32>
    %87 = vector.shape_cast %86 : vector<128xf32> to vector<1x128xf32>
    %88 = tpu.concatenate %84, %87 in 1 : vector<1x128xf32>, vector<1x128xf32> -> vector<1x256xf32>
    %c0_44 = arith.constant 0 : index
    %c0_45 = arith.constant 0 : index
    %89 = vector.load %arg21[%c0_44, %c0_45] : memref<256x256xf32, #tpu.memory_space<vmem>>, vector<256x256xf32>
    %cst_46 = arith.constant dense<0.000000e+00> : vector<1x256xf32>
    %90 = tpu.matmul %88, %89, %cst_46 {dimension_numbers = #tpu.dot_dimension_numbers<[1], [0], [0], [1], [0, 0, 1, 1], [], []>} : vector<1x256xf32>, vector<256x256xf32>, vector<1x256xf32> -> vector<1x256xf32>
    %cst_47 = arith.constant 1.562500e-02 : f32
    %91 = vector.broadcast %cst_47 : f32 to vector<1x256xf32>
    %92 = arith.mulf %90, %91 : vector<1x256xf32>
    %93 = vector.extract_strided_slice %92 {offsets = [0, 0], sizes = [1, 128], strides = [1, 1]} : vector<1x256xf32> to vector<1x128xf32>
    %94 = vector.extract_strided_slice %92 {offsets = [0, 128], sizes = [1, 128], strides = [1, 1]} : vector<1x256xf32> to vector<1x128xf32>
    %95 = arith.mulf %93, %93 : vector<1x128xf32>
    %96 = arith.subf %94, %95 : vector<1x128xf32>
    %cst_48 = arith.constant 9.99999974E-6 : f32
    %97 = vector.broadcast %cst_48 : f32 to vector<1x128xf32>
    %98 = arith.addf %96, %97 : vector<1x128xf32>
    %99 = math.rsqrt %98 : vector<1x128xf32>
    %100 = tpu.concatenate %93, %99 in 1 : vector<1x128xf32>, vector<1x128xf32> -> vector<1x256xf32>
    %c0_49 = arith.constant 0 : index
    %c0_50 = arith.constant 0 : index
    %101 = vector.load %arg22[%c0_49, %c0_50] : memref<256x256xf32, #tpu.memory_space<vmem>>, vector<256x256xf32>
    %cst_51 = arith.constant dense<0.000000e+00> : vector<1x256xf32>
    %102 = tpu.matmul %100, %101, %cst_51 {dimension_numbers = #tpu.dot_dimension_numbers<[1], [0], [0], [1], [0, 0, 1, 1], [], []>} : vector<1x256xf32>, vector<256x256xf32>, vector<1x256xf32> -> vector<1x256xf32>
    %103 = vector.extract_strided_slice %102 {offsets = [0, 0], sizes = [1, 128], strides = [1, 1]} : vector<1x256xf32> to vector<1x128xf32>
    %104 = vector.broadcast %103 : vector<1x128xf32> to vector<16x128xf32>
    %105 = arith.subf %80, %104 : vector<16x128xf32>
    %106 = vector.extract_strided_slice %102 {offsets = [0, 128], sizes = [1, 128], strides = [1, 1]} : vector<1x256xf32> to vector<1x128xf32>
    %107 = vector.broadcast %106 : vector<1x128xf32> to vector<16x128xf32>
    %108 = arith.mulf %105, %107 : vector<16x128xf32>
    %109 = vector.broadcast %81 : vector<1x128xf32> to vector<16x128xf32>
    %110 = arith.mulf %108, %109 : vector<16x128xf32>
    %111 = vector.broadcast %82 : vector<1x128xf32> to vector<16x128xf32>
    %112 = arith.addf %110, %111 : vector<16x128xf32>
    %cst_52 = arith.constant 0.000000e+00 : f32
    %113 = vector.broadcast %cst_52 : f32 to vector<16x128xf32>
    %114 = arith.maximumf %112, %113 : vector<16x128xf32>
    %115 = arith.addf %114, %26 : vector<16x128xf32>
    %cst_53 = arith.constant 0.000000e+00 : f32
    %116 = vector.broadcast %cst_53 : f32 to vector<16x128xf32>
    %117 = arith.maximumf %115, %116 : vector<16x128xf32>
    %c0_54 = arith.constant 0 : index
    %c0_55 = arith.constant 0 : index
    %118 = vector.load %arg11[%c0_54, %c0_55] : memref<128x384xf32, #tpu.memory_space<vmem>>, vector<128x384xf32>
    %cst_56 = arith.constant dense<0.000000e+00> : vector<16x384xf32>
    %119 = tpu.matmul %117, %118, %cst_56 {dimension_numbers = #tpu.dot_dimension_numbers<[1], [0], [0], [1], [0, 0, 1, 1], [], []>} : vector<16x128xf32>, vector<128x384xf32>, vector<16x384xf32> -> vector<16x384xf32>
    %c0_57 = arith.constant 0 : index
    %c0_58 = arith.constant 0 : index
    %120 = vector.load %arg12[%c0_57, %c0_58] : memref<1x128xf32, #tpu.memory_space<vmem>>, vector<1x128xf32>
    %121 = vector.extract_strided_slice %119 {offsets = [0, 0], sizes = [16, 128], strides = [1, 1]} : vector<16x384xf32> to vector<16x128xf32>
    %c4_i32 = arith.constant 4 : i32
    %122 = tpu.dynamic_rotate %121 by %c4_i32 dim 0 : vector<16x128xf32>, i32 -> vector<16x128xf32>
    %c4_i32_59 = arith.constant 4 : i32
    %123 = vector.broadcast %c4_i32_59 : i32 to vector<16x128xi32>
    %124 = arith.cmpi sge, %0, %123 : vector<16x128xi32>
    %cst_60 = arith.constant 0.000000e+00 : f32
    %125 = vector.broadcast %cst_60 : f32 to vector<16x128xf32>
    %126 = arith.select %124, %122, %125 : vector<16x128xi1>, vector<16x128xf32>
    %127 = vector.extract_strided_slice %119 {offsets = [0, 128], sizes = [16, 128], strides = [1, 1]} : vector<16x384xf32> to vector<16x128xf32>
    %c2_i32_61 = arith.constant 2 : i32
    %128 = tpu.dynamic_rotate %127 by %c2_i32_61 dim 0 : vector<16x128xf32>, i32 -> vector<16x128xf32>
    %c2_i32_62 = arith.constant 2 : i32
    %129 = vector.broadcast %c2_i32_62 : i32 to vector<16x128xi32>
    %130 = arith.cmpi sge, %0, %129 : vector<16x128xi32>
    %cst_63 = arith.constant 0.000000e+00 : f32
    %131 = vector.broadcast %cst_63 : f32 to vector<16x128xf32>
    %132 = arith.select %130, %128, %131 : vector<16x128xi1>, vector<16x128xf32>
    %133 = arith.addf %126, %132 : vector<16x128xf32>
    %134 = vector.extract_strided_slice %119 {offsets = [0, 256], sizes = [16, 128], strides = [1, 1]} : vector<16x384xf32> to vector<16x128xf32>
    %135 = arith.addf %133, %134 : vector<16x128xf32>
    %136 = vector.broadcast %120 : vector<1x128xf32> to vector<16x128xf32>
    %137 = arith.addf %135, %136 : vector<16x128xf32>
    %c0_64 = arith.constant 0 : index
    %c0_65 = arith.constant 0 : index
    %138 = vector.load %arg13[%c0_64, %c0_65] : memref<1x128xf32, #tpu.memory_space<vmem>>, vector<1x128xf32>
    %c0_66 = arith.constant 0 : index
    %c0_67 = arith.constant 0 : index
    %139 = vector.load %arg14[%c0_66, %c0_67] : memref<1x128xf32, #tpu.memory_space<vmem>>, vector<1x128xf32>
    %cst_68 = arith.constant dense<0.000000e+00> : vector<128xf32>
    %140 = vector.multi_reduction <add>, %137, %cst_68 [0] : vector<16x128xf32> to vector<128xf32>
    %141 = vector.shape_cast %140 : vector<128xf32> to vector<1x128xf32>
    %142 = arith.mulf %137, %137 : vector<16x128xf32>
    %cst_69 = arith.constant dense<0.000000e+00> : vector<128xf32>
    %143 = vector.multi_reduction <add>, %142, %cst_69 [0] : vector<16x128xf32> to vector<128xf32>
    %144 = vector.shape_cast %143 : vector<128xf32> to vector<1x128xf32>
    %145 = tpu.concatenate %141, %144 in 1 : vector<1x128xf32>, vector<1x128xf32> -> vector<1x256xf32>
    %c0_70 = arith.constant 0 : index
    %c0_71 = arith.constant 0 : index
    %146 = vector.load %arg21[%c0_70, %c0_71] : memref<256x256xf32, #tpu.memory_space<vmem>>, vector<256x256xf32>
    %cst_72 = arith.constant dense<0.000000e+00> : vector<1x256xf32>
    %147 = tpu.matmul %145, %146, %cst_72 {dimension_numbers = #tpu.dot_dimension_numbers<[1], [0], [0], [1], [0, 0, 1, 1], [], []>} : vector<1x256xf32>, vector<256x256xf32>, vector<1x256xf32> -> vector<1x256xf32>
    %cst_73 = arith.constant 1.562500e-02 : f32
    %148 = vector.broadcast %cst_73 : f32 to vector<1x256xf32>
    %149 = arith.mulf %147, %148 : vector<1x256xf32>
    %150 = vector.extract_strided_slice %149 {offsets = [0, 0], sizes = [1, 128], strides = [1, 1]} : vector<1x256xf32> to vector<1x128xf32>
    %151 = vector.extract_strided_slice %149 {offsets = [0, 128], sizes = [1, 128], strides = [1, 1]} : vector<1x256xf32> to vector<1x128xf32>
    %152 = arith.mulf %150, %150 : vector<1x128xf32>
    %153 = arith.subf %151, %152 : vector<1x128xf32>
    %cst_74 = arith.constant 9.99999974E-6 : f32
    %154 = vector.broadcast %cst_74 : f32 to vector<1x128xf32>
    %155 = arith.addf %153, %154 : vector<1x128xf32>
    %156 = math.rsqrt %155 : vector<1x128xf32>
    %157 = tpu.concatenate %150, %156 in 1 : vector<1x128xf32>, vector<1x128xf32> -> vector<1x256xf32>
    %c0_75 = arith.constant 0 : index
    %c0_76 = arith.constant 0 : index
    %158 = vector.load %arg22[%c0_75, %c0_76] : memref<256x256xf32, #tpu.memory_space<vmem>>, vector<256x256xf32>
    %cst_77 = arith.constant dense<0.000000e+00> : vector<1x256xf32>
    %159 = tpu.matmul %157, %158, %cst_77 {dimension_numbers = #tpu.dot_dimension_numbers<[1], [0], [0], [1], [0, 0, 1, 1], [], []>} : vector<1x256xf32>, vector<256x256xf32>, vector<1x256xf32> -> vector<1x256xf32>
    %160 = vector.extract_strided_slice %159 {offsets = [0, 0], sizes = [1, 128], strides = [1, 1]} : vector<1x256xf32> to vector<1x128xf32>
    %161 = vector.broadcast %160 : vector<1x128xf32> to vector<16x128xf32>
    %162 = arith.subf %137, %161 : vector<16x128xf32>
    %163 = vector.extract_strided_slice %159 {offsets = [0, 128], sizes = [1, 128], strides = [1, 1]} : vector<1x256xf32> to vector<1x128xf32>
    %164 = vector.broadcast %163 : vector<1x128xf32> to vector<16x128xf32>
    %165 = arith.mulf %162, %164 : vector<16x128xf32>
    %166 = vector.broadcast %138 : vector<1x128xf32> to vector<16x128xf32>
    %167 = arith.mulf %165, %166 : vector<16x128xf32>
    %168 = vector.broadcast %139 : vector<1x128xf32> to vector<16x128xf32>
    %169 = arith.addf %167, %168 : vector<16x128xf32>
    %cst_78 = arith.constant 0.000000e+00 : f32
    %170 = vector.broadcast %cst_78 : f32 to vector<16x128xf32>
    %171 = arith.maximumf %169, %170 : vector<16x128xf32>
    %c0_79 = arith.constant 0 : index
    %c0_80 = arith.constant 0 : index
    %172 = vector.load %arg15[%c0_79, %c0_80] : memref<128x384xf32, #tpu.memory_space<vmem>>, vector<128x384xf32>
    %cst_81 = arith.constant dense<0.000000e+00> : vector<16x384xf32>
    %173 = tpu.matmul %171, %172, %cst_81 {dimension_numbers = #tpu.dot_dimension_numbers<[1], [0], [0], [1], [0, 0, 1, 1], [], []>} : vector<16x128xf32>, vector<128x384xf32>, vector<16x384xf32> -> vector<16x384xf32>
    %c0_82 = arith.constant 0 : index
    %c0_83 = arith.constant 0 : index
    %174 = vector.load %arg16[%c0_82, %c0_83] : memref<1x128xf32, #tpu.memory_space<vmem>>, vector<1x128xf32>
    %175 = vector.extract_strided_slice %173 {offsets = [0, 0], sizes = [16, 128], strides = [1, 1]} : vector<16x384xf32> to vector<16x128xf32>
    %c4_i32_84 = arith.constant 4 : i32
    %176 = tpu.dynamic_rotate %175 by %c4_i32_84 dim 0 : vector<16x128xf32>, i32 -> vector<16x128xf32>
    %c4_i32_85 = arith.constant 4 : i32
    %177 = vector.broadcast %c4_i32_85 : i32 to vector<16x128xi32>
    %178 = arith.cmpi sge, %0, %177 : vector<16x128xi32>
    %cst_86 = arith.constant 0.000000e+00 : f32
    %179 = vector.broadcast %cst_86 : f32 to vector<16x128xf32>
    %180 = arith.select %178, %176, %179 : vector<16x128xi1>, vector<16x128xf32>
    %181 = vector.extract_strided_slice %173 {offsets = [0, 128], sizes = [16, 128], strides = [1, 1]} : vector<16x384xf32> to vector<16x128xf32>
    %c2_i32_87 = arith.constant 2 : i32
    %182 = tpu.dynamic_rotate %181 by %c2_i32_87 dim 0 : vector<16x128xf32>, i32 -> vector<16x128xf32>
    %c2_i32_88 = arith.constant 2 : i32
    %183 = vector.broadcast %c2_i32_88 : i32 to vector<16x128xi32>
    %184 = arith.cmpi sge, %0, %183 : vector<16x128xi32>
    %cst_89 = arith.constant 0.000000e+00 : f32
    %185 = vector.broadcast %cst_89 : f32 to vector<16x128xf32>
    %186 = arith.select %184, %182, %185 : vector<16x128xi1>, vector<16x128xf32>
    %187 = arith.addf %180, %186 : vector<16x128xf32>
    %188 = vector.extract_strided_slice %173 {offsets = [0, 256], sizes = [16, 128], strides = [1, 1]} : vector<16x384xf32> to vector<16x128xf32>
    %189 = arith.addf %187, %188 : vector<16x128xf32>
    %190 = vector.broadcast %174 : vector<1x128xf32> to vector<16x128xf32>
    %191 = arith.addf %189, %190 : vector<16x128xf32>
    %c0_90 = arith.constant 0 : index
    %c0_91 = arith.constant 0 : index
    %192 = vector.load %arg17[%c0_90, %c0_91] : memref<1x128xf32, #tpu.memory_space<vmem>>, vector<1x128xf32>
    %c0_92 = arith.constant 0 : index
    %c0_93 = arith.constant 0 : index
    %193 = vector.load %arg18[%c0_92, %c0_93] : memref<1x128xf32, #tpu.memory_space<vmem>>, vector<1x128xf32>
    %cst_94 = arith.constant dense<0.000000e+00> : vector<128xf32>
    %194 = vector.multi_reduction <add>, %191, %cst_94 [0] : vector<16x128xf32> to vector<128xf32>
    %195 = vector.shape_cast %194 : vector<128xf32> to vector<1x128xf32>
    %196 = arith.mulf %191, %191 : vector<16x128xf32>
    %cst_95 = arith.constant dense<0.000000e+00> : vector<128xf32>
    %197 = vector.multi_reduction <add>, %196, %cst_95 [0] : vector<16x128xf32> to vector<128xf32>
    %198 = vector.shape_cast %197 : vector<128xf32> to vector<1x128xf32>
    %199 = tpu.concatenate %195, %198 in 1 : vector<1x128xf32>, vector<1x128xf32> -> vector<1x256xf32>
    %c0_96 = arith.constant 0 : index
    %c0_97 = arith.constant 0 : index
    %200 = vector.load %arg21[%c0_96, %c0_97] : memref<256x256xf32, #tpu.memory_space<vmem>>, vector<256x256xf32>
    %cst_98 = arith.constant dense<0.000000e+00> : vector<1x256xf32>
    %201 = tpu.matmul %199, %200, %cst_98 {dimension_numbers = #tpu.dot_dimension_numbers<[1], [0], [0], [1], [0, 0, 1, 1], [], []>} : vector<1x256xf32>, vector<256x256xf32>, vector<1x256xf32> -> vector<1x256xf32>
    %cst_99 = arith.constant 1.562500e-02 : f32
    %202 = vector.broadcast %cst_99 : f32 to vector<1x256xf32>
    %203 = arith.mulf %201, %202 : vector<1x256xf32>
    %204 = vector.extract_strided_slice %203 {offsets = [0, 0], sizes = [1, 128], strides = [1, 1]} : vector<1x256xf32> to vector<1x128xf32>
    %205 = vector.extract_strided_slice %203 {offsets = [0, 128], sizes = [1, 128], strides = [1, 1]} : vector<1x256xf32> to vector<1x128xf32>
    %206 = arith.mulf %204, %204 : vector<1x128xf32>
    %207 = arith.subf %205, %206 : vector<1x128xf32>
    %cst_100 = arith.constant 9.99999974E-6 : f32
    %208 = vector.broadcast %cst_100 : f32 to vector<1x128xf32>
    %209 = arith.addf %207, %208 : vector<1x128xf32>
    %210 = math.rsqrt %209 : vector<1x128xf32>
    %211 = tpu.concatenate %204, %210 in 1 : vector<1x128xf32>, vector<1x128xf32> -> vector<1x256xf32>
    %c0_101 = arith.constant 0 : index
    %c0_102 = arith.constant 0 : index
    %212 = vector.load %arg22[%c0_101, %c0_102] : memref<256x256xf32, #tpu.memory_space<vmem>>, vector<256x256xf32>
    %cst_103 = arith.constant dense<0.000000e+00> : vector<1x256xf32>
    %213 = tpu.matmul %211, %212, %cst_103 {dimension_numbers = #tpu.dot_dimension_numbers<[1], [0], [0], [1], [0, 0, 1, 1], [], []>} : vector<1x256xf32>, vector<256x256xf32>, vector<1x256xf32> -> vector<1x256xf32>
    %214 = vector.extract_strided_slice %213 {offsets = [0, 0], sizes = [1, 128], strides = [1, 1]} : vector<1x256xf32> to vector<1x128xf32>
    %215 = vector.broadcast %214 : vector<1x128xf32> to vector<16x128xf32>
    %216 = arith.subf %191, %215 : vector<16x128xf32>
    %217 = vector.extract_strided_slice %213 {offsets = [0, 128], sizes = [1, 128], strides = [1, 1]} : vector<1x256xf32> to vector<1x128xf32>
    %218 = vector.broadcast %217 : vector<1x128xf32> to vector<16x128xf32>
    %219 = arith.mulf %216, %218 : vector<16x128xf32>
    %220 = vector.broadcast %192 : vector<1x128xf32> to vector<16x128xf32>
    %221 = arith.mulf %219, %220 : vector<16x128xf32>
    %222 = vector.broadcast %193 : vector<1x128xf32> to vector<16x128xf32>
    %223 = arith.addf %221, %222 : vector<16x128xf32>
    %cst_104 = arith.constant 0.000000e+00 : f32
    %224 = vector.broadcast %cst_104 : f32 to vector<16x128xf32>
    %225 = arith.maximumf %223, %224 : vector<16x128xf32>
    %226 = arith.addf %225, %117 : vector<16x128xf32>
    %cst_105 = arith.constant 0.000000e+00 : f32
    %227 = vector.broadcast %cst_105 : f32 to vector<16x128xf32>
    %228 = arith.maximumf %226, %227 : vector<16x128xf32>
    %c0_106 = arith.constant 0 : index
    %c0_107 = arith.constant 0 : index
    %229 = vector.load %arg19[%c0_106, %c0_107] : memref<128x128xf32, #tpu.memory_space<vmem>>, vector<128x128xf32>
    %cst_108 = arith.constant dense<0.000000e+00> : vector<16x128xf32>
    %230 = tpu.matmul %228, %229, %cst_108 {dimension_numbers = #tpu.dot_dimension_numbers<[1], [0], [0], [1], [0, 0, 1, 1], [], []>} : vector<16x128xf32>, vector<128x128xf32>, vector<16x128xf32> -> vector<16x128xf32>
    %c0_109 = arith.constant 0 : index
    %c0_110 = arith.constant 0 : index
    %231 = vector.load %arg20[%c0_109, %c0_110] : memref<1x128xf32, #tpu.memory_space<vmem>>, vector<1x128xf32>
    %232 = vector.broadcast %231 : vector<1x128xf32> to vector<16x128xf32>
    %233 = arith.addf %230, %232 : vector<16x128xf32>
    %c0_111 = arith.constant 0 : index
    %c0_112 = arith.constant 0 : index
    %c0_113 = arith.constant 0 : index
    %234 = vector.load %arg23[%c0_111, %c0_112, %c0_113] : memref<1x16x128xf32, #tpu.memory_space<vmem>>, vector<1x16x128xf32>
    %235 = vector.shape_cast %234 : vector<1x16x128xf32> to vector<16x128xf32>
    %236 = vector.shape_cast %233 : vector<16x128xf32> to vector<1x16x128xf32>
    tpu.vector_store %arg23[%c0_111, %c0_112, %c0_113], %236 {strides = array<i32>} : memref<1x16x128xf32, #tpu.memory_space<vmem>>, vector<1x16x128xf32>,
    return
  }
  func.func @transform_0(%arg0: i32) -> (i32, i32, i32) {
    %c0_i32 = arith.constant 0 : i32
    %c0_i32_0 = arith.constant 0 : i32
    %c0_i32_1 = arith.constant 0 : i32
    return %arg0, %c0_i32, %c0_i32_0 : i32, i32, i32
  }
  func.func @transform_1(%arg0: i32) -> (i32, i32) {
    %c0_i32 = arith.constant 0 : i32
    %c0_i32_0 = arith.constant 0 : i32
    %c0_i32_1 = arith.constant 0 : i32
    return %c0_i32, %c0_i32_0 : i32, i32
  }
  func.func @transform_2(%arg0: i32) -> (i32, i32) {
    %c0_i32 = arith.constant 0 : i32
    %c0_i32_0 = arith.constant 0 : i32
    %c0_i32_1 = arith.constant 0 : i32
    return %c0_i32, %c0_i32_0 : i32, i32
  }
  func.func @transform_3(%arg0: i32) -> (i32, i32) {
    %c0_i32 = arith.constant 0 : i32
    %c0_i32_0 = arith.constant 0 : i32
    %c0_i32_1 = arith.constant 0 : i32
    return %c0_i32, %c0_i32_0 : i32, i32
  }
  func.func @transform_4(%arg0: i32) -> (i32, i32) {
    %c0_i32 = arith.constant 0 : i32
    %c0_i32_0 = arith.constant 0 : i32
    %c0_i32_1 = arith.constant 0 : i32
    return %c0_i32, %c0_i32_0 : i32, i32
  }
  func.func @transform_5(%arg0: i32) -> (i32, i32) {
    %c0_i32 = arith.constant 0 : i32
    %c0_i32_0 = arith.constant 0 : i32
    %c0_i32_1 = arith.constant 0 : i32
    return %c0_i32, %c0_i32_0 : i32, i32
  }
  func.func @transform_6(%arg0: i32) -> (i32, i32) {
    %c0_i32 = arith.constant 0 : i32
    %c0_i32_0 = arith.constant 0 : i32
    %c0_i32_1 = arith.constant 0 : i32
    return %c0_i32, %c0_i32_0 : i32, i32
  }
  func.func @transform_7(%arg0: i32) -> (i32, i32) {
    %c0_i32 = arith.constant 0 : i32
    %c0_i32_0 = arith.constant 0 : i32
    %c0_i32_1 = arith.constant 0 : i32
    return %c0_i32, %c0_i32_0 : i32, i32
  }
  func.func @transform_8(%arg0: i32) -> (i32, i32) {
    %c0_i32 = arith.constant 0 : i32
    %c0_i32_0 = arith.constant 0 : i32
    %c0_i32_1 = arith.constant 0 : i32
    return %c0_i32, %c0_i32_0 : i32, i32
  }
  func.func @transform_9(%arg0: i32) -> (i32, i32) {
    %c0_i32 = arith.constant 0 : i32
    %c0_i32_0 = arith.constant 0 : i32
    %c0_i32_1 = arith.constant 0 : i32
    return %c0_i32, %c0_i32_0 : i32, i32
  }
  func.func @transform_10(%arg0: i32) -> (i32, i32) {
    %c0_i32 = arith.constant 0 : i32
    %c0_i32_0 = arith.constant 0 : i32
    %c0_i32_1 = arith.constant 0 : i32
    return %c0_i32, %c0_i32_0 : i32, i32
  }
  func.func @transform_11(%arg0: i32) -> (i32, i32) {
    %c0_i32 = arith.constant 0 : i32
    %c0_i32_0 = arith.constant 0 : i32
    %c0_i32_1 = arith.constant 0 : i32
    return %c0_i32, %c0_i32_0 : i32, i32
  }
  func.func @transform_12(%arg0: i32) -> (i32, i32) {
    %c0_i32 = arith.constant 0 : i32
    %c0_i32_0 = arith.constant 0 : i32
    %c0_i32_1 = arith.constant 0 : i32
    return %c0_i32, %c0_i32_0 : i32, i32
  }
  func.func @transform_13(%arg0: i32) -> (i32, i32) {
    %c0_i32 = arith.constant 0 : i32
    %c0_i32_0 = arith.constant 0 : i32
    %c0_i32_1 = arith.constant 0 : i32
    return %c0_i32, %c0_i32_0 : i32, i32
  }
  func.func @transform_14(%arg0: i32) -> (i32, i32) {
    %c0_i32 = arith.constant 0 : i32
    %c0_i32_0 = arith.constant 0 : i32
    %c0_i32_1 = arith.constant 0 : i32
    return %c0_i32, %c0_i32_0 : i32, i32
  }
  func.func @transform_15(%arg0: i32) -> (i32, i32) {
    %c0_i32 = arith.constant 0 : i32
    %c0_i32_0 = arith.constant 0 : i32
    %c0_i32_1 = arith.constant 0 : i32
    return %c0_i32, %c0_i32_0 : i32, i32
  }
  func.func @transform_16(%arg0: i32) -> (i32, i32) {
    %c0_i32 = arith.constant 0 : i32
    %c0_i32_0 = arith.constant 0 : i32
    %c0_i32_1 = arith.constant 0 : i32
    return %c0_i32, %c0_i32_0 : i32, i32
  }
  func.func @transform_17(%arg0: i32) -> (i32, i32) {
    %c0_i32 = arith.constant 0 : i32
    %c0_i32_0 = arith.constant 0 : i32
    %c0_i32_1 = arith.constant 0 : i32
    return %c0_i32, %c0_i32_0 : i32, i32
  }
  func.func @transform_18(%arg0: i32) -> (i32, i32) {
    %c0_i32 = arith.constant 0 : i32
    %c0_i32_0 = arith.constant 0 : i32
    %c0_i32_1 = arith.constant 0 : i32
    return %c0_i32, %c0_i32_0 : i32, i32
  }
  func.func @transform_19(%arg0: i32) -> (i32, i32) {
    %c0_i32 = arith.constant 0 : i32
    %c0_i32_0 = arith.constant 0 : i32
    %c0_i32_1 = arith.constant 0 : i32
    return %c0_i32, %c0_i32_0 : i32, i32
  }
  func.func @transform_20(%arg0: i32) -> (i32, i32) {
    %c0_i32 = arith.constant 0 : i32
    %c0_i32_0 = arith.constant 0 : i32
    %c0_i32_1 = arith.constant 0 : i32
    return %c0_i32, %c0_i32_0 : i32, i32
  }
  func.func @transform_21(%arg0: i32) -> (i32, i32) {
    %c0_i32 = arith.constant 0 : i32
    %c0_i32_0 = arith.constant 0 : i32
    %c0_i32_1 = arith.constant 0 : i32
    return %c0_i32, %c0_i32_0 : i32, i32
  }
  func.func @transform_22(%arg0: i32) -> (i32, i32, i32) {
    %c0_i32 = arith.constant 0 : i32
    %c0_i32_0 = arith.constant 0 : i32
    %c0_i32_1 = arith.constant 0 : i32
    return %arg0, %c0_i32, %c0_i32_0 : i32, i32, i32
  }
}

</mosaic_0001>

<llo_original>
// kernel: tcn_forward.1
$region0: #{tcn_forward.1}
  #allocation0 [shape = 'u32[]', space=smem, size = 0x4, offset = 0x4, fixed_abs, tag = 'smem constant byte address 0x4 - core index']
  #allocation1 [shape = 'u32[144,128]{1,0:T(1,128)}', space=vmem, size = 0x12000, scoped, tag = 'internal scratch']
  %s0 = inlined_call_operand.vmem [shape: f32[2,16,4], index: 0, kind: input, shape index: {}]
  %s1 = inlined_call_operand.vmem [shape: f32[4,512], index: 1, kind: input, shape index: {}]
  %s2 = inlined_call_operand.vmem [shape: f32[1,128], index: 2, kind: input, shape index: {}]
  %s3 = inlined_call_operand.vmem [shape: f32[1,128], index: 3, kind: input, shape index: {}]
  %s4 = inlined_call_operand.vmem [shape: f32[1,128], index: 4, kind: input, shape index: {}]
  %s5 = inlined_call_operand.vmem [shape: f32[128,384], index: 5, kind: input, shape index: {}]
  %s6 = inlined_call_operand.vmem [shape: f32[1,128], index: 6, kind: input, shape index: {}]
  %s7 = inlined_call_operand.vmem [shape: f32[1,128], index: 7, kind: input, shape index: {}]
  %s8 = inlined_call_operand.vmem [shape: f32[1,128], index: 8, kind: input, shape index: {}]
  %s9 = inlined_call_operand.vmem [shape: f32[1,128], index: 9, kind: input, shape index: {}]
  %s10 = inlined_call_operand.vmem [shape: f32[128,384], index: 10, kind: input, shape index: {}]
  %s11 = inlined_call_operand.vmem [shape: f32[1,128], index: 11, kind: input, shape index: {}]
  %s12 = inlined_call_operand.vmem [shape: f32[1,128], index: 12, kind: input, shape index: {}]
  %s13 = inlined_call_operand.vmem [shape: f32[1,128], index: 13, kind: input, shape index: {}]
  %s14 = inlined_call_operand.vmem [shape: f32[128,384], index: 14, kind: input, shape index: {}]
  %s15 = inlined_call_operand.vmem [shape: f32[1,128], index: 15, kind: input, shape index: {}]
  %s16 = inlined_call_operand.vmem [shape: f32[1,128], index: 16, kind: input, shape index: {}]
  %s17 = inlined_call_operand.vmem [shape: f32[1,128], index: 17, kind: input, shape index: {}]
  %s18 = inlined_call_operand.vmem [shape: f32[128,128], index: 18, kind: input, shape index: {}]
  %s19 = inlined_call_operand.vmem [shape: f32[1,128], index: 19, kind: input, shape index: {}]
  %s20 = inlined_call_operand.vmem [shape: f32[256,256], index: 20, kind: input, shape index: {}]
  %s21 = inlined_call_operand.vmem [shape: f32[256,256], index: 21, kind: input, shape index: {}]
  %s22 = inlined_call_operand.vmem [shape: f32[2,16,128], index: 22, kind: output, shape index: {}]
  %s23 = sld [smem:[#allocation0]]
  $region121: #{tcn_forward.1} parent=0
    _
  %s25 = ssub.s32 1, %s23
  %s26 = scalar_select 0, %s25, %s23
  loop: start=0, step=1, limit=4
  $region2: #{tcn_forward.1} parent=0 // loop_pre_header
    _
  $region3: #{tcn_forward.1} parent=0 // loop_header
    %s28 = sphi 0, %s32
    %p29 = scmp.ge.s32.totalorder %s28, 4
    %s38 = sphi 0, %s40
    %s41 = sphi 0, %s38
    %s42 = sphi 0, %s41
    %s58 = sphi 0, %s42
    %s62 = sphi 0, %s62
    %s64 = sphi 0, %s62
    %s65 = sphi 0, %s64
    %s79 = sphi 0, %s65
    %s83 = sphi 0, %s83
    %s85 = sphi 0, %s83
    %s86 = sphi 0, %s85
    %s100 = sphi 0, %s86
    %s104 = sphi 0, %s104
    %s106 = sphi 0, %s104
    %s107 = sphi 0, %s106
    %s121 = sphi 0, %s107
    %s125 = sphi 0, %s125
    %s127 = sphi 0, %s125
    %s128 = sphi 0, %s127
    %s142 = sphi 0, %s128
    %s146 = sphi 0, %s146
    %s148 = sphi 0, %s146
    %s149 = sphi 0, %s148
    %s163 = sphi 0, %s149
    %s167 = sphi 0, %s167
    %s169 = sphi 0, %s167
    %s170 = sphi 0, %s169
    %s184 = sphi 0, %s170
    %s188 = sphi 0, %s188
    %s190 = sphi 0, %s188
    %s191 = sphi 0, %s190
    %s205 = sphi 0, %s191
    %s209 = sphi 0, %s209
    %s211 = sphi 0, %s209
    %s212 = sphi 0, %s211
    %s226 = sphi 0, %s212
    %s230 = sphi 0, %s230
    %s232 = sphi 0, %s230
    %s233 = sphi 0, %s232
    %s247 = sphi 0, %s233
    %s251 = sphi 0, %s251
    %s253 = sphi 0, %s251
    %s254 = sphi 0, %s253
    %s268 = sphi 0, %s254
    %s272 = sphi 0, %s272
    %s274 = sphi 0, %s272
    %s275 = sphi 0, %s274
    %s289 = sphi 0, %s275
    %s293 = sphi 0, %s293
    %s295 = sphi 0, %s293
    %s296 = sphi 0, %s295
    %s310 = sphi 0, %s296
    %s314 = sphi 0, %s314
    %s316 = sphi 0, %s314
    %s317 = sphi 0, %s316
    %s331 = sphi 0, %s317
    %s335 = sphi 0, %s335
    %s337 = sphi 0, %s335
    %s338 = sphi 0, %s337
    %s352 = sphi 0, %s338
    %s356 = sphi 0, %s356
    %s358 = sphi 0, %s356
    %s359 = sphi 0, %s358
    %s373 = sphi 0, %s359
    %s377 = sphi 0, %s377
    %s379 = sphi 0, %s377
    %s380 = sphi 0, %s379
    %s394 = sphi 0, %s380
    %s398 = sphi 0, %s398
    %s400 = sphi 0, %s398
    %s401 = sphi 0, %s400
    %s415 = sphi 0, %s401
    %s419 = sphi 0, %s419
    %s421 = sphi 0, %s419
    %s422 = sphi 0, %s421
    %s436 = sphi 0, %s422
    %s440 = sphi 0, %s440
    %s442 = sphi 0, %s440
    %s443 = sphi 0, %s442
    %s457 = sphi 0, %s443
    %s461 = sphi 0, %s461
    %s463 = sphi 0, %s461
    %s464 = sphi 0, %s463
    %s478 = sphi 0, %s464
    %s482 = sphi 0, %s482
    %s484 = sphi 0, %s482
    %s485 = sphi 0, %s484
    %s499 = sphi 0, %s485
    %s505 = sphi 0, %s507
    %s508 = sphi 0, %s505
    %s509 = sphi 0, %s508
    %s525 = sphi 0, %s509
  $region4: #{tcn_forward.1} parent=0 // loop_header_branch
    %31 = sbr.rel (%p29) target = $region8
  $region5: #{tcn_forward.1} parent=0 // loop_body
    %s33 = ssub.s32 %s28, 1
    %s34 = ssub.s32 %s28, 2
    %s35 = sadd.s32 %s28, 1
    %s36 = ssub.s32 %s28, %s35
    %p37 = scmp.eq.s32.totalorder %s36, 0
    %s39 = sadd.s32 %s38, 1
    %s40 = scalar_select %p37, %s38, %s39
    %p43 = pneg %p37
    %p44 = scmp.eq.s32.totalorder %s28, 1
    %p45 = por %p43, %p44
    %p46 = scmp.ne.s32.totalorder %s38, %s41
    %p47 = scmp.eq.s32.totalorder %s28, 0
    %p48 = por %p46, %p47
    %p49 = scmp.ne.s32.totalorder %s38, %s41
    %p50 = scmp.eq.s32.totalorder %s33, 1
    %p51 = por %p49, %p50
    %p52 = scmp.ne.s32.totalorder %s41, %s42
    %p53 = scmp.eq.s32.totalorder %s33, 0
    %p54 = por %p52, %p53
    %p55 = scmp.ne.s32.totalorder %s41, %s42
    %p56 = scmp.eq.s32.totalorder %s34, 1
    %p57 = por %p55, %p56
    %p59 = scmp.ne.s32.totalorder %s42, %s58
    %p60 = scmp.eq.s32.totalorder %s34, 0
    %p61 = por %p59, %p60
    %s63 = sadd.s32 %s62, 1
    %p66 = scmp.eq.s32.totalorder %s28, 1
    %p67 = scmp.ne.s32.totalorder %s62, %s64
    %p68 = scmp.eq.s32.totalorder %s28, 0
    %p69 = por %p67, %p68
    %p70 = scmp.ne.s32.totalorder %s62, %s64
    %p71 = scmp.eq.s32.totalorder %s33, 1
    %p72 = por %p70, %p71
    %p73 = scmp.ne.s32.totalorder %s64, %s65
    %p74 = scmp.eq.s32.totalorder %s33, 0
    %p75 = por %p73, %p74
    %p76 = scmp.ne.s32.totalorder %s64, %s65
    %p77 = scmp.eq.s32.totalorder %s34, 1
    %p78 = por %p76, %p77
    %p80 = scmp.ne.s32.totalorder %s65, %s79
    %p81 = scmp.eq.s32.totalorder %s34, 0
    %p82 = por %p80, %p81
    %s84 = sadd.s32 %s83, 1
    %p87 = scmp.eq.s32.totalorder %s28, 1
    %p88 = scmp.ne.s32.totalorder %s83, %s85
    %p89 = scmp.eq.s32.totalorder %s28, 0
    %p90 = por %p88, %p89
    %p91 = scmp.ne.s32.totalorder %s83, %s85
    %p92 = scmp.eq.s32.totalorder %s33, 1
    %p93 = por %p91, %p92
    %p94 = scmp.ne.s32.totalorder %s85, %s86
    %p95 = scmp.eq.s32.totalorder %s33, 0
    %p96 = por %p94, %p95
    %p97 = scmp.ne.s32.totalorder %s85, %s86
    %p98 = scmp.eq.s32.totalorder %s34, 1
    %p99 = por %p97, %p98
    %p101 = scmp.ne.s32.totalorder %s86, %s100
    %p102 = scmp.eq.s32.totalorder %s34, 0
    %p103 = por %p101, %p102
    %s105 = sadd.s32 %s104, 1
    %p108 = scmp.eq.s32.totalorder %s28, 1
    %p109 = scmp.ne.s32.totalorder %s104, %s106
    %p110 = scmp.eq.s32.totalorder %s28, 0
    %p111 = por %p109, %p110
    %p112 = scmp.ne.s32.totalorder %s104, %s106
    %p113 = scmp.eq.s32.totalorder %s33, 1
    %p114 = por %p112, %p113
    %p115 = scmp.ne.s32.totalorder %s106, %s107
    %p116 = scmp.eq.s32.totalorder %s33, 0
    %p117 = por %p115, %p116
    %p118 = scmp.ne.s32.totalorder %s106, %s107
    %p119 = scmp.eq.s32.totalorder %s34, 1
    %p120 = por %p118, %p119
    %p122 = scmp.ne.s32.totalorder %s107, %s121
    %p123 = scmp.eq.s32.totalorder %s34, 0
    %p124 = por %p122, %p123
    %s126 = sadd.s32 %s125, 1
    %p129 = scmp.eq.s32.totalorder %s28, 1
    %p130 = scmp.ne.s32.totalorder %s125, %s127
    %p131 = scmp.eq.s32.totalorder %s28, 0
    %p132 = por %p130, %p131
    %p133 = scmp.ne.s32.totalorder %s125, %s127
    %p134 = scmp.eq.s32.totalorder %s33, 1
    %p135 = por %p133, %p134
    %p136 = scmp.ne.s32.totalorder %s127, %s128
    %p137 = scmp.eq.s32.totalorder %s33, 0
    %p138 = por %p136, %p137
    %p139 = scmp.ne.s32.totalorder %s127, %s128
    %p140 = scmp.eq.s32.totalorder %s34, 1
    %p141 = por %p139, %p140
    %p143 = scmp.ne.s32.totalorder %s128, %s142
    %p144 = scmp.eq.s32.totalorder %s34, 0
    %p145 = por %p143, %p144
    %s147 = sadd.s32 %s146, 1
    %p150 = scmp.eq.s32.totalorder %s28, 1
    %p151 = scmp.ne.s32.totalorder %s146, %s148
    %p152 = scmp.eq.s32.totalorder %s28, 0
    %p153 = por %p151, %p152
    %p154 = scmp.ne.s32.totalorder %s146, %s148
    %p155 = scmp.eq.s32.totalorder %s33, 1
    %p156 = por %p154, %p155
    %p157 = scmp.ne.s32.totalorder %s148, %s149
    %p158 = scmp.eq.s32.totalorder %s33, 0
    %p159 = por %p157, %p158
    %p160 = scmp.ne.s32.totalorder %s148, %s149
    %p161 = scmp.eq.s32.totalorder %s34, 1
    %p162 = por %p160, %p161
    %p164 = scmp.ne.s32.totalorder %s149, %s163
    %p165 = scmp.eq.s32.totalorder %s34, 0
    %p166 = por %p164, %p165
    %s168 = sadd.s32 %s167, 1
    %p171 = scmp.eq.s32.totalorder %s28, 1
    %p172 = scmp.ne.s32.totalorder %s167, %s169
    %p173 = scmp.eq.s32.totalorder %s28, 0
    %p174 = por %p172, %p173
    %p175 = scmp.ne.s32.totalorder %s167, %s169
    %p176 = scmp.eq.s32.totalorder %s33, 1
    %p177 = por %p175, %p176
    %p178 = scmp.ne.s32.totalorder %s169, %s170
    %p179 = scmp.eq.s32.totalorder %s33, 0
    %p180 = por %p178, %p179
    %p181 = scmp.ne.s32.totalorder %s169, %s170
    %p182 = scmp.eq.s32.totalorder %s34, 1
    %p183 = por %p181, %p182
    %p185 = scmp.ne.s32.totalorder %s170, %s184
    %p186 = scmp.eq.s32.totalorder %s34, 0
    %p187 = por %p185, %p186
    %s189 = sadd.s32 %s188, 1
    %p192 = scmp.eq.s32.totalorder %s28, 1
    %p193 = scmp.ne.s32.totalorder %s188, %s190
    %p194 = scmp.eq.s32.totalorder %s28, 0
    %p195 = por %p193, %p194
    %p196 = scmp.ne.s32.totalorder %s188, %s190
    %p197 = scmp.eq.s32.totalorder %s33, 1
    %p198 = por %p196, %p197
    %p199 = scmp.ne.s32.totalorder %s190, %s191
    %p200 = scmp.eq.s32.totalorder %s33, 0
    %p201 = por %p199, %p200
    %p202 = scmp.ne.s32.totalorder %s190, %s191
    %p203 = scmp.eq.s32.totalorder %s34, 1
    %p204 = por %p202, %p203
    %p206 = scmp.ne.s32.totalorder %s191, %s205
    %p207 = scmp.eq.s32.totalorder %s34, 0
    %p208 = por %p206, %p207
    %s210 = sadd.s32 %s209, 1
    %p213 = scmp.eq.s32.totalorder %s28, 1
    %p214 = scmp.ne.s32.totalorder %s209, %s211
    %p215 = scmp.eq.s32.totalorder %s28, 0
    %p216 = por %p214, %p215
    %p217 = scmp.ne.s32.totalorder %s209, %s211
    %p218 = scmp.eq.s32.totalorder %s33, 1
    %p219 = por %p217, %p218
    %p220 = scmp.ne.s32.totalorder %s211, %s212
    %p221 = scmp.eq.s32.totalorder %s33, 0
    %p222 = por %p220, %p221
    %p223 = scmp.ne.s32.totalorder %s211, %s212
    %p224 = scmp.eq.s32.totalorder %s34, 1
    %p225 = por %p223, %p224
    %p227 = scmp.ne.s32.totalorder %s212, %s226
    %p228 = scmp.eq.s32.totalorder %s34, 0
    %p229 = por %p227, %p228
    %s231 = sadd.s32 %s230, 1
    %p234 = scmp.eq.s32.totalorder %s28, 1
    %p235 = scmp.ne.s32.totalorder %s230, %s232
    %p236 = scmp.eq.s32.totalorder %s28, 0
    %p237 = por %p235, %p236
    %p238 = scmp.ne.s32.totalorder %s230, %s232
    %p239 = scmp.eq.s32.totalorder %s33, 1
    %p240 = por %p238, %p239
    %p241 = scmp.ne.s32.totalorder %s232, %s233
    %p242 = scmp.eq.s32.totalorder %s33, 0
    %p243 = por %p241, %p242
    %p244 = scmp.ne.s32.totalorder %s232, %s233
    %p245 = scmp.eq.s32.totalorder %s34, 1
    %p246 = por %p244, %p245
    %p248 = scmp.ne.s32.totalorder %s233, %s247
    %p249 = scmp.eq.s32.totalorder %s34, 0
    %p250 = por %p248, %p249
    %s252 = sadd.s32 %s251, 1
    %p255 = scmp.eq.s32.totalorder %s28, 1
    %p256 = scmp.ne.s32.totalorder %s251, %s253
    %p257 = scmp.eq.s32.totalorder %s28, 0
    %p258 = por %p256, %p257
    %p259 = scmp.ne.s32.totalorder %s251, %s253
    %p260 = scmp.eq.s32.totalorder %s33, 1
    %p261 = por %p259, %p260
    %p262 = scmp.ne.s32.totalorder %s253, %s254
    %p263 = scmp.eq.s32.totalorder %s33, 0
    %p264 = por %p262, %p263
    %p265 = scmp.ne.s32.totalorder %s253, %s254
    %p266 = scmp.eq.s32.totalorder %s34, 1
    %p267 = por %p265, %p266
    %p269 = scmp.ne.s32.totalorder %s254, %s268
    %p270 = scmp.eq.s32.totalorder %s34, 0
    %p271 = por %p269, %p270
    %s273 = sadd.s32 %s272, 1
    %p276 = scmp.eq.s32.totalorder %s28, 1
    %p277 = scmp.ne.s32.totalorder %s272, %s274
    %p278 = scmp.eq.s32.totalorder %s28, 0
    %p279 = por %p277, %p278
    %p280 = scmp.ne.s32.totalorder %s272, %s274
    %p281 = scmp.eq.s32.totalorder %s33, 1
    %p282 = por %p280, %p281
    %p283 = scmp.ne.s32.totalorder %s274, %s275
    %p284 = scmp.eq.s32.totalorder %s33, 0
    %p285 = por %p283, %p284
    %p286 = scmp.ne.s32.totalorder %s274, %s275
    %p287 = scmp.eq.s32.totalorder %s34, 1
    %p288 = por %p286, %p287
    %p290 = scmp.ne.s32.totalorder %s275, %s289
    %p291 = scmp.eq.s32.totalorder %s34, 0
    %p292 = por %p290, %p291
    %s294 = sadd.s32 %s293, 1
    %p297 = scmp.eq.s32.totalorder %s28, 1
    %p298 = scmp.ne.s32.totalorder %s293, %s295
    %p299 = scmp.eq.s32.totalorder %s28, 0
    %p300 = por %p298, %p299
    %p301 = scmp.ne.s32.totalorder %s293, %s295
    %p302 = scmp.eq.s32.totalorder %s33, 1
    %p303 = por %p301, %p302
    %p304 = scmp.ne.s32.totalorder %s295, %s296
    %p305 = scmp.eq.s32.totalorder %s33, 0
    %p306 = por %p304, %p305
    %p307 = scmp.ne.s32.totalorder %s295, %s296
    %p308 = scmp.eq.s32.totalorder %s34, 1
    %p309 = por %p307, %p308
    %p311 = scmp.ne.s32.totalorder %s296, %s310
    %p312 = scmp.eq.s32.totalorder %s34, 0
    %p313 = por %p311, %p312
    %s315 = sadd.s32 %s314, 1
    %p318 = scmp.eq.s32.totalorder %s28, 1
    %p319 = scmp.ne.s32.totalorder %s314, %s316
    %p320 = scmp.eq.s32.totalorder %s28, 0
    %p321 = por %p319, %p320
    %p322 = scmp.ne.s32.totalorder %s314, %s316
    %p323 = scmp.eq.s32.totalorder %s33, 1
    %p324 = por %p322, %p323
    %p325 = scmp.ne.s32.totalorder %s316, %s317
    %p326 = scmp.eq.s32.totalorder %s33, 0
    %p327 = por %p325, %p326
    %p328 = scmp.ne.s32.totalorder %s316, %s317
    %p329 = scmp.eq.s32.totalorder %s34, 1
    %p330 = por %p328, %p329
    %p332 = scmp.ne.s32.totalorder %s317, %s331
    %p333 = scmp.eq.s32.totalorder %s34, 0
    %p334 = por %p332, %p333
    %s336 = sadd.s32 %s335, 1
    %p339 = scmp.eq.s32.totalorder %s28, 1
    %p340 = scmp.ne.s32.totalorder %s335, %s337
    %p341 = scmp.eq.s32.totalorder %s28, 0
    %p342 = por %p340, %p341
    %p343 = scmp.ne.s32.totalorder %s335, %s337
    %p344 = scmp.eq.s32.totalorder %s33, 1
    %p345 = por %p343, %p344
    %p346 = scmp.ne.s32.totalorder %s337, %s338
    %p347 = scmp.eq.s32.totalorder %s33, 0
    %p348 = por %p346, %p347
    %p349 = scmp.ne.s32.totalorder %s337, %s338
    %p350 = scmp.eq.s32.totalorder %s34, 1
    %p351 = por %p349, %p350
    %p353 = scmp.ne.s32.totalorder %s338, %s352
    %p354 = scmp.eq.s32.totalorder %s34, 0
    %p355 = por %p353, %p354
    %s357 = sadd.s32 %s356, 1
    %p360 = scmp.eq.s32.totalorder %s28, 1
    %p361 = scmp.ne.s32.totalorder %s356, %s358
    %p362 = scmp.eq.s32.totalorder %s28, 0
    %p363 = por %p361, %p362
    %p364 = scmp.ne.s32.totalorder %s356, %s358
    %p365 = scmp.eq.s32.totalorder %s33, 1
    %p366 = por %p364, %p365
    %p367 = scmp.ne.s32.totalorder %s358, %s359
    %p368 = scmp.eq.s32.totalorder %s33, 0
    %p369 = por %p367, %p368
    %p370 = scmp.ne.s32.totalorder %s358, %s359
    %p371 = scmp.eq.s32.totalorder %s34, 1
    %p372 = por %p370, %p371
    %p374 = scmp.ne.s32.totalorder %s359, %s373
    %p375 = scmp.eq.s32.totalorder %s34, 0
    %p376 = por %p374, %p375
    %s378 = sadd.s32 %s377, 1
    %p381 = scmp.eq.s32.totalorder %s28, 1
    %p382 = scmp.ne.s32.totalorder %s377, %s379
    %p383 = scmp.eq.s32.totalorder %s28, 0
    %p384 = por %p382, %p383
    %p385 = scmp.ne.s32.totalorder %s377, %s379
    %p386 = scmp.eq.s32.totalorder %s33, 1
    %p387 = por %p385, %p386
    %p388 = scmp.ne.s32.totalorder %s379, %s380
    %p389 = scmp.eq.s32.totalorder %s33, 0
    %p390 = por %p388, %p389
    %p391 = scmp.ne.s32.totalorder %s379, %s380
    %p392 = scmp.eq.s32.totalorder %s34, 1
    %p393 = por %p391, %p392
    %p395 = scmp.ne.s32.totalorder %s380, %s394
    %p396 = scmp.eq.s32.totalorder %s34, 0
    %p397 = por %p395, %p396
    %s399 = sadd.s32 %s398, 1
    %p402 = scmp.eq.s32.totalorder %s28, 1
    %p403 = scmp.ne.s32.totalorder %s398, %s400
    %p404 = scmp.eq.s32.totalorder %s28, 0
    %p405 = por %p403, %p404
    %p406 = scmp.ne.s32.totalorder %s398, %s400
    %p407 = scmp.eq.s32.totalorder %s33, 1
    %p408 = por %p406, %p407
    %p409 = scmp.ne.s32.totalorder %s400, %s401
    %p410 = scmp.eq.s32.totalorder %s33, 0
    %p411 = por %p409, %p410
    %p412 = scmp.ne.s32.totalorder %s400, %s401
    %p413 = scmp.eq.s32.totalorder %s34, 1
    %p414 = por %p412, %p413
    %p416 = scmp.ne.s32.totalorder %s401, %s415
    %p417 = scmp.eq.s32.totalorder %s34, 0
    %p418 = por %p416, %p417
    %s420 = sadd.s32 %s419, 1
    %p423 = scmp.eq.s32.totalorder %s28, 1
    %p424 = scmp.ne.s32.totalorder %s419, %s421
    %p425 = scmp.eq.s32.totalorder %s28, 0
    %p426 = por %p424, %p425
    %p427 = scmp.ne.s32.totalorder %s419, %s421
    %p428 = scmp.eq.s32.totalorder %s33, 1
    %p429 = por %p427, %p428
    %p430 = scmp.ne.s32.totalorder %s421, %s422
    %p431 = scmp.eq.s32.totalorder %s33, 0
    %p432 = por %p430, %p431
    %p433 = scmp.ne.s32.totalorder %s421, %s422
    %p434 = scmp.eq.s32.totalorder %s34, 1
    %p435 = por %p433, %p434
    %p437 = scmp.ne.s32.totalorder %s422, %s436
    %p438 = scmp.eq.s32.totalorder %s34, 0
    %p439 = por %p437, %p438
    %s441 = sadd.s32 %s440, 1
    %p444 = scmp.eq.s32.totalorder %s28, 1
    %p445 = scmp.ne.s32.totalorder %s440, %s442
    %p446 = scmp.eq.s32.totalorder %s28, 0
    %p447 = por %p445, %p446
    %p448 = scmp.ne.s32.totalorder %s440, %s442
    %p449 = scmp.eq.s32.totalorder %s33, 1
    %p450 = por %p448, %p449
    %p451 = scmp.ne.s32.totalorder %s442, %s443
    %p452 = scmp.eq.s32.totalorder %s33, 0
    %p453 = por %p451, %p452
    %p454 = scmp.ne.s32.totalorder %s442, %s443
    %p455 = scmp.eq.s32.totalorder %s34, 1
    %p456 = por %p454, %p455
    %p458 = scmp.ne.s32.totalorder %s443, %s457
    %p459 = scmp.eq.s32.totalorder %s34, 0
    %p460 = por %p458, %p459
    %s462 = sadd.s32 %s461, 1
    %p465 = scmp.eq.s32.totalorder %s28, 1
    %p466 = scmp.ne.s32.totalorder %s461, %s463
    %p467 = scmp.eq.s32.totalorder %s28, 0
    %p468 = por %p466, %p467
    %p469 = scmp.ne.s32.totalorder %s461, %s463
    %p470 = scmp.eq.s32.totalorder %s33, 1
    %p471 = por %p469, %p470
    %p472 = scmp.ne.s32.totalorder %s463, %s464
    %p473 = scmp.eq.s32.totalorder %s33, 0
    %p474 = por %p472, %p473
    %p475 = scmp.ne.s32.totalorder %s463, %s464
    %p476 = scmp.eq.s32.totalorder %s34, 1
    %p477 = por %p475, %p476
    %p479 = scmp.ne.s32.totalorder %s464, %s478
    %p480 = scmp.eq.s32.totalorder %s34, 0
    %p481 = por %p479, %p480
    %s483 = sadd.s32 %s482, 1
    %p486 = scmp.eq.s32.totalorder %s28, 1
    %p487 = scmp.ne.s32.totalorder %s482, %s484
    %p488 = scmp.eq.s32.totalorder %s28, 0
    %p489 = por %p487, %p488
    %p490 = scmp.ne.s32.totalorder %s482, %s484
    %p491 = scmp.eq.s32.totalorder %s33, 1
    %p492 = por %p490, %p491
    %p493 = scmp.ne.s32.totalorder %s484, %s485
    %p494 = scmp.eq.s32.totalorder %s33, 0
    %p495 = por %p493, %p494
    %p496 = scmp.ne.s32.totalorder %s484, %s485
    %p497 = scmp.eq.s32.totalorder %s34, 1
    %p498 = por %p496, %p497
    %p500 = scmp.ne.s32.totalorder %s485, %s499
    %p501 = scmp.eq.s32.totalorder %s34, 0
    %p502 = por %p500, %p501
    %s503 = ssub.s32 %s28, %s35
    %p504 = scmp.eq.s32.totalorder %s503, 0
    %s506 = sadd.s32 %s505, 1
    %s507 = scalar_select %p504, %s505, %s506
    %p510 = pneg %p504
    %p511 = scmp.eq.s32.totalorder %s28, 1
    %p512 = por %p510, %p511
    %p513 = scmp.ne.s32.totalorder %s505, %s508
    %p514 = scmp.eq.s32.totalorder %s28, 0
    %p515 = por %p513, %p514
    %p516 = scmp.ne.s32.totalorder %s505, %s508
    %p517 = scmp.eq.s32.totalorder %s33, 1
    %p518 = por %p516, %p517
    %p519 = scmp.ne.s32.totalorder %s508, %s509
    %p520 = scmp.eq.s32.totalorder %s33, 0
    %p521 = por %p519, %p520
    %p522 = scmp.ne.s32.totalorder %s508, %s509
    %p523 = scmp.eq.s32.totalorder %s34, 1
    %p524 = por %p522, %p523
    %p526 = scmp.ne.s32.totalorder %s509, %s525
    %p527 = scmp.eq.s32.totalorder %s34, 0
    %p528 = por %p526, %p527
    %p529 = scmp.le.s32.totalorder 1, %s28
    %p530 = scmp.lt.s32.totalorder %s28, 3
    %p531 = pnand %p529, %p530
    %p532 = pneg %p531
    // Predicated region
    $region9: #{tcn_forward.1} parent=5 // pred_check
      _
    $region10: #{tcn_forward.1} parent=5 // pred_check_branch
      %534 = sbr.rel (%p531) target = $region12
    $region11: #{tcn_forward.1} parent=5 // pred_region
      %s535 = ssub.s32 %s28, 1
      // Predicated region
      $region13: #{tcn_forward.1} parent=11 // pred_check
        %p536 = pneg %p75
      $region14: #{tcn_forward.1} parent=11 // pred_check_branch
        %538 = sbr.rel (%p536) target = $region16
      $region15: #{tcn_forward.1} parent=11 // pred_region
        _
      $region16: #{tcn_forward.1} parent=11 // pred_fallthru
        _
      // Predicated region
      $region17: #{tcn_forward.1} parent=11 // pred_check
        %p539 = pneg %p96
      $region18: #{tcn_forward.1} parent=11 // pred_check_branch
        %541 = sbr.rel (%p539) target = $region20
      $region19: #{tcn_forward.1} parent=11 // pred_region
        _
      $region20: #{tcn_forward.1} parent=11 // pred_fallthru
        _
      // Predicated region
      $region21: #{tcn_forward.1} parent=11 // pred_check
        %p542 = pneg %p117
      $region22: #{tcn_forward.1} parent=11 // pred_check_branch
        %544 = sbr.rel (%p542) target = $region24
      $region23: #{tcn_forward.1} parent=11 // pred_region
        _
      $region24: #{tcn_forward.1} parent=11 // pred_fallthru
        _
      // Predicated region
      $region25: #{tcn_forward.1} parent=11 // pred_check
        %p545 = pneg %p138
      $region26: #{tcn_forward.1} parent=11 // pred_check_branch
        %547 = sbr.rel (%p545) target = $region28
      $region27: #{tcn_forward.1} parent=11 // pred_region
        _
      $region28: #{tcn_forward.1} parent=11 // pred_fallthru
        _
      // Predicated region
      $region29: #{tcn_forward.1} parent=11 // pred_check
        %p548 = pneg %p159
      $region30: #{tcn_forward.1} parent=11 // pred_check_branch
        %550 = sbr.rel (%p548) target = $region32
      $region31: #{tcn_forward.1} parent=11 // pred_region
        _
      $region32: #{tcn_forward.1} parent=11 // pred_fallthru
        _
      // Predicated region
      $region33: #{tcn_forward.1} parent=11 // pred_check
        %p551 = pneg %p180
      $region34: #{tcn_forward.1} parent=11 // pred_check_branch
        %553 = sbr.rel (%p551) target = $region36
      $region35: #{tcn_forward.1} parent=11 // pred_region
        _
      $region36: #{tcn_forward.1} parent=11 // pred_fallthru
        _
      // Predicated region
      $region37: #{tcn_forward.1} parent=11 // pred_check
        %p554 = pneg %p201
      $region38: #{tcn_forward.1} parent=11 // pred_check_branch
        %556 = sbr.rel (%p554) target = $region40
      $region39: #{tcn_forward.1} parent=11 // pred_region
        _
      $region40: #{tcn_forward.1} parent=11 // pred_fallthru
        _
      // Predicated region
      $region41: #{tcn_forward.1} parent=11 // pred_check
        %p557 = pneg %p222
      $region42: #{tcn_forward.1} parent=11 // pred_check_branch
        %559 = sbr.rel (%p557) target = $region44
      $region43: #{tcn_forward.1} parent=11 // pred_region
        _
      $region44: #{tcn_forward.1} parent=11 // pred_fallthru
        _
      // Predicated region
      $region45: #{tcn_forward.1} parent=11 // pred_check
        %p560 = pneg %p243
      $region46: #{tcn_forward.1} parent=11 // pred_check_branch
        %562 = sbr.rel (%p560) target = $region48
      $region47: #{tcn_forward.1} parent=11 // pred_region
        _
      $region48: #{tcn_forward.1} parent=11 // pred_fallthru
        _
      // Predicated region
      $region49: #{tcn_forward.1} parent=11 // pred_check
        %p563 = pneg %p264
      $region50: #{tcn_forward.1} parent=11 // pred_check_branch
        %565 = sbr.rel (%p563) target = $region52
      $region51: #{tcn_forward.1} parent=11 // pred_region
        _
      $region52: #{tcn_forward.1} parent=11 // pred_fallthru
        _
      // Predicated region
      $region53: #{tcn_forward.1} parent=11 // pred_check
        %p566 = pneg %p285
      $region54: #{tcn_forward.1} parent=11 // pred_check_branch
        %568 = sbr.rel (%p566) target = $region56
      $region55: #{tcn_forward.1} parent=11 // pred_region
        _
      $region56: #{tcn_forward.1} parent=11 // pred_fallthru
        _
      // Predicated region
      $region57: #{tcn_forward.1} parent=11 // pred_check
        %p569 = pneg %p306
      $region58: #{tcn_forward.1} parent=11 // pred_check_branch
        %571 = sbr.rel (%p569) target = $region60
      $region59: #{tcn_forward.1} parent=11 // pred_region
        _
      $region60: #{tcn_forward.1} parent=11 // pred_fallthru
        _
      // Predicated region
      $region61: #{tcn_forward.1} parent=11 // pred_check
        %p572 = pneg %p327
      $region62: #{tcn_forward.1} parent=11 // pred_check_branch
        %574 = sbr.rel (%p572) target = $region64
      $region63: #{tcn_forward.1} parent=11 // pred_region
        _
      $region64: #{tcn_forward.1} parent=11 // pred_fallthru
        _
      // Predicated region
      $region65: #{tcn_forward.1} parent=11 // pred_check
        %p575 = pneg %p348
      $region66: #{tcn_forward.1} parent=11 // pred_check_branch
        %577 = sbr.rel (%p575) target = $region68
      $region67: #{tcn_forward.1} parent=11 // pred_region
        _
      $region68: #{tcn_forward.1} parent=11 // pred_fallthru
        _
      // Predicated region
      $region69: #{tcn_forward.1} parent=11 // pred_check
        %p578 = pneg %p369
      $region70: #{tcn_forward.1} parent=11 // pred_check_branch
        %580 = sbr.rel (%p578) target = $region72
      $region71: #{tcn_forward.1} parent=11 // pred_region
        _
      $region72: #{tcn_forward.1} parent=11 // pred_fallthru
        _
      // Predicated region
      $region73: #{tcn_forward.1} parent=11 // pred_check
        %p581 = pneg %p390
      $region74: #{tcn_forward.1} parent=11 // pred_check_branch
        %583 = sbr.rel (%p581) target = $region76
      $region75: #{tcn_forward.1} parent=11 // pred_region
        _
      $region76: #{tcn_forward.1} parent=11 // pred_fallthru
        _
      // Predicated region
      $region77: #{tcn_forward.1} parent=11 // pred_check
        %p584 = pneg %p411
      $region78: #{tcn_forward.1} parent=11 // pred_check_branch
        %586 = sbr.rel (%p584) target = $region80
      $region79: #{tcn_forward.1} parent=11 // pred_region
        _
      $region80: #{tcn_forward.1} parent=11 // pred_fallthru
        _
      // Predicated region
      $region81: #{tcn_forward.1} parent=11 // pred_check
        %p587 = pneg %p432
      $region82: #{tcn_forward.1} parent=11 // pred_check_branch
        %589 = sbr.rel (%p587) target = $region84
      $region83: #{tcn_forward.1} parent=11 // pred_region
        _
      $region84: #{tcn_forward.1} parent=11 // pred_fallthru
        _
      // Predicated region
      $region85: #{tcn_forward.1} parent=11 // pred_check
        %p590 = pneg %p453
      $region86: #{tcn_forward.1} parent=11 // pred_check_branch
        %592 = sbr.rel (%p590) target = $region88
      $region87: #{tcn_forward.1} parent=11 // pred_region
        _
      $region88: #{tcn_forward.1} parent=11 // pred_fallthru
        _
      // Predicated region
      $region89: #{tcn_forward.1} parent=11 // pred_check
        %p593 = pneg %p474
      $region90: #{tcn_forward.1} parent=11 // pred_check_branch
        %595 = sbr.rel (%p593) target = $region92
      $region91: #{tcn_forward.1} parent=11 // pred_region
        _
      $region92: #{tcn_forward.1} parent=11 // pred_fallthru
        _
      // Predicated region
      $region93: #{tcn_forward.1} parent=11 // pred_check
        %p596 = pneg %p495
      $region94: #{tcn_forward.1} parent=11 // pred_check_branch
        %598 = sbr.rel (%p596) target = $region96
      $region95: #{tcn_forward.1} parent=11 // pred_region
        _
      $region96: #{tcn_forward.1} parent=11 // pred_fallthru
        _
    $region12: #{tcn_forward.1} parent=5 // pred_fallthru
      _
    %p599 = scmp.lt.s32.totalorder %s28, 2
    // Predicated region
    $region97: #{tcn_forward.1} parent=5 // pred_check
      %p600 = pneg %p599
    $region98: #{tcn_forward.1} parent=5 // pred_check_branch
      %602 = sbr.rel (%p600) target = $region100
    $region99: #{tcn_forward.1} parent=5 // pred_region
      // Predicated region
      $region101: #{tcn_forward.1} parent=99 // pred_check
        %p603 = pneg %p48
      $region102: #{tcn_forward.1} parent=99 // pred_check_branch
        %605 = sbr.rel (%p603) target = $region104
      $region103: #{tcn_forward.1} parent=99 // pred_region
        %p606 = scmp.lt.s32.totalorder %s28, 1
        %s607 = scalar_select %p606, %s28, 1
        %s608 = smul.addr %s607, 2
        %s609 = smul.addr %s608, 8
        %s610 = scalar_lea.vmem %s0, %s609
      $region104: #{tcn_forward.1} parent=99 // pred_fallthru
        _
    $region100: #{tcn_forward.1} parent=5 // pred_fallthru
      _
    %p611 = scmp.le.s32.totalorder 1, %s28
    %p612 = scmp.lt.s32.totalorder %s28, 3
    %p613 = pnand %p611, %p612
    %p614 = pneg %p613
    // Predicated region
    $region105: #{tcn_forward.1} parent=5 // pred_check
      _
    $region106: #{tcn_forward.1} parent=5 // pred_check_branch
      %616 = sbr.rel (%p613) target = $region108
    $region107: #{tcn_forward.1} parent=5 // pred_region
      %s617 = ssub.s32 %s28, 1
      %p618 = scmp.lt.s32.totalorder %s33, 1
      %s619 = scalar_select %p618, %s33, 1
      %s620 = smul.addr %s619, 2
      %s621 = smul.addr %s620, 8
      %s622 = scalar_lea.vmem %s0, %s621
      %p623 = pneg %p54
      %p624 = pneg %p51
      %p625 = pneg %p75
      %p626 = pneg %p72
      %p627 = pneg %p96
      %p628 = pneg %p93
      %p629 = pneg %p117
      %p630 = pneg %p114
      %p631 = pneg %p138
      %p632 = pneg %p135
      %p633 = pneg %p159
      %p634 = pneg %p156
      %p635 = pneg %p180
      %p636 = pneg %p177
      %p637 = pneg %p201
      %p638 = pneg %p198
      %p639 = pneg %p222
      %p640 = pneg %p219
      %p641 = pneg %p243
      %p642 = pneg %p240
      %p643 = pneg %p264
      %p644 = pneg %p261
      %p645 = pneg %p285
      %p646 = pneg %p282
      %p647 = pneg %p306
      %p648 = pneg %p303
      %p649 = pneg %p327
      %p650 = pneg %p324
      %p651 = pneg %p348
      %p652 = pneg %p345
      %p653 = pneg %p369
      %p654 = pneg %p366
      %p655 = pneg %p390
      %p656 = pneg %p387
      %p657 = pneg %p411
      %p658 = pneg %p408
      %p659 = pneg %p432
      %p660 = pneg %p429
      %p661 = pneg %p453
      %p662 = pneg %p450
      %p663 = pneg %p474
      %p664 = pneg %p471
      %p665 = pneg %p495
      %p666 = pneg %p492
      %p667 = pneg %p521
      %p668 = pneg %p518
      %p669 = scmp.lt.s32.totalorder %s33, 1
      %s670 = scalar_select %p669, %s33, 1
      %s671 = smul.addr %s670, 2
      %s672 = smul.addr %s671, 8
      %s673 = scalar_lea.vmem %s22, %s672
      %p674 = scmp.lt.s32.totalorder %s33, 1
      %s675 = scalar_select %p674, %s33, 1
      %s676 = smul.addr %s675, 2
      %s677 = smul.addr %s676, 8
      %s678 = scalar_lea.vmem %s0, %s677
      %p679 = scmp.lt.s32.totalorder %s33, 1
      %s680 = scalar_select %p679, %s33, 1
      %s681 = smul.addr %s680, 2
      %s682 = smul.addr %s681, 8
      %s683 = scalar_lea.vmem %s22, %s682
      %v684 = vlaneseq
      %v685 = vshrl.u32 %v684, 7
      %v686 = vadd.s32 %v685, 8
      %v687 = vld [vmem:[%s678] sm:$0xff]
      %v688 = vld [vmem:[%s678 + $0x8] sm:$0xff]
      %v689 = vld [vmem:[%s1] sm:$0xff]
      %v690 = vld [vmem:[%s1 + $0x8] sm:$0xff]
      %v693 = vcombine.high %v689, %v689
      %v694 = vcombine.high %v690, %v690
      %vm695 = vcmask 31744
      %v697 = vsel %vm695, %v687, 0
      %v700 = vsel %vm695, %v688, 0
      %vm702 = vcmask 1043456
      %v703 = vsel %vm702, %v689, 0
      %v705 = vsel %vm702, %v693, 0
      %v707 = vsel %vm702, %v690, 0
      %v709 = vsel %vm702, %v694, 0
      %711 = vmatprep.subr.mxu0 %v705
      %712 = vmatpush1.msra.mxu0 %v703
      %713 = vmatprep.subr.mxu0 0.0
      %714 = vmatpush1.msra.mxu0 0.0
      %715 = vmatprep.subr.mxu0 0.0
      %716 = vmatpush1.msra.mxu0 0.0
      %717 = vmatprep.subr.mxu0 0.0
      %718 = vmatpush1.msra.mxu0 0.0
      %719 = vmatprep.subr.mxu0 0.0
      %720 = vmatpush1.msra.mxu0 0.0
      %721 = vmatprep.subr.mxu0 0.0
      %722 = vmatpush1.msra.mxu0 0.0
      %723 = vmatprep.subr.mxu0 0.0
      %724 = vmatpush1.msra.mxu0 0.0
      %725 = vmatprep.subr.mxu0 0.0
      %726 = vmatpush1.msra.mxu0 0.0
      %727 = vmatprep.subr.mxu0 0.0
      %728 = vmatpush1.msra.mxu0 0.0
      %729 = vmatprep.subr.mxu0 0.0
      %730 = vmatpush1.msra.mxu0 0.0
      %731 = vmatprep.subr.mxu0 0.0
      %732 = vmatpush1.msra.mxu0 0.0
      %733 = vmatprep.subr.mxu0 0.0
      %734 = vmatpush1.msra.mxu0 0.0
      %735 = vmatprep.subr.mxu0 0.0
      %736 = vmatpush1.msra.mxu0 0.0
      %737 = vmatprep.subr.mxu0 0.0
      %738 = vmatpush1.msra.mxu0 0.0
      %739 = vmatprep.subr.mxu0 0.0
      %740 = vmatpush1.msra.mxu0 0.0
      %741 = vmatprep.subr.mxu0 0.0
      %742 = vmatpush1.msra.mxu0 0.0
      %743 = vmatprep.subr.mxu0 0.0
      %744 = vmatpush1.msra.mxu0 0.0
      %745 = vmatprep.subr.mxu0 0.0
      %746 = vmatpush1.msra.mxu0 0.0
      %747 = vmatprep.subr.mxu0 0.0
      %748 = vmatpush1.msra.mxu0 0.0
      %749 = vmatprep.subr.mxu0 0.0
      %750 = vmatpush1.msra.mxu0 0.0
      %751 = vmatprep.subr.mxu0 0.0
      %752 = vmatpush1.msra.mxu0 0.0
      %753 = vmatprep.subr.mxu0 0.0
      %754 = vmatpush1.msra.mxu0 0.0
      %755 = vmatprep.subr.mxu0 0.0
      %756 = vmatpush1.msra.mxu0 0.0
      %757 = vmatprep.subr.mxu0 0.0
      %758 = vmatpush1.msra.mxu0 0.0
      %759 = vmatprep.subr.mxu0 0.0
      %760 = vmatpush1.msra.mxu0 0.0
      %761 = vmatprep.subr.mxu0 0.0
      %762 = vmatpush1.msra.mxu0 0.0
      %763 = vmatprep.subr.mxu0 0.0
      %764 = vmatpush1.msra.mxu0 0.0
      %765 = vmatprep.subr.mxu0 0.0
      %766 = vmatpush1.msra.mxu0 0.0
      %767 = vmatprep.subr.mxu0 0.0
      %768 = vmatpush1.msra.mxu0 0.0
      %769 = vmatprep.subr.mxu0 0.0
      %770 = vmatpush1.msra.mxu0 0.0
      %771 = vmatprep.subr.mxu0 0.0
      %772 = vmatpush1.msra.mxu0 0.0
      %773 = vmatprep.subr.mxu0 0.0
      %774 = vmatpush1.msra.mxu0 0.0
      %775 = vmatprep.mubr.f32.mxu0 0.0
      %776 = vmatmul.mubr.f32.gmra.mrb[0].mxu0 %v697
      %v777 = vpop.f32.mrb[0].mxu0
      %v778 = vadd.f32 0.0, %v777
      %v779 = vpop.f32.mrb[0].mxu0
      %v780 = vadd.f32 0.0, %v779
      %781 = vmatprep.mubr.f32.mxu0 0.0
      %782 = vmatmul.mubr.f32.gmra.mrb[0].mxu0 %v700
      %v783 = vpop.f32.mrb[0].mxu0
      %v784 = vadd.f32 0.0, %v783
      %v785 = vpop.f32.mrb[0].mxu0
      %v786 = vadd.f32 0.0, %v785
      %787 = vdwg.mxu0
      %788 = vmatprep.subr.mxu0 %v709
      %789 = vmatpush1.msra.mxu0 %v707
      %790 = vmatprep.subr.mxu0 0.0
      %791 = vmatpush1.msra.mxu0 0.0
      %792 = vmatprep.subr.mxu0 0.0
      %793 = vmatpush1.msra.mxu0 0.0
      %794 = vmatprep.subr.mxu0 0.0
      %795 = vmatpush1.msra.mxu0 0.0
      %796 = vmatprep.subr.mxu0 0.0
      %797 = vmatpush1.msra.mxu0 0.0
      %798 = vmatprep.subr.mxu0 0.0
      %799 = vmatpush1.msra.mxu0 0.0
      %800 = vmatprep.subr.mxu0 0.0
      %801 = vmatpush1.msra.mxu0 0.0
      %802 = vmatprep.subr.mxu0 0.0
      %803 = vmatpush1.msra.mxu0 0.0
      %804 = vmatprep.subr.mxu0 0.0
      %805 = vmatpush1.msra.mxu0 0.0
      %806 = vmatprep.subr.mxu0 0.0
      %807 = vmatpush1.msra.mxu0 0.0
      %808 = vmatprep.subr.mxu0 0.0
      %809 = vmatpush1.msra.mxu0 0.0
      %810 = vmatprep.subr.mxu0 0.0
      %811 = vmatpush1.msra.mxu0 0.0
      %812 = vmatprep.subr.mxu0 0.0
      %813 = vmatpush1.msra.mxu0 0.0
      %814 = vmatprep.subr.mxu0 0.0
      %815 = vmatpush1.msra.mxu0 0.0
      %816 = vmatprep.subr.mxu0 0.0
      %817 = vmatpush1.msra.mxu0 0.0
      %818 = vmatprep.subr.mxu0 0.0
      %819 = vmatpush1.msra.mxu0 0.0
      %820 = vmatprep.subr.mxu0 0.0
      %821 = vmatpush1.msra.mxu0 0.0
      %822 = vmatprep.subr.mxu0 0.0
      %823 = vmatpush1.msra.mxu0 0.0
      %824 = vmatprep.subr.mxu0 0.0
      %825 = vmatpush1.msra.mxu0 0.0
      %826 = vmatprep.subr.mxu0 0.0
      %827 = vmatpush1.msra.mxu0 0.0
      %828 = vmatprep.subr.mxu0 0.0
      %829 = vmatpush1.msra.mxu0 0.0
      %830 = vmatprep.subr.mxu0 0.0
      %831 = vmatpush1.msra.mxu0 0.0
      %832 = vmatprep.subr.mxu0 0.0
      %833 = vmatpush1.msra.mxu0 0.0
      %834 = vmatprep.subr.mxu0 0.0
      %835 = vmatpush1.msra.mxu0 0.0
      %836 = vmatprep.subr.mxu0 0.0
      %837 = vmatpush1.msra.mxu0 0.0
      %838 = vmatprep.subr.mxu0 0.0
      %839 = vmatpush1.msra.mxu0 0.0
      %840 = vmatprep.subr.mxu0 0.0
      %841 = vmatpush1.msra.mxu0 0.0
      %842 = vmatprep.subr.mxu0 0.0
      %843 = vmatpush1.msra.mxu0 0.0
      %844 = vmatprep.subr.mxu0 0.0
      %845 = vmatpush1.msra.mxu0 0.0
      %846 = vmatprep.subr.mxu0 0.0
      %847 = vmatpush1.msra.mxu0 0.0
      %848 = vmatprep.subr.mxu0 0.0
      %849 = vmatpush1.msra.mxu0 0.0
      %850 = vmatprep.subr.mxu0 0.0
      %851 = vmatpush1.msra.mxu0 0.0
      %852 = vmatprep.mubr.f32.mxu0 0.0
      %853 = vmatmul.mubr.f32.gmra.mrb[0].mxu0 %v697
      %v854 = vpop.f32.mrb[0].mxu0
      %v855 = vadd.f32 0.0, %v854
      %v856 = vpop.f32.mrb[0].mxu0
      %v857 = vadd.f32 0.0, %v856
      %858 = vmatprep.mubr.f32.mxu0 0.0
      %859 = vmatmul.mubr.f32.gmra.mrb[0].mxu0 %v700
      %v860 = vpop.f32.mrb[0].mxu0
      %v861 = vadd.f32 0.0, %v860
      %v862 = vpop.f32.mrb[0].mxu0
      %v863 = vadd.f32 0.0, %v862
      %864 = vdwg.mxu0
      %v865 = vld [vmem:[%s2] sm:$0x1]
      %v866 = vrot.slane %v778, 6
      %v867 = vrot.slane %v784, 6
      %vm868 = vcmp.lt.s32.totalorder %v685, 2
      %v869 = vsel %vm868, %v866, %v867
      %v870 = vsel %vm868, %v867, %v866
      %vm871 = vcmp.ge.s32.totalorder %v685, 2
      %vm872 = vcmp.ge.s32.totalorder %v686, 2
      %v873 = vsel %vm871, %v870, 0.0
      %v874 = vsel %vm872, %v869, 0.0
      %v875 = vrot.slane %v780, 7
      %v876 = vrot.slane %v786, 7
      %vm877 = vcmp.lt.s32.totalorder %v685, 1
      %v878 = vsel %vm877, %v875, %v876
      %v879 = vsel %vm877, %v876, %v875
      %vm880 = vcmp.ge.s32.totalorder %v685, 1
      %vm881 = vcmp.ge.s32.totalorder %v686, 1
      %v882 = vsel %vm880, %v879, 0.0
      %v883 = vsel %vm881, %v878, 0.0
      %v884 = vadd.f32 %v873, %v882
      %v885 = vadd.f32 %v874, %v883
      %v886 = vadd.f32 %v884, %v855
      %v887 = vadd.f32 %v885, %v861
      %v889 = vlaneseq
      %v890 = vshrl.u32 %v889, 7
      %v891 = vsub.s32 0, %v890
      %v892 = vrot.slane %v865, %v891
      %v894 = vadd.f32 %v886, %v892
      %v895 = vadd.f32 %v887, %v892
      %v896 = vld [vmem:[%s9] sm:$0x1]
      %v898 = vlaneseq
      %v899 = vshrl.u32 %v898, 7
      %v900 = vsub.s32 0, %v899
      %v901 = vrot.slane %v896, %v900
      %v903 = vadd.f32 %v857, %v901
      %v904 = vadd.f32 %v863, %v901
      %v905 = vld [vmem:[%s3] sm:$0x1]
      %v906 = vld [vmem:[%s4] sm:$0x1]
      %v907 = vadd.f32 %v894, %v895
      %v908 = vrot.slane %v907, 4
      %v909 = vadd.f32 %v907, %v908
      %v910 = vrot.slane %v909, 2
      %v911 = vadd.f32 %v909, %v910
      %v912 = vrot.slane %v911, 1
      %v913 = vadd.f32 %v911, %v912
      %v914 = vmul.f32 %v894, %v894
      %v915 = vmul.f32 %v895, %v895
      %v916 = vadd.f32 %v914, %v915
      %v917 = vrot.slane %v916, 4
      %v918 = vadd.f32 %v916, %v917
      %v919 = vrot.slane %v918, 2
      %v920 = vadd.f32 %v918, %v919
      %v921 = vrot.slane %v920, 1
      %v922 = vadd.f32 %v920, %v921
      %v923 = vld [vmem:[%s20] sm:$0xff]
      %v924 = vld [vmem:[%s20 + $0x8] sm:$0xff]
      %v925 = vld [vmem:[%s20 + $0x10] sm:$0xff]
      %v926 = vld [vmem:[%s20 + $0x18] sm:$0xff]
      %v927 = vld [vmem:[%s20 + $0x20] sm:$0xff]
      %v928 = vld [vmem:[%s20 + $0x28] sm:$0xff]
      %v929 = vld [vmem:[%s20 + $0x30] sm:$0xff]
      %v930 = vld [vmem:[%s20 + $0x38] sm:$0xff]
      %v931 = vld [vmem:[%s20 + $0x40] sm:$0xff]
      %v932 = vld [vmem:[%s20 + $0x48] sm:$0xff]
      %v933 = vld [vmem:[%s20 + $0x50] sm:$0xff]
      %v934 = vld [vmem:[%s20 + $0x58] sm:$0xff]
      %v935 = vld [vmem:[%s20 + $0x60] sm:$0xff]
      %v936 = vld [vmem:[%s20 + $0x68] sm:$0xff]
      %v937 = vld [vmem:[%s20 + $0x70] sm:$0xff]
      %v938 = vld [vmem:[%s20 + $0x78] sm:$0xff]
      %v939 = vld [vmem:[%s20 + $0x80] sm:$0xff]
      %v940 = vld [vmem:[%s20 + $0x88] sm:$0xff]
      %v941 = vld [vmem:[%s20 + $0x90] sm:$0xff]
      %v942 = vld [vmem:[%s20 + $0x98] sm:$0xff]
      %v943 = vld [vmem:[%s20 + $0xa0] sm:$0xff]
      %v944 = vld [vmem:[%s20 + $0xa8] sm:$0xff]
      %v945 = vld [vmem:[%s20 + $0xb0] sm:$0xff]
      %v946 = vld [vmem:[%s20 + $0xb8] sm:$0xff]
      %v947 = vld [vmem:[%s20 + $0xc0] sm:$0xff]
      %v948 = vld [vmem:[%s20 + $0xc8] sm:$0xff]
      %v949 = vld [vmem:[%s20 + $0xd0] sm:$0xff]
      %v950 = vld [vmem:[%s20 + $0xd8] sm:$0xff]
      %v951 = vld [vmem:[%s20 + $0xe0] sm:$0xff]
      %v952 = vld [vmem:[%s20 + $0xe8] sm:$0xff]
      %v953 = vld [vmem:[%s20 + $0xf0] sm:$0xff]
      %v954 = vld [vmem:[%s20 + $0xf8] sm:$0xff]
      %v955 = vld [vmem:[%s20 + $0x100] sm:$0xff]
      %v956 = vld [vmem:[%s20 + $0x108] sm:$0xff]
      %v957 = vld [vmem:[%s20 + $0x110] sm:$0xff]
      %v958 = vld [vmem:[%s20 + $0x118] sm:$0xff]
      %v959 = vld [vmem:[%s20 + $0x120] sm:$0xff]
      %v960 = vld [vmem:[%s20 + $0x128] sm:$0xff]
      %v961 = vld [vmem:[%s20 + $0x130] sm:$0xff]
      %v962 = vld [vmem:[%s20 + $0x138] sm:$0xff]
      %v963 = vld [vmem:[%s20 + $0x140] sm:$0xff]
      %v964 = vld [vmem:[%s20 + $0x148] sm:$0xff]
      %v965 = vld [vmem:[%s20 + $0x150] sm:$0xff]
      %v966 = vld [vmem:[%s20 + $0x158] sm:$0xff]
      %v967 = vld [vmem:[%s20 + $0x160] sm:$0xff]
      %v968 = vld [vmem:[%s20 + $0x168] sm:$0xff]
      %v969 = vld [vmem:[%s20 + $0x170] sm:$0xff]
      %v970 = vld [vmem:[%s20 + $0x178] sm:$0xff]
      %v971 = vld [vmem:[%s20 + $0x180] sm:$0xff]
      %v972 = vld [vmem:[%s20 + $0x188] sm:$0xff]
      %v973 = vld [vmem:[%s20 + $0x190] sm:$0xff]
      %v974 = vld [vmem:[%s20 + $0x198] sm:$0xff]
      %v975 = vld [vmem:[%s20 + $0x1a0] sm:$0xff]
      %v976 = vld [vmem:[%s20 + $0x1a8] sm:$0xff]
      %v977 = vld [vmem:[%s20 + $0x1b0] sm:$0xff]
      %v978 = vld [vmem:[%s20 + $0x1b8] sm:$0xff]
      %v979 = vld [vmem:[%s20 + $0x1c0] sm:$0xff]
      %v980 = vld [vmem:[%s20 + $0x1c8] sm:$0xff]
      %v981 = vld [vmem:[%s20 + $0x1d0] sm:$0xff]
      %v982 = vld [vmem:[%s20 + $0x1d8] sm:$0xff]
      %v983 = vld [vmem:[%s20 + $0x1e0] sm:$0xff]
      %v984 = vld [vmem:[%s20 + $0x1e8] sm:$0xff]
      %v985 = vld [vmem:[%s20 + $0x1f0] sm:$0xff]
      %v986 = vld [vmem:[%s20 + $0x1f8] sm:$0xff]
      %987 = vmatprep.subr.mxu0 %v924
      %988 = vmatpush1.msra.mxu0 %v923
      %989 = vmatprep.subr.mxu0 %v926
      %990 = vmatpush1.msra.mxu0 %v925
      %991 = vmatprep.subr.mxu0 %v928
      %992 = vmatpush1.msra.mxu0 %v927
      %993 = vmatprep.subr.mxu0 %v930
      %994 = vmatpush1.msra.mxu0 %v929
      %995 = vmatprep.subr.mxu0 %v932
      %996 = vmatpush1.msra.mxu0 %v931
      %997 = vmatprep.subr.mxu0 %v934
      %998 = vmatpush1.msra.mxu0 %v933
      %999 = vmatprep.subr.mxu0 %v936
      %1000 = vmatpush1.msra.mxu0 %v935
      %1001 = vmatprep.subr.mxu0 %v938
      %1002 = vmatpush1.msra.mxu0 %v937
      %1003 = vmatprep.subr.mxu0 %v940
      %1004 = vmatpush1.msra.mxu0 %v939
      %1005 = vmatprep.subr.mxu0 %v942
      %1006 = vmatpush1.msra.mxu0 %v941
      %1007 = vmatprep.subr.mxu0 %v944
      %1008 = vmatpush1.msra.mxu0 %v943
      %1009 = vmatprep.subr.mxu0 %v946
      %1010 = vmatpush1.msra.mxu0 %v945
      %1011 = vmatprep.subr.mxu0 %v948
      %1012 = vmatpush1.msra.mxu0 %v947
      %1013 = vmatprep.subr.mxu0 %v950
      %1014 = vmatpush1.msra.mxu0 %v949
      %1015 = vmatprep.subr.mxu0 %v952
      %1016 = vmatpush1.msra.mxu0 %v951
      %1017 = vmatprep.subr.mxu0 %v954
      %1018 = vmatpush1.msra.mxu0 %v953
      %1019 = vmatprep.subr.mxu0 %v956
      %1020 = vmatpush1.msra.mxu0 %v955
      %1021 = vmatprep.subr.mxu0 %v958
      %1022 = vmatpush1.msra.mxu0 %v957
      %1023 = vmatprep.subr.mxu0 %v960
      %1024 = vmatpush1.msra.mxu0 %v959
      %1025 = vmatprep.subr.mxu0 %v962
      %1026 = vmatpush1.msra.mxu0 %v961
      %1027 = vmatprep.subr.mxu0 %v964
      %1028 = vmatpush1.msra.mxu0 %v963
      %1029 = vmatprep.subr.mxu0 %v966
      %1030 = vmatpush1.msra.mxu0 %v965
      %1031 = vmatprep.subr.mxu0 %v968
      %1032 = vmatpush1.msra.mxu0 %v967
      %1033 = vmatprep.subr.mxu0 %v970
      %1034 = vmatpush1.msra.mxu0 %v969
      %1035 = vmatprep.subr.mxu0 %v972
      %1036 = vmatpush1.msra.mxu0 %v971
      %1037 = vmatprep.subr.mxu0 %v974
      %1038 = vmatpush1.msra.mxu0 %v973
      %1039 = vmatprep.subr.mxu0 %v976
      %1040 = vmatpush1.msra.mxu0 %v975
      %1041 = vmatprep.subr.mxu0 %v978
      %1042 = vmatpush1.msra.mxu0 %v977
      %1043 = vmatprep.subr.mxu0 %v980
      %1044 = vmatpush1.msra.mxu0 %v979
      %1045 = vmatprep.subr.mxu0 %v982
      %1046 = vmatpush1.msra.mxu0 %v981
      %1047 = vmatprep.subr.mxu0 %v984
      %1048 = vmatpush1.msra.mxu0 %v983
      %1049 = vmatprep.subr.mxu0 %v986
      %1050 = vmatpush1.msra.mxu0 %v985
      %1051 = vmatprep.mubr.f32.mxu0 %v922
      %1052 = vmatmul.mubr.f32.gmra.mrb[0].mxu0 %v913
      %v1053 = vpop.f32.mrb[0].mxu0
      %v1054 = vadd.f32 0.0, %v1053
      %v1055 = vpop.f32.mrb[0].mxu0
      %v1056 = vadd.f32 0.0, %v1055
      %1057 = vdwg.mxu0
      %v1058 = vmul.f32 %v1054, 0.015625
      %v1059 = vmul.f32 %v1056, 0.015625
      %v1060 = vmul.f32 %v1058, %v1058
      %v1061 = vsub.f32 %v1059, %v1060
      %v1062 = vadd.f32 %v1061, 1e-05
      %v1063 = vrsqrt.pop %v1062
      %v1064 = vld [vmem:[%s21] sm:$0xff]
      %v1065 = vld [vmem:[%s21 + $0x8] sm:$0xff]
      %v1066 = vld [vmem:[%s21 + $0x10] sm:$0xff]
      %v1067 = vld [vmem:[%s21 + $0x18] sm:$0xff]
      %v1068 = vld [vmem:[%s21 + $0x20] sm:$0xff]
      %v1069 = vld [vmem:[%s21 + $0x28] sm:$0xff]
      %v1070 = vld [vmem:[%s21 + $0x30] sm:$0xff]
      %v1071 = vld [vmem:[%s21 + $0x38] sm:$0xff]
      %v1072 = vld [vmem:[%s21 + $0x40] sm:$0xff]
      %v1073 = vld [vmem:[%s21 + $0x48] sm:$0xff]
      %v1074 = vld [vmem:[%s21 + $0x50] sm:$0xff]
      %v1075 = vld [vmem:[%s21 + $0x58] sm:$0xff]
      %v1076 = vld [vmem:[%s21 + $0x60] sm:$0xff]
      %v1077 = vld [vmem:[%s21 + $0x68] sm:$0xff]
      %v1078 = vld [vmem:[%s21 + $0x70] sm:$0xff]
      %v1079 = vld [vmem:[%s21 + $0x78] sm:$0xff]
      %v1080 = vld [vmem:[%s21 + $0x80] sm:$0xff]
      %v1081 = vld [vmem:[%s21 + $0x88] sm:$0xff]
      %v1082 = vld [vmem:[%s21 + $0x90] sm:$0xff]
      %v1083 = vld [vmem:[%s21 + $0x98] sm:$0xff]
      %v1084 = vld [vmem:[%s21 + $0xa0] sm:$0xff]
      %v1085 = vld [vmem:[%s21 + $0xa8] sm:$0xff]
      %v1086 = vld [vmem:[%s21 + $0xb0] sm:$0xff]
      %v1087 = vld [vmem:[%s21 + $0xb8] sm:$0xff]
      %v1088 = vld [vmem:[%s21 + $0xc0] sm:$0xff]
      %v1089 = vld [vmem:[%s21 + $0xc8] sm:$0xff]
      %v1090 = vld [vmem:[%s21 + $0xd0] sm:$0xff]
      %v1091 = vld [vmem:[%s21 + $0xd8] sm:$0xff]
      %v1092 = vld [vmem:[%s21 + $0xe0] sm:$0xff]
      %v1093 = vld [vmem:[%s21 + $0xe8] sm:$0xff]
      %v1094 = vld [vmem:[%s21 + $0xf0] sm:$0xff]
      %v1095 = vld [vmem:[%s21 + $0xf8] sm:$0xff]
      %v1096 = vld [vmem:[%s21 + $0x100] sm:$0xff]
      %v1097 = vld [vmem:[%s21 + $0x108] sm:$0xff]
      %v1098 = vld [vmem:[%s21 + $0x110] sm:$0xff]
      %v1099 = vld [vmem:[%s21 + $0x118] sm:$0xff]
      %v1100 = vld [vmem:[%s21 + $0x120] sm:$0xff]
      %v1101 = vld [vmem:[%s21 + $0x128] sm:$0xff]
      %v1102 = vld [vmem:[%s21 + $0x130] sm:$0xff]
      %v1103 = vld [vmem:[%s21 + $0x138] sm:$0xff]
      %v1104 = vld [vmem:[%s21 + $0x140] sm:$0xff]
      %v1105 = vld [vmem:[%s21 + $0x148] sm:$0xff]
      %v1106 = vld [vmem:[%s21 + $0x150] sm:$0xff]
      %v1107 = vld [vmem:[%s21 + $0x158] sm:$0xff]
      %v1108 = vld [vmem:[%s21 + $0x160] sm:$0xff]
      %v1109 = vld [vmem:[%s21 + $0x168] sm:$0xff]
      %v1110 = vld [vmem:[%s21 + $0x170] sm:$0xff]
      %v1111 = vld [vmem:[%s21 + $0x178] sm:$0xff]
      %v1112 = vld [vmem:[%s21 + $0x180] sm:$0xff]
      %v1113 = vld [vmem:[%s21 + $0x188] sm:$0xff]
      %v1114 = vld [vmem:[%s21 + $0x190] sm:$0xff]
      %v1115 = vld [vmem:[%s21 + $0x198] sm:$0xff]
      %v1116 = vld [vmem:[%s21 + $0x1a0] sm:$0xff]
      %v1117 = vld [vmem:[%s21 + $0x1a8] sm:$0xff]
      %v1118 = vld [vmem:[%s21 + $0x1b0] sm:$0xff]
      %v1119 = vld [vmem:[%s21 + $0x1b8] sm:$0xff]
      %v1120 = vld [vmem:[%s21 + $0x1c0] sm:$0xff]
      %v1121 = vld [vmem:[%s21 + $0x1c8] sm:$0xff]
      %v1122 = vld [vmem:[%s21 + $0x1d0] sm:$0xff]
      %v1123 = vld [vmem:[%s21 + $0x1d8] sm:$0xff]
      %v1124 = vld [vmem:[%s21 + $0x1e0] sm:$0xff]
      %v1125 = vld [vmem:[%s21 + $0x1e8] sm:$0xff]
      %v1126 = vld [vmem:[%s21 + $0x1f0] sm:$0xff]
      %v1127 = vld [vmem:[%s21 + $0x1f8] sm:$0xff]
      %1128 = vmatprep.subr.mxu0 %v1065
      %1129 = vmatpush1.msra.mxu0 %v1064
      %1130 = vmatprep.subr.mxu0 %v1067
      %1131 = vmatpush1.msra.mxu0 %v1066
      %1132 = vmatprep.subr.mxu0 %v1069
      %1133 = vmatpush1.msra.mxu0 %v1068
      %1134 = vmatprep.subr.mxu0 %v1071
      %1135 = vmatpush1.msra.mxu0 %v1070
      %1136 = vmatprep.subr.mxu0 %v1073
      %1137 = vmatpush1.msra.mxu0 %v1072
      %1138 = vmatprep.subr.mxu0 %v1075
      %1139 = vmatpush1.msra.mxu0 %v1074
      %1140 = vmatprep.subr.mxu0 %v1077
      %1141 = vmatpush1.msra.mxu0 %v1076
      %1142 = vmatprep.subr.mxu0 %v1079
      %1143 = vmatpush1.msra.mxu0 %v1078
      %1144 = vmatprep.subr.mxu0 %v1081
      %1145 = vmatpush1.msra.mxu0 %v1080
      %1146 = vmatprep.subr.mxu0 %v1083
      %1147 = vmatpush1.msra.mxu0 %v1082
      %1148 = vmatprep.subr.mxu0 %v1085
      %1149 = vmatpush1.msra.mxu0 %v1084
      %1150 = vmatprep.subr.mxu0 %v1087
      %1151 = vmatpush1.msra.mxu0 %v1086
      %1152 = vmatprep.subr.mxu0 %v1089
      %1153 = vmatpush1.msra.mxu0 %v1088
      %1154 = vmatprep.subr.mxu0 %v1091
      %1155 = vmatpush1.msra.mxu0 %v1090
      %1156 = vmatprep.subr.mxu0 %v1093
      %1157 = vmatpush1.msra.mxu0 %v1092
      %1158 = vmatprep.subr.mxu0 %v1095
      %1159 = vmatpush1.msra.mxu0 %v1094
      %1160 = vmatprep.subr.mxu0 %v1097
      %1161 = vmatpush1.msra.mxu0 %v1096
      %1162 = vmatprep.subr.mxu0 %v1099
      %1163 = vmatpush1.msra.mxu0 %v1098
      %1164 = vmatprep.subr.mxu0 %v1101
      %1165 = vmatpush1.msra.mxu0 %v1100
      %1166 = vmatprep.subr.mxu0 %v1103
      %1167 = vmatpush1.msra.mxu0 %v1102
      %1168 = vmatprep.subr.mxu0 %v1105
      %1169 = vmatpush1.msra.mxu0 %v1104
      %1170 = vmatprep.subr.mxu0 %v1107
      %1171 = vmatpush1.msra.mxu0 %v1106
      %1172 = vmatprep.subr.mxu0 %v1109
      %1173 = vmatpush1.msra.mxu0 %v1108
      %1174 = vmatprep.subr.mxu0 %v1111
      %1175 = vmatpush1.msra.mxu0 %v1110
      %1176 = vmatprep.subr.mxu0 %v1113
      %1177 = vmatpush1.msra.mxu0 %v1112
      %1178 = vmatprep.subr.mxu0 %v1115
      %1179 = vmatpush1.msra.mxu0 %v1114
      %1180 = vmatprep.subr.mxu0 %v1117
      %1181 = vmatpush1.msra.mxu0 %v1116
      %1182 = vmatprep.subr.mxu0 %v1119
      %1183 = vmatpush1.msra.mxu0 %v1118
      %1184 = vmatprep.subr.mxu0 %v1121
      %1185 = vmatpush1.msra.mxu0 %v1120
      %1186 = vmatprep.subr.mxu0 %v1123
      %1187 = vmatpush1.msra.mxu0 %v1122
      %1188 = vmatprep.subr.mxu0 %v1125
      %1189 = vmatpush1.msra.mxu0 %v1124
      %1190 = vmatprep.subr.mxu0 %v1127
      %1191 = vmatpush1.msra.mxu0 %v1126
      %1192 = vmatprep.mubr.f32.mxu0 %v1063
      %1193 = vmatmul.mubr.f32.gmra.mrb[0].mxu0 %v1058
      %v1194 = vpop.f32.mrb[0].mxu0
      %v1195 = vadd.f32 0.0, %v1194
      %v1196 = vpop.f32.mrb[0].mxu0
      %v1197 = vadd.f32 0.0, %v1196
      %1198 = vdwg.mxu0
      %v1199 = vlaneseq
      %v1200 = vshrl.u32 %v1199, 7
      %v1201 = vsub.s32 0, %v1200
      %v1202 = vrot.slane %v1195, %v1201
      %v1203 = vsub.f32 %v894, %v1202
      %v1204 = vsub.f32 %v895, %v1202
      %v1205 = vlaneseq
      %v1206 = vshrl.u32 %v1205, 7
      %v1207 = vsub.s32 0, %v1206
      %v1208 = vrot.slane %v1197, %v1207
      %v1209 = vmul.f32 %v1203, %v1208
      %v1210 = vmul.f32 %v1204, %v1208
      %v1212 = vlaneseq
      %v1213 = vshrl.u32 %v1212, 7
      %v1214 = vsub.s32 0, %v1213
      %v1215 = vrot.slane %v905, %v1214
      %v1217 = vmul.f32 %v1209, %v1215
      %v1218 = vmul.f32 %v1210, %v1215
      %v1220 = vlaneseq
      %v1221 = vshrl.u32 %v1220, 7
      %v1222 = vsub.s32 0, %v1221
      %v1223 = vrot.slane %v906, %v1222
      %v1225 = vadd.f32 %v1217, %v1223
      %v1226 = vadd.f32 %v1218, %v1223
      %v1227 = vmax.f32 %v1225, 0.0
      %v1228 = vmax.f32 %v1226, 0.0
      %v1229 = vld [vmem:[%s5] sm:$0xff]
      %v1230 = vld [vmem:[%s5 + $0x8] sm:$0xff]
      %v1231 = vld [vmem:[%s5 + $0x10] sm:$0xff]
      %v1232 = vld [vmem:[%s5 + $0x18] sm:$0xff]
      %v1233 = vld [vmem:[%s5 + $0x20] sm:$0xff]
      %v1234 = vld [vmem:[%s5 + $0x28] sm:$0xff]
      %v1235 = vld [vmem:[%s5 + $0x30] sm:$0xff]
      %v1236 = vld [vmem:[%s5 + $0x38] sm:$0xff]
      %v1237 = vld [vmem:[%s5 + $0x40] sm:$0xff]
      %v1238 = vld [vmem:[%s5 + $0x48] sm:$0xff]
      %v1239 = vld [vmem:[%s5 + $0x50] sm:$0xff]
      %v1240 = vld [vmem:[%s5 + $0x58] sm:$0xff]
      %v1241 = vld [vmem:[%s5 + $0x60] sm:$0xff]
      %v1242 = vld [vmem:[%s5 + $0x68] sm:$0xff]
      %v1243 = vld [vmem:[%s5 + $0x70] sm:$0xff]
      %v1244 = vld [vmem:[%s5 + $0x78] sm:$0xff]
      %v1245 = vld [vmem:[%s5 + $0x80] sm:$0xff]
      %v1246 = vld [vmem:[%s5 + $0x88] sm:$0xff]
      %v1247 = vld [vmem:[%s5 + $0x90] sm:$0xff]
      %v1248 = vld [vmem:[%s5 + $0x98] sm:$0xff]
      %v1249 = vld [vmem:[%s5 + $0xa0] sm:$0xff]
      %v1250 = vld [vmem:[%s5 + $0xa8] sm:$0xff]
      %v1251 = vld [vmem:[%s5 + $0xb0] sm:$0xff]
      %v1252 = vld [vmem:[%s5 + $0xb8] sm:$0xff]
      %v1253 = vld [vmem:[%s5 + $0xc0] sm:$0xff]
      %v1254 = vld [vmem:[%s5 + $0xc8] sm:$0xff]
      %v1255 = vld [vmem:[%s5 + $0xd0] sm:$0xff]
      %v1256 = vld [vmem:[%s5 + $0xd8] sm:$0xff]
      %v1257 = vld [vmem:[%s5 + $0xe0] sm:$0xff]
      %v1258 = vld [vmem:[%s5 + $0xe8] sm:$0xff]
      %v1259 = vld [vmem:[%s5 + $0xf0] sm:$0xff]
      %v1260 = vld [vmem:[%s5 + $0xf8] sm:$0xff]
      %v1261 = vld [vmem:[%s5 + $0x100] sm:$0xff]
      %v1262 = vld [vmem:[%s5 + $0x108] sm:$0xff]
      %v1263 = vld [vmem:[%s5 + $0x110] sm:$0xff]
      %v1264 = vld [vmem:[%s5 + $0x118] sm:$0xff]
      %v1265 = vld [vmem:[%s5 + $0x120] sm:$0xff]
      %v1266 = vld [vmem:[%s5 + $0x128] sm:$0xff]
      %v1267 = vld [vmem:[%s5 + $0x130] sm:$0xff]
      %v1268 = vld [vmem:[%s5 + $0x138] sm:$0xff]
      %v1269 = vld [vmem:[%s5 + $0x140] sm:$0xff]
      %v1270 = vld [vmem:[%s5 + $0x148] sm:$0xff]
      %v1271 = vld [vmem:[%s5 + $0x150] sm:$0xff]
      %v1272 = vld [vmem:[%s5 + $0x158] sm:$0xff]
      %v1273 = vld [vmem:[%s5 + $0x160] sm:$0xff]
      %v1274 = vld [vmem:[%s5 + $0x168] sm:$0xff]
      %v1275 = vld [vmem:[%s5 + $0x170] sm:$0xff]
      %v1276 = vld [vmem:[%s5 + $0x178] sm:$0xff]
      %1277 = vmatprep.subr.mxu0 %v1230
      %1278 = vmatpush1.msra.mxu0 %v1229
      %1279 = vmatprep.subr.mxu0 %v1233
      %1280 = vmatpush1.msra.mxu0 %v1232
      %1281 = vmatprep.subr.mxu0 %v1236
      %1282 = vmatpush1.msra.mxu0 %v1235
      %1283 = vmatprep.subr.mxu0 %v1239
      %1284 = vmatpush1.msra.mxu0 %v1238
      %1285 = vmatprep.subr.mxu0 %v1242
      %1286 = vmatpush1.msra.mxu0 %v1241
      %1287 = vmatprep.subr.mxu0 %v1245
      %1288 = vmatpush1.msra.mxu0 %v1244
      %1289 = vmatprep.subr.mxu0 %v1248
      %1290 = vmatpush1.msra.mxu0 %v1247
      %1291 = vmatprep.subr.mxu0 %v1251
      %1292 = vmatpush1.msra.mxu0 %v1250
      %1293 = vmatprep.subr.mxu0 %v1254
      %1294 = vmatpush1.msra.mxu0 %v1253
      %1295 = vmatprep.subr.mxu0 %v1257
      %1296 = vmatpush1.msra.mxu0 %v1256
      %1297 = vmatprep.subr.mxu0 %v1260
      %1298 = vmatpush1.msra.mxu0 %v1259
      %1299 = vmatprep.subr.mxu0 %v1263
      %1300 = vmatpush1.msra.mxu0 %v1262
      %1301 = vmatprep.subr.mxu0 %v1266
      %1302 = vmatpush1.msra.mxu0 %v1265
      %1303 = vmatprep.subr.mxu0 %v1269
      %1304 = vmatpush1.msra.mxu0 %v1268
      %1305 = vmatprep.subr.mxu0 %v1272
      %1306 = vmatpush1.msra.mxu0 %v1271
      %1307 = vmatprep.subr.mxu0 %v1275
      %1308 = vmatpush1.msra.mxu0 %v1274
      %1309 = vmatprep.subr.mxu0 0.0
      %1310 = vmatpush1.msra.mxu0 0.0
      %1311 = vmatprep.subr.mxu0 0.0
      %1312 = vmatpush1.msra.mxu0 0.0
      %1313 = vmatprep.subr.mxu0 0.0
      %1314 = vmatpush1.msra.mxu0 0.0
      %1315 = vmatprep.subr.mxu0 0.0
      %1316 = vmatpush1.msra.mxu0 0.0
      %1317 = vmatprep.subr.mxu0 0.0
      %1318 = vmatpush1.msra.mxu0 0.0
      %1319 = vmatprep.subr.mxu0 0.0
      %1320 = vmatpush1.msra.mxu0 0.0
      %1321 = vmatprep.subr.mxu0 0.0
      %1322 = vmatpush1.msra.mxu0 0.0
      %1323 = vmatprep.subr.mxu0 0.0
      %1324 = vmatpush1.msra.mxu0 0.0
      %1325 = vmatprep.subr.mxu0 0.0
      %1326 = vmatpush1.msra.mxu0 0.0
      %1327 = vmatprep.subr.mxu0 0.0
      %1328 = vmatpush1.msra.mxu0 0.0
      %1329 = vmatprep.subr.mxu0 0.0
      %1330 = vmatpush1.msra.mxu0 0.0
      %1331 = vmatprep.subr.mxu0 0.0
      %1332 = vmatpush1.msra.mxu0 0.0
      %1333 = vmatprep.subr.mxu0 0.0
      %1334 = vmatpush1.msra.mxu0 0.0
      %1335 = vmatprep.subr.mxu0 0.0
      %1336 = vmatpush1.msra.mxu0 0.0
      %1337 = vmatprep.subr.mxu0 0.0
      %1338 = vmatpush1.msra.mxu0 0.0
      %1339 = vmatprep.subr.mxu0 0.0
      %1340 = vmatpush1.msra.mxu0 0.0
      %1341 = vmatprep.mubr.f32.mxu0 0.0
      %1342 = vmatmul.mubr.f32.gmra.mrb[0].mxu0 %v1227
      %v1343 = vpop.f32.mrb[0].mxu0
      %v1344 = vadd.f32 0.0, %v1343
      %v1345 = vpop.f32.mrb[0].mxu0
      %v1346 = vadd.f32 0.0, %v1345
      %1347 = vmatprep.mubr.f32.mxu0 0.0
      %1348 = vmatmul.mubr.f32.gmra.mrb[0].mxu0 %v1228
      %v1349 = vpop.f32.mrb[0].mxu0
      %v1350 = vadd.f32 0.0, %v1349
      %v1351 = vpop.f32.mrb[0].mxu0
      %v1352 = vadd.f32 0.0, %v1351
      %1353 = vdwg.mxu0
      %1354 = vmatprep.subr.mxu0 0.0
      %1355 = vmatpush1.msra.mxu0 %v1231
      %1356 = vmatprep.subr.mxu0 0.0
      %1357 = vmatpush1.msra.mxu0 %v1234
      %1358 = vmatprep.subr.mxu0 0.0
      %1359 = vmatpush1.msra.mxu0 %v1237
      %1360 = vmatprep.subr.mxu0 0.0
      %1361 = vmatpush1.msra.mxu0 %v1240
      %1362 = vmatprep.subr.mxu0 0.0
      %1363 = vmatpush1.msra.mxu0 %v1243
      %1364 = vmatprep.subr.mxu0 0.0
      %1365 = vmatpush1.msra.mxu0 %v1246
      %1366 = vmatprep.subr.mxu0 0.0
      %1367 = vmatpush1.msra.mxu0 %v1249
      %1368 = vmatprep.subr.mxu0 0.0
      %1369 = vmatpush1.msra.mxu0 %v1252
      %1370 = vmatprep.subr.mxu0 0.0
      %1371 = vmatpush1.msra.mxu0 %v1255
      %1372 = vmatprep.subr.mxu0 0.0
      %1373 = vmatpush1.msra.mxu0 %v1258
      %1374 = vmatprep.subr.mxu0 0.0
      %1375 = vmatpush1.msra.mxu0 %v1261
      %1376 = vmatprep.subr.mxu0 0.0
      %1377 = vmatpush1.msra.mxu0 %v1264
      %1378 = vmatprep.subr.mxu0 0.0
      %1379 = vmatpush1.msra.mxu0 %v1267
      %1380 = vmatprep.subr.mxu0 0.0
      %1381 = vmatpush1.msra.mxu0 %v1270
      %1382 = vmatprep.subr.mxu0 0.0
      %1383 = vmatpush1.msra.mxu0 %v1273
      %1384 = vmatprep.subr.mxu0 0.0
      %1385 = vmatpush1.msra.mxu0 %v1276
      %1386 = vmatprep.subr.mxu0 0.0
      %1387 = vmatpush1.msra.mxu0 0.0
      %1388 = vmatprep.subr.mxu0 0.0
      %1389 = vmatpush1.msra.mxu0 0.0
      %1390 = vmatprep.subr.mxu0 0.0
      %1391 = vmatpush1.msra.mxu0 0.0
      %1392 = vmatprep.subr.mxu0 0.0
      %1393 = vmatpush1.msra.mxu0 0.0
      %1394 = vmatprep.subr.mxu0 0.0
      %1395 = vmatpush1.msra.mxu0 0.0
      %1396 = vmatprep.subr.mxu0 0.0
      %1397 = vmatpush1.msra.mxu0 0.0
      %1398 = vmatprep.subr.mxu0 0.0
      %1399 = vmatpush1.msra.mxu0 0.0
      %1400 = vmatprep.subr.mxu0 0.0
      %1401 = vmatpush1.msra.mxu0 0.0
      %1402 = vmatprep.subr.mxu0 0.0
      %1403 = vmatpush1.msra.mxu0 0.0
      %1404 = vmatprep.subr.mxu0 0.0
      %1405 = vmatpush1.msra.mxu0 0.0
      %1406 = vmatprep.subr.mxu0 0.0
      %1407 = vmatpush1.msra.mxu0 0.0
      %1408 = vmatprep.subr.mxu0 0.0
      %1409 = vmatpush1.msra.mxu0 0.0
      %1410 = vmatprep.subr.mxu0 0.0
      %1411 = vmatpush1.msra.mxu0 0.0
      %1412 = vmatprep.subr.mxu0 0.0
      %1413 = vmatpush1.msra.mxu0 0.0
      %1414 = vmatprep.subr.mxu0 0.0
      %1415 = vmatpush1.msra.mxu0 0.0
      %1416 = vmatprep.subr.mxu0 0.0
      %1417 = vmatpush1.msra.mxu0 0.0
      %1418 = vmatprep.mubr.f32.mxu0 0.0
      %1419 = vmatmul.mubr.f32.gmra.mrb[0].mxu0 %v1227
      %v1420 = vpop.f32.mrb[0].mxu0
      %v1421 = vadd.f32 0.0, %v1420
      %v1422 = vpop.f32.mrb[0].mxu0
      %1423 = vmatprep.mubr.f32.mxu0 0.0
      %1424 = vmatmul.mubr.f32.gmra.mrb[0].mxu0 %v1228
      %v1425 = vpop.f32.mrb[0].mxu0
      %v1426 = vadd.f32 0.0, %v1425
      %v1427 = vpop.f32.mrb[0].mxu0
      %1428 = vdwg.mxu0
      %v1429 = vld [vmem:[%s6] sm:$0x1]
      %v1430 = vrot.slane %v1344, 6
      %v1431 = vrot.slane %v1350, 6
      %v1432 = vsel %vm868, %v1430, %v1431
      %v1433 = vsel %vm868, %v1431, %v1430
      %v1434 = vsel %vm871, %v1433, 0.0
      %v1435 = vsel %vm872, %v1432, 0.0
      %v1436 = vrot.slane %v1346, 7
      %v1437 = vrot.slane %v1352, 7
      %v1438 = vsel %vm877, %v1436, %v1437
      %v1439 = vsel %vm877, %v1437, %v1436
      %v1440 = vsel %vm880, %v1439, 0.0
      %v1441 = vsel %vm881, %v1438, 0.0
      %v1442 = vadd.f32 %v1434, %v1440
      %v1443 = vadd.f32 %v1435, %v1441
      %v1444 = vadd.f32 %v1442, %v1421
      %v1445 = vadd.f32 %v1443, %v1426
      %v1447 = vlaneseq
      %v1448 = vshrl.u32 %v1447, 7
      %v1449 = vsub.s32 0, %v1448
      %v1450 = vrot.slane %v1429, %v1449
      %v1452 = vadd.f32 %v1444, %v1450
      %v1453 = vadd.f32 %v1445, %v1450
      %v1454 = vld [vmem:[%s7] sm:$0x1]
      %v1455 = vld [vmem:[%s8] sm:$0x1]
      %v1456 = vadd.f32 %v1452, %v1453
      %v1457 = vrot.slane %v1456, 4
      %v1458 = vadd.f32 %v1456, %v1457
      %v1459 = vrot.slane %v1458, 2
      %v1460 = vadd.f32 %v1458, %v1459
      %v1461 = vrot.slane %v1460, 1
      %v1462 = vadd.f32 %v1460, %v1461
      %v1463 = vmul.f32 %v1452, %v1452
      %v1464 = vmul.f32 %v1453, %v1453
      %v1465 = vadd.f32 %v1463, %v1464
      %v1466 = vrot.slane %v1465, 4
      %v1467 = vadd.f32 %v1465, %v1466
      %v1468 = vrot.slane %v1467, 2
      %v1469 = vadd.f32 %v1467, %v1468
      %v1470 = vrot.slane %v1469, 1
      %v1471 = vadd.f32 %v1469, %v1470
      %1472 = vmatprep.subr.mxu0 %v924
      %1473 = vmatpush1.msra.mxu0 %v923
      %1474 = vmatprep.subr.mxu0 %v926
      %1475 = vmatpush1.msra.mxu0 %v925
      %1476 = vmatprep.subr.mxu0 %v928
      %1477 = vmatpush1.msra.mxu0 %v927
      %1478 = vmatprep.subr.mxu0 %v930
      %1479 = vmatpush1.msra.mxu0 %v929
      %1480 = vmatprep.subr.mxu0 %v932
      %1481 = vmatpush1.msra.mxu0 %v931
      %1482 = vmatprep.subr.mxu0 %v934
      %1483 = vmatpush1.msra.mxu0 %v933
      %1484 = vmatprep.subr.mxu0 %v936
      %1485 = vmatpush1.msra.mxu0 %v935
      %1486 = vmatprep.subr.mxu0 %v938
      %1487 = vmatpush1.msra.mxu0 %v937
      %1488 = vmatprep.subr.mxu0 %v940
      %1489 = vmatpush1.msra.mxu0 %v939
      %1490 = vmatprep.subr.mxu0 %v942
      %1491 = vmatpush1.msra.mxu0 %v941
      %1492 = vmatprep.subr.mxu0 %v944
      %1493 = vmatpush1.msra.mxu0 %v943
      %1494 = vmatprep.subr.mxu0 %v946
      %1495 = vmatpush1.msra.mxu0 %v945
      %1496 = vmatprep.subr.mxu0 %v948
      %1497 = vmatpush1.msra.mxu0 %v947
      %1498 = vmatprep.subr.mxu0 %v950
      %1499 = vmatpush1.msra.mxu0 %v949
      %1500 = vmatprep.subr.mxu0 %v952
      %1501 = vmatpush1.msra.mxu0 %v951
      %1502 = vmatprep.subr.mxu0 %v954
      %1503 = vmatpush1.msra.mxu0 %v953
      %1504 = vmatprep.subr.mxu0 %v956
      %1505 = vmatpush1.msra.mxu0 %v955
      %1506 = vmatprep.subr.mxu0 %v958
      %1507 = vmatpush1.msra.mxu0 %v957
      %1508 = vmatprep.subr.mxu0 %v960
      %1509 = vmatpush1.msra.mxu0 %v959
      %1510 = vmatprep.subr.mxu0 %v962
      %1511 = vmatpush1.msra.mxu0 %v961
      %1512 = vmatprep.subr.mxu0 %v964
      %1513 = vmatpush1.msra.mxu0 %v963
      %1514 = vmatprep.subr.mxu0 %v966
      %1515 = vmatpush1.msra.mxu0 %v965
      %1516 = vmatprep.subr.mxu0 %v968
      %1517 = vmatpush1.msra.mxu0 %v967
      %1518 = vmatprep.subr.mxu0 %v970
      %1519 = vmatpush1.msra.mxu0 %v969
      %1520 = vmatprep.subr.mxu0 %v972
      %1521 = vmatpush1.msra.mxu0 %v971
      %1522 = vmatprep.subr.mxu0 %v974
      %1523 = vmatpush1.msra.mxu0 %v973
      %1524 = vmatprep.subr.mxu0 %v976
      %1525 = vmatpush1.msra.mxu0 %v975
      %1526 = vmatprep.subr.mxu0 %v978
      %1527 = vmatpush1.msra.mxu0 %v977
      %1528 = vmatprep.subr.mxu0 %v980
      %1529 = vmatpush1.msra.mxu0 %v979
      %1530 = vmatprep.subr.mxu0 %v982
      %1531 = vmatpush1.msra.mxu0 %v981
      %1532 = vmatprep.subr.mxu0 %v984
      %1533 = vmatpush1.msra.mxu0 %v983
      %1534 = vmatprep.subr.mxu0 %v986
      %1535 = vmatpush1.msra.mxu0 %v985
      %1536 = vmatprep.mubr.f32.mxu0 %v1471
      %1537 = vmatmul.mubr.f32.gmra.mrb[0].mxu0 %v1462
      %v1538 = vpop.f32.mrb[0].mxu0
      %v1539 = vadd.f32 0.0, %v1538
      %v1540 = vpop.f32.mrb[0].mxu0
      %v1541 = vadd.f32 0.0, %v1540
      %1542 = vdwg.mxu0
      %v1543 = vmul.f32 %v1539, 0.015625
      %v1544 = vmul.f32 %v1541, 0.015625
      %v1545 = vmul.f32 %v1543, %v1543
      %v1546 = vsub.f32 %v1544, %v1545
      %v1547 = vadd.f32 %v1546, 1e-05
      %v1548 = vrsqrt.pop %v1547
      %1549 = vmatprep.subr.mxu0 %v1065
      %1550 = vmatpush1.msra.mxu0 %v1064
      %1551 = vmatprep.subr.mxu0 %v1067
      %1552 = vmatpush1.msra.mxu0 %v1066
      %1553 = vmatprep.subr.mxu0 %v1069
      %1554 = vmatpush1.msra.mxu0 %v1068
      %1555 = vmatprep.subr.mxu0 %v1071
      %1556 = vmatpush1.msra.mxu0 %v1070
      %1557 = vmatprep.subr.mxu0 %v1073
      %1558 = vmatpush1.msra.mxu0 %v1072
      %1559 = vmatprep.subr.mxu0 %v1075
      %1560 = vmatpush1.msra.mxu0 %v1074
      %1561 = vmatprep.subr.mxu0 %v1077
      %1562 = vmatpush1.msra.mxu0 %v1076
      %1563 = vmatprep.subr.mxu0 %v1079
      %1564 = vmatpush1.msra.mxu0 %v1078
      %1565 = vmatprep.subr.mxu0 %v1081
      %1566 = vmatpush1.msra.mxu0 %v1080
      %1567 = vmatprep.subr.mxu0 %v1083
      %1568 = vmatpush1.msra.mxu0 %v1082
      %1569 = vmatprep.subr.mxu0 %v1085
      %1570 = vmatpush1.msra.mxu0 %v1084
      %1571 = vmatprep.subr.mxu0 %v1087
      %1572 = vmatpush1.msra.mxu0 %v1086
      %1573 = vmatprep.subr.mxu0 %v1089
      %1574 = vmatpush1.msra.mxu0 %v1088
      %1575 = vmatprep.subr.mxu0 %v1091
      %1576 = vmatpush1.msra.mxu0 %v1090
      %1577 = vmatprep.subr.mxu0 %v1093
      %1578 = vmatpush1.msra.mxu0 %v1092
      %1579 = vmatprep.subr.mxu0 %v1095
      %1580 = vmatpush1.msra.mxu0 %v1094
      %1581 = vmatprep.subr.mxu0 %v1097
      %1582 = vmatpush1.msra.mxu0 %v1096
      %1583 = vmatprep.subr.mxu0 %v1099
      %1584 = vmatpush1.msra.mxu0 %v1098
      %1585 = vmatprep.subr.mxu0 %v1101
      %1586 = vmatpush1.msra.mxu0 %v1100
      %1587 = vmatprep.subr.mxu0 %v1103
      %1588 = vmatpush1.msra.mxu0 %v1102
      %1589 = vmatprep.subr.mxu0 %v1105
      %1590 = vmatpush1.msra.mxu0 %v1104
      %1591 = vmatprep.subr.mxu0 %v1107
      %1592 = vmatpush1.msra.mxu0 %v1106
      %1593 = vmatprep.subr.mxu0 %v1109
      %1594 = vmatpush1.msra.mxu0 %v1108
      %1595 = vmatprep.subr.mxu0 %v1111
      %1596 = vmatpush1.msra.mxu0 %v1110
      %1597 = vmatprep.subr.mxu0 %v1113
      %1598 = vmatpush1.msra.mxu0 %v1112
      %1599 = vmatprep.subr.mxu0 %v1115
      %1600 = vmatpush1.msra.mxu0 %v1114
      %1601 = vmatprep.subr.mxu0 %v1117
      %1602 = vmatpush1.msra.mxu0 %v1116
      %1603 = vmatprep.subr.mxu0 %v1119
      %1604 = vmatpush1.msra.mxu0 %v1118
      %1605 = vmatprep.subr.mxu0 %v1121
      %1606 = vmatpush1.msra.mxu0 %v1120
      %1607 = vmatprep.subr.mxu0 %v1123
      %1608 = vmatpush1.msra.mxu0 %v1122
      %1609 = vmatprep.subr.mxu0 %v1125
      %1610 = vmatpush1.msra.mxu0 %v1124
      %1611 = vmatprep.subr.mxu0 %v1127
      %1612 = vmatpush1.msra.mxu0 %v1126
      %1613 = vmatprep.mubr.f32.mxu0 %v1548
      %1614 = vmatmul.mubr.f32.gmra.mrb[0].mxu0 %v1543
      %v1615 = vpop.f32.mrb[0].mxu0
      %v1616 = vadd.f32 0.0, %v1615
      %v1617 = vpop.f32.mrb[0].mxu0
      %v1618 = vadd.f32 0.0, %v1617
      %1619 = vdwg.mxu0
      %v1620 = vlaneseq
      %v1621 = vshrl.u32 %v1620, 7
      %v1622 = vsub.s32 0, %v1621
      %v1623 = vrot.slane %v1616, %v1622
      %v1624 = vsub.f32 %v1452, %v1623
      %v1625 = vsub.f32 %v1453, %v1623
      %v1626 = vlaneseq
      %v1627 = vshrl.u32 %v1626, 7
      %v1628 = vsub.s32 0, %v1627
      %v1629 = vrot.slane %v1618, %v1628
      %v1630 = vmul.f32 %v1624, %v1629
      %v1631 = vmul.f32 %v1625, %v1629
      %v1633 = vlaneseq
      %v1634 = vshrl.u32 %v1633, 7
      %v1635 = vsub.s32 0, %v1634
      %v1636 = vrot.slane %v1454, %v1635
      %v1638 = vmul.f32 %v1630, %v1636
      %v1639 = vmul.f32 %v1631, %v1636
      %v1641 = vlaneseq
      %v1642 = vshrl.u32 %v1641, 7
      %v1643 = vsub.s32 0, %v1642
      %v1644 = vrot.slane %v1455, %v1643
      %v1646 = vadd.f32 %v1638, %v1644
      %v1647 = vadd.f32 %v1639, %v1644
      %v1648 = vmax.f32 %v1646, 0.0
      %v1649 = vmax.f32 %v1647, 0.0
      %v1650 = vadd.f32 %v1648, %v903
      %v1651 = vadd.f32 %v1649, %v904
      %v1652 = vmax.f32 %v1650, 0.0
      %v1653 = vmax.f32 %v1651, 0.0
      %v1654 = vld [vmem:[%s10] sm:$0xff]
      %v1655 = vld [vmem:[%s10 + $0x8] sm:$0xff]
      %v1656 = vld [vmem:[%s10 + $0x10] sm:$0xff]
      %v1657 = vld [vmem:[%s10 + $0x18] sm:$0xff]
      %v1658 = vld [vmem:[%s10 + $0x20] sm:$0xff]
      %v1659 = vld [vmem:[%s10 + $0x28] sm:$0xff]
      %v1660 = vld [vmem:[%s10 + $0x30] sm:$0xff]
      %v1661 = vld [vmem:[%s10 + $0x38] sm:$0xff]
      %v1662 = vld [vmem:[%s10 + $0x40] sm:$0xff]
      %v1663 = vld [vmem:[%s10 + $0x48] sm:$0xff]
      %v1664 = vld [vmem:[%s10 + $0x50] sm:$0xff]
      %v1665 = vld [vmem:[%s10 + $0x58] sm:$0xff]
      %v1666 = vld [vmem:[%s10 + $0x60] sm:$0xff]
      %v1667 = vld [vmem:[%s10 + $0x68] sm:$0xff]
      %v1668 = vld [vmem:[%s10 + $0x70] sm:$0xff]
      %v1669 = vld [vmem:[%s10 + $0x78] sm:$0xff]
      %v1670 = vld [vmem:[%s10 + $0x80] sm:$0xff]
      %v1671 = vld [vmem:[%s10 + $0x88] sm:$0xff]
      %v1672 = vld [vmem:[%s10 + $0x90] sm:$0xff]
      %v1673 = vld [vmem:[%s10 + $0x98] sm:$0xff]
      %v1674 = vld [vmem:[%s10 + $0xa0] sm:$0xff]
      %v1675 = vld [vmem:[%s10 + $0xa8] sm:$0xff]
      %v1676 = vld [vmem:[%s10 + $0xb0] sm:$0xff]
      %v1677 = vld [vmem:[%s10 + $0xb8] sm:$0xff]
      %v1678 = vld [vmem:[%s10 + $0xc0] sm:$0xff]
      %v1679 = vld [vmem:[%s10 + $0xc8] sm:$0xff]
      %v1680 = vld [vmem:[%s10 + $0xd0] sm:$0xff]
      %v1681 = vld [vmem:[%s10 + $0xd8] sm:$0xff]
      %v1682 = vld [vmem:[%s10 + $0xe0] sm:$0xff]
      %v1683 = vld [vmem:[%s10 + $0xe8] sm:$0xff]
      %v1684 = vld [vmem:[%s10 + $0xf0] sm:$0xff]
      %v1685 = vld [vmem:[%s10 + $0xf8] sm:$0xff]
      %v1686 = vld [vmem:[%s10 + $0x100] sm:$0xff]
      %v1687 = vld [vmem:[%s10 + $0x108] sm:$0xff]
      %v1688 = vld [vmem:[%s10 + $0x110] sm:$0xff]
      %v1689 = vld [vmem:[%s10 + $0x118] sm:$0xff]
      %v1690 = vld [vmem:[%s10 + $0x120] sm:$0xff]
      %v1691 = vld [vmem:[%s10 + $0x128] sm:$0xff]
      %v1692 = vld [vmem:[%s10 + $0x130] sm:$0xff]
      %v1693 = vld [vmem:[%s10 + $0x138] sm:$0xff]
      %v1694 = vld [vmem:[%s10 + $0x140] sm:$0xff]
      %v1695 = vld [vmem:[%s10 + $0x148] sm:$0xff]
      %v1696 = vld [vmem:[%s10 + $0x150] sm:$0xff]
      %v1697 = vld [vmem:[%s10 + $0x158] sm:$0xff]
      %v1698 = vld [vmem:[%s10 + $0x160] sm:$0xff]
      %v1699 = vld [vmem:[%s10 + $0x168] sm:$0xff]
      %v1700 = vld [vmem:[%s10 + $0x170] sm:$0xff]
      %v1701 = vld [vmem:[%s10 + $0x178] sm:$0xff]
      %1702 = vmatprep.subr.mxu0 %v1655
      %1703 = vmatpush1.msra.mxu0 %v1654
      %1704 = vmatprep.subr.mxu0 %v1658
      %1705 = vmatpush1.msra.mxu0 %v1657
      %1706 = vmatprep.subr.mxu0 %v1661
      %1707 = vmatpush1.msra.mxu0 %v1660
      %1708 = vmatprep.subr.mxu0 %v1664
      %1709 = vmatpush1.msra.mxu0 %v1663
      %1710 = vmatprep.subr.mxu0 %v1667
      %1711 = vmatpush1.msra.mxu0 %v1666
      %1712 = vmatprep.subr.mxu0 %v1670
      %1713 = vmatpush1.msra.mxu0 %v1669
      %1714 = vmatprep.subr.mxu0 %v1673
      %1715 = vmatpush1.msra.mxu0 %v1672
      %1716 = vmatprep.subr.mxu0 %v1676
      %1717 = vmatpush1.msra.mxu0 %v1675
      %1718 = vmatprep.subr.mxu0 %v1679
      %1719 = vmatpush1.msra.mxu0 %v1678
      %1720 = vmatprep.subr.mxu0 %v1682
      %1721 = vmatpush1.msra.mxu0 %v1681
      %1722 = vmatprep.subr.mxu0 %v1685
      %1723 = vmatpush1.msra.mxu0 %v1684
      %1724 = vmatprep.subr.mxu0 %v1688
      %1725 = vmatpush1.msra.mxu0 %v1687
      %1726 = vmatprep.subr.mxu0 %v1691
      %1727 = vmatpush1.msra.mxu0 %v1690
      %1728 = vmatprep.subr.mxu0 %v1694
      %1729 = vmatpush1.msra.mxu0 %v1693
      %1730 = vmatprep.subr.mxu0 %v1697
      %1731 = vmatpush1.msra.mxu0 %v1696
      %1732 = vmatprep.subr.mxu0 %v1700
      %1733 = vmatpush1.msra.mxu0 %v1699
      %1734 = vmatprep.subr.mxu0 0.0
      %1735 = vmatpush1.msra.mxu0 0.0
      %1736 = vmatprep.subr.mxu0 0.0
      %1737 = vmatpush1.msra.mxu0 0.0
      %1738 = vmatprep.subr.mxu0 0.0
      %1739 = vmatpush1.msra.mxu0 0.0
      %1740 = vmatprep.subr.mxu0 0.0
      %1741 = vmatpush1.msra.mxu0 0.0
      %1742 = vmatprep.subr.mxu0 0.0
      %1743 = vmatpush1.msra.mxu0 0.0
      %1744 = vmatprep.subr.mxu0 0.0
      %1745 = vmatpush1.msra.mxu0 0.0
      %1746 = vmatprep.subr.mxu0 0.0
      %1747 = vmatpush1.msra.mxu0 0.0
      %1748 = vmatprep.subr.mxu0 0.0
      %1749 = vmatpush1.msra.mxu0 0.0
      %1750 = vmatprep.subr.mxu0 0.0
      %1751 = vmatpush1.msra.mxu0 0.0
      %1752 = vmatprep.subr.mxu0 0.0
      %1753 = vmatpush1.msra.mxu0 0.0
      %1754 = vmatprep.subr.mxu0 0.0
      %1755 = vmatpush1.msra.mxu0 0.0
      %1756 = vmatprep.subr.mxu0 0.0
      %1757 = vmatpush1.msra.mxu0 0.0
      %1758 = vmatprep.subr.mxu0 0.0
      %1759 = vmatpush1.msra.mxu0 0.0
      %1760 = vmatprep.subr.mxu0 0.0
      %1761 = vmatpush1.msra.mxu0 0.0
      %1762 = vmatprep.subr.mxu0 0.0
      %1763 = vmatpush1.msra.mxu0 0.0
      %1764 = vmatprep.subr.mxu0 0.0
      %1765 = vmatpush1.msra.mxu0 0.0
      %1766 = vmatprep.mubr.f32.mxu0 0.0
      %1767 = vmatmul.mubr.f32.gmra.mrb[0].mxu0 %v1652
      %v1768 = vpop.f32.mrb[0].mxu0
      %v1769 = vadd.f32 0.0, %v1768
      %v1770 = vpop.f32.mrb[0].mxu0
      %v1771 = vadd.f32 0.0, %v1770
      %1772 = vmatprep.mubr.f32.mxu0 0.0
      %1773 = vmatmul.mubr.f32.gmra.mrb[0].mxu0 %v1653
      %v1774 = vpop.f32.mrb[0].mxu0
      %v1775 = vadd.f32 0.0, %v1774
      %v1776 = vpop.f32.mrb[0].mxu0
      %v1777 = vadd.f32 0.0, %v1776
      %1778 = vdwg.mxu0
      %1779 = vmatprep.subr.mxu0 0.0
      %1780 = vmatpush1.msra.mxu0 %v1656
      %1781 = vmatprep.subr.mxu0 0.0
      %1782 = vmatpush1.msra.mxu0 %v1659
      %1783 = vmatprep.subr.mxu0 0.0
      %1784 = vmatpush1.msra.mxu0 %v1662
      %1785 = vmatprep.subr.mxu0 0.0
      %1786 = vmatpush1.msra.mxu0 %v1665
      %1787 = vmatprep.subr.mxu0 0.0
      %1788 = vmatpush1.msra.mxu0 %v1668
      %1789 = vmatprep.subr.mxu0 0.0
      %1790 = vmatpush1.msra.mxu0 %v1671
      %1791 = vmatprep.subr.mxu0 0.0
      %1792 = vmatpush1.msra.mxu0 %v1674
      %1793 = vmatprep.subr.mxu0 0.0
      %1794 = vmatpush1.msra.mxu0 %v1677
      %1795 = vmatprep.subr.mxu0 0.0
      %1796 = vmatpush1.msra.mxu0 %v1680
      %1797 = vmatprep.subr.mxu0 0.0
      %1798 = vmatpush1.msra.mxu0 %v1683
      %1799 = vmatprep.subr.mxu0 0.0
      %1800 = vmatpush1.msra.mxu0 %v1686
      %1801 = vmatprep.subr.mxu0 0.0
      %1802 = vmatpush1.msra.mxu0 %v1689
      %1803 = vmatprep.subr.mxu0 0.0
      %1804 = vmatpush1.msra.mxu0 %v1692
      %1805 = vmatprep.subr.mxu0 0.0
      %1806 = vmatpush1.msra.mxu0 %v1695
      %1807 = vmatprep.subr.mxu0 0.0
      %1808 = vmatpush1.msra.mxu0 %v1698
      %1809 = vmatprep.subr.mxu0 0.0
      %1810 = vmatpush1.msra.mxu0 %v1701
      %1811 = vmatprep.subr.mxu0 0.0
      %1812 = vmatpush1.msra.mxu0 0.0
      %1813 = vmatprep.subr.mxu0 0.0
      %1814 = vmatpush1.msra.mxu0 0.0
      %1815 = vmatprep.subr.mxu0 0.0
      %1816 = vmatpush1.msra.mxu0 0.0
      %1817 = vmatprep.subr.mxu0 0.0
      %1818 = vmatpush1.msra.mxu0 0.0
      %1819 = vmatprep.subr.mxu0 0.0
      %1820 = vmatpush1.msra.mxu0 0.0
      %1821 = vmatprep.subr.mxu0 0.0
      %1822 = vmatpush1.msra.mxu0 0.0
      %1823 = vmatprep.subr.mxu0 0.0
      %1824 = vmatpush1.msra.mxu0 0.0
      %1825 = vmatprep.subr.mxu0 0.0
      %1826 = vmatpush1.msra.mxu0 0.0
      %1827 = vmatprep.subr.mxu0 0.0
      %1828 = vmatpush1.msra.mxu0 0.0
      %1829 = vmatprep.subr.mxu0 0.0
      %1830 = vmatpush1.msra.mxu0 0.0
      %1831 = vmatprep.subr.mxu0 0.0
      %1832 = vmatpush1.msra.mxu0 0.0
      %1833 = vmatprep.subr.mxu0 0.0
      %1834 = vmatpush1.msra.mxu0 0.0
      %1835 = vmatprep.subr.mxu0 0.0
      %1836 = vmatpush1.msra.mxu0 0.0
      %1837 = vmatprep.subr.mxu0 0.0
      %1838 = vmatpush1.msra.mxu0 0.0
      %1839 = vmatprep.subr.mxu0 0.0
      %1840 = vmatpush1.msra.mxu0 0.0
      %1841 = vmatprep.subr.mxu0 0.0
      %1842 = vmatpush1.msra.mxu0 0.0
      %1843 = vmatprep.mubr.f32.mxu0 0.0
      %1844 = vmatmul.mubr.f32.gmra.mrb[0].mxu0 %v1652
      %v1845 = vpop.f32.mrb[0].mxu0
      %v1846 = vadd.f32 0.0, %v1845
      %v1847 = vpop.f32.mrb[0].mxu0
      %1848 = vmatprep.mubr.f32.mxu0 0.0
      %1849 = vmatmul.mubr.f32.gmra.mrb[0].mxu0 %v1653
      %v1850 = vpop.f32.mrb[0].mxu0
      %v1851 = vadd.f32 0.0, %v1850
      %v1852 = vpop.f32.mrb[0].mxu0
      %1853 = vdwg.mxu0
      %v1854 = vld [vmem:[%s11] sm:$0x1]
      %v1855 = vrot.slane %v1769, 4
      %v1856 = vrot.slane %v1775, 4
      %vm1857 = vcmp.lt.s32.totalorder %v685, 4
      %v1858 = vsel %vm1857, %v1855, %v1856
      %v1859 = vsel %vm1857, %v1856, %v1855
      %vm1860 = vcmp.ge.s32.totalorder %v685, 4
      %vm1861 = vcmp.ge.s32.totalorder %v686, 4
      %v1862 = vsel %vm1860, %v1859, 0.0
      %v1863 = vsel %vm1861, %v1858, 0.0
      %v1864 = vrot.slane %v1771, 6
      %v1865 = vrot.slane %v1777, 6
      %v1866 = vsel %vm868, %v1864, %v1865
      %v1867 = vsel %vm868, %v1865, %v1864
      %v1868 = vsel %vm871, %v1867, 0.0
      %v1869 = vsel %vm872, %v1866, 0.0
      %v1870 = vadd.f32 %v1862, %v1868
      %v1871 = vadd.f32 %v1863, %v1869
      %v1872 = vadd.f32 %v1870, %v1846
      %v1873 = vadd.f32 %v1871, %v1851
      %v1875 = vlaneseq
      %v1876 = vshrl.u32 %v1875, 7
      %v1877 = vsub.s32 0, %v1876
      %v1878 = vrot.slane %v1854, %v1877
      %v1880 = vadd.f32 %v1872, %v1878
      %v1881 = vadd.f32 %v1873, %v1878
      %v1882 = vld [vmem:[%s12] sm:$0x1]
      %v1883 = vld [vmem:[%s13] sm:$0x1]
      %v1884 = vadd.f32 %v1880, %v1881
      %v1885 = vrot.slane %v1884, 4
      %v1886 = vadd.f32 %v1884, %v1885
      %v1887 = vrot.slane %v1886, 2
      %v1888 = vadd.f32 %v1886, %v1887
      %v1889 = vrot.slane %v1888, 1
      %v1890 = vadd.f32 %v1888, %v1889
      %v1891 = vmul.f32 %v1880, %v1880
      %v1892 = vmul.f32 %v1881, %v1881
      %v1893 = vadd.f32 %v1891, %v1892
      %v1894 = vrot.slane %v1893, 4
      %v1895 = vadd.f32 %v1893, %v1894
      %v1896 = vrot.slane %v1895, 2
      %v1897 = vadd.f32 %v1895, %v1896
      %v1898 = vrot.slane %v1897, 1
      %v1899 = vadd.f32 %v1897, %v1898
      %1900 = vmatprep.subr.mxu0 %v924
      %1901 = vmatpush1.msra.mxu0 %v923
      %1902 = vmatprep.subr.mxu0 %v926
      %1903 = vmatpush1.msra.mxu0 %v925
      %1904 = vmatprep.subr.mxu0 %v928
      %1905 = vmatpush1.msra.mxu0 %v927
      %1906 = vmatprep.subr.mxu0 %v930
      %1907 = vmatpush1.msra.mxu0 %v929
      %1908 = vmatprep.subr.mxu0 %v932
      %1909 = vmatpush1.msra.mxu0 %v931
      %1910 = vmatprep.subr.mxu0 %v934
      %1911 = vmatpush1.msra.mxu0 %v933
      %1912 = vmatprep.subr.mxu0 %v936
      %1913 = vmatpush1.msra.mxu0 %v935
      %1914 = vmatprep.subr.mxu0 %v938
      %1915 = vmatpush1.msra.mxu0 %v937
      %1916 = vmatprep.subr.mxu0 %v940
      %1917 = vmatpush1.msra.mxu0 %v939
      %1918 = vmatprep.subr.mxu0 %v942
      %1919 = vmatpush1.msra.mxu0 %v941
      %1920 = vmatprep.subr.mxu0 %v944
      %1921 = vmatpush1.msra.mxu0 %v943
      %1922 = vmatprep.subr.mxu0 %v946
      %1923 = vmatpush1.msra.mxu0 %v945
      %1924 = vmatprep.subr.mxu0 %v948
      %1925 = vmatpush1.msra.mxu0 %v947
      %1926 = vmatprep.subr.mxu0 %v950
      %1927 = vmatpush1.msra.mxu0 %v949
      %1928 = vmatprep.subr.mxu0 %v952
      %1929 = vmatpush1.msra.mxu0 %v951
      %1930 = vmatprep.subr.mxu0 %v954
      %1931 = vmatpush1.msra.mxu0 %v953
      %1932 = vmatprep.subr.mxu0 %v956
      %1933 = vmatpush1.msra.mxu0 %v955
      %1934 = vmatprep.subr.mxu0 %v958
      %1935 = vmatpush1.msra.mxu0 %v957
      %1936 = vmatprep.subr.mxu0 %v960
      %1937 = vmatpush1.msra.mxu0 %v959
      %1938 = vmatprep.subr.mxu0 %v962
      %1939 = vmatpush1.msra.mxu0 %v961
      %1940 = vmatprep.subr.mxu0 %v964
      %1941 = vmatpush1.msra.mxu0 %v963
      %1942 = vmatprep.subr.mxu0 %v966
      %1943 = vmatpush1.msra.mxu0 %v965
      %1944 = vmatprep.subr.mxu0 %v968
      %1945 = vmatpush1.msra.mxu0 %v967
      %1946 = vmatprep.subr.mxu0 %v970
      %1947 = vmatpush1.msra.mxu0 %v969
      %1948 = vmatprep.subr.mxu0 %v972
      %1949 = vmatpush1.msra.mxu0 %v971
      %1950 = vmatprep.subr.mxu0 %v974
      %1951 = vmatpush1.msra.mxu0 %v973
      %1952 = vmatprep.subr.mxu0 %v976
      %1953 = vmatpush1.msra.mxu0 %v975
      %1954 = vmatprep.subr.mxu0 %v978
      %1955 = vmatpush1.msra.mxu0 %v977
      %1956 = vmatprep.subr.mxu0 %v980
      %1957 = vmatpush1.msra.mxu0 %v979
      %1958 = vmatprep.subr.mxu0 %v982
      %1959 = vmatpush1.msra.mxu0 %v981
      %1960 = vmatprep.subr.mxu0 %v984
      %1961 = vmatpush1.msra.mxu0 %v983
      %1962 = vmatprep.subr.mxu0 %v986
      %1963 = vmatpush1.msra.mxu0 %v985
      %1964 = vmatprep.mubr.f32.mxu0 %v1899
      %1965 = vmatmul.mubr.f32.gmra.mrb[0].mxu0 %v1890
      %v1966 = vpop.f32.mrb[0].mxu0
      %v1967 = vadd.f32 0.0, %v1966
      %v1968 = vpop.f32.mrb[0].mxu0
      %v1969 = vadd.f32 0.0, %v1968
      %1970 = vdwg.mxu0
      %v1971 = vmul.f32 %v1967, 0.015625
      %v1972 = vmul.f32 %v1969, 0.015625
      %v1973 = vmul.f32 %v1971, %v1971
      %v1974 = vsub.f32 %v1972, %v1973
      %v1975 = vadd.f32 %v1974, 1e-05
      %v1976 = vrsqrt.pop %v1975
      %1977 = vmatprep.subr.mxu0 %v1065
      %1978 = vmatpush1.msra.mxu0 %v1064
      %1979 = vmatprep.subr.mxu0 %v1067
      %1980 = vmatpush1.msra.mxu0 %v1066
      %1981 = vmatprep.subr.mxu0 %v1069
      %1982 = vmatpush1.msra.mxu0 %v1068
      %1983 = vmatprep.subr.mxu0 %v1071
      %1984 = vmatpush1.msra.mxu0 %v1070
      %1985 = vmatprep.subr.mxu0 %v1073
      %1986 = vmatpush1.msra.mxu0 %v1072
      %1987 = vmatprep.subr.mxu0 %v1075
      %1988 = vmatpush1.msra.mxu0 %v1074
      %1989 = vmatprep.subr.mxu0 %v1077
      %1990 = vmatpush1.msra.mxu0 %v1076
      %1991 = vmatprep.subr.mxu0 %v1079
      %1992 = vmatpush1.msra.mxu0 %v1078
      %1993 = vmatprep.subr.mxu0 %v1081
      %1994 = vmatpush1.msra.mxu0 %v1080
      %1995 = vmatprep.subr.mxu0 %v1083
      %1996 = vmatpush1.msra.mxu0 %v1082
      %1997 = vmatprep.subr.mxu0 %v1085
      %1998 = vmatpush1.msra.mxu0 %v1084
      %1999 = vmatprep.subr.mxu0 %v1087
      %2000 = vmatpush1.msra.mxu0 %v1086
      %2001 = vmatprep.subr.mxu0 %v1089
      %2002 = vmatpush1.msra.mxu0 %v1088
      %2003 = vmatprep.subr.mxu0 %v1091
      %2004 = vmatpush1.msra.mxu0 %v1090
      %2005 = vmatprep.subr.mxu0 %v1093
      %2006 = vmatpush1.msra.mxu0 %v1092
      %2007 = vmatprep.subr.mxu0 %v1095
      %2008 = vmatpush1.msra.mxu0 %v1094
      %2009 = vmatprep.subr.mxu0 %v1097
      %2010 = vmatpush1.msra.mxu0 %v1096
      %2011 = vmatprep.subr.mxu0 %v1099
      %2012 = vmatpush1.msra.mxu0 %v1098
      %2013 = vmatprep.subr.mxu0 %v1101
      %2014 = vmatpush1.msra.mxu0 %v1100
      %2015 = vmatprep.subr.mxu0 %v1103
      %2016 = vmatpush1.msra.mxu0 %v1102
      %2017 = vmatprep.subr.mxu0 %v1105
      %2018 = vmatpush1.msra.mxu0 %v1104
      %2019 = vmatprep.subr.mxu0 %v1107
      %2020 = vmatpush1.msra.mxu0 %v1106
      %2021 = vmatprep.subr.mxu0 %v1109
      %2022 = vmatpush1.msra.mxu0 %v1108
      %2023 = vmatprep.subr.mxu0 %v1111
      %2024 = vmatpush1.msra.mxu0 %v1110
      %2025 = vmatprep.subr.mxu0 %v1113
      %2026 = vmatpush1.msra.mxu0 %v1112
      %2027 = vmatprep.subr.mxu0 %v1115
      %2028 = vmatpush1.msra.mxu0 %v1114
      %2029 = vmatprep.subr.mxu0 %v1117
      %2030 = vmatpush1.msra.mxu0 %v1116
      %2031 = vmatprep.subr.mxu0 %v1119
      %2032 = vmatpush1.msra.mxu0 %v1118
      %2033 = vmatprep.subr.mxu0 %v1121
      %2034 = vmatpush1.msra.mxu0 %v1120
      %2035 = vmatprep.subr.mxu0 %v1123
      %2036 = vmatpush1.msra.mxu0 %v1122
      %2037 = vmatprep.subr.mxu0 %v1125
      %2038 = vmatpush1.msra.mxu0 %v1124
      %2039 = vmatprep.subr.mxu0 %v1127
      %2040 = vmatpush1.msra.mxu0 %v1126
      %2041 = vmatprep.mubr.f32.mxu0 %v1976
      %2042 = vmatmul.mubr.f32.gmra.mrb[0].mxu0 %v1971
      %v2043 = vpop.f32.mrb[0].mxu0
      %v2044 = vadd.f32 0.0, %v2043
      %v2045 = vpop.f32.mrb[0].mxu0
      %v2046 = vadd.f32 0.0, %v2045
      %2047 = vdwg.mxu0
      %v2048 = vlaneseq
      %v2049 = vshrl.u32 %v2048, 7
      %v2050 = vsub.s32 0, %v2049
      %v2051 = vrot.slane %v2044, %v2050
      %v2052 = vsub.f32 %v1880, %v2051
      %v2053 = vsub.f32 %v1881, %v2051
      %v2054 = vlaneseq
      %v2055 = vshrl.u32 %v2054, 7
      %v2056 = vsub.s32 0, %v2055
      %v2057 = vrot.slane %v2046, %v2056
      %v2058 = vmul.f32 %v2052, %v2057
      %v2059 = vmul.f32 %v2053, %v2057
      %v2061 = vlaneseq
      %v2062 = vshrl.u32 %v2061, 7
      %v2063 = vsub.s32 0, %v2062
      %v2064 = vrot.slane %v1882, %v2063
      %v2066 = vmul.f32 %v2058, %v2064
      %v2067 = vmul.f32 %v2059, %v2064
      %v2069 = vlaneseq
      %v2070 = vshrl.u32 %v2069, 7
      %v2071 = vsub.s32 0, %v2070
      %v2072 = vrot.slane %v1883, %v2071
      %v2074 = vadd.f32 %v2066, %v2072
      %v2075 = vadd.f32 %v2067, %v2072
      %v2076 = vmax.f32 %v2074, 0.0
      %v2077 = vmax.f32 %v2075, 0.0
      %v2078 = vld [vmem:[%s14] sm:$0xff]
      %v2079 = vld [vmem:[%s14 + $0x8] sm:$0xff]
      %v2080 = vld [vmem:[%s14 + $0x10] sm:$0xff]
      %v2081 = vld [vmem:[%s14 + $0x18] sm:$0xff]
      %v2082 = vld [vmem:[%s14 + $0x20] sm:$0xff]
      %v2083 = vld [vmem:[%s14 + $0x28] sm:$0xff]
      %v2084 = vld [vmem:[%s14 + $0x30] sm:$0xff]
      %v2085 = vld [vmem:[%s14 + $0x38] sm:$0xff]
      %v2086 = vld [vmem:[%s14 + $0x40] sm:$0xff]
      %v2087 = vld [vmem:[%s14 + $0x48] sm:$0xff]
      %v2088 = vld [vmem:[%s14 + $0x50] sm:$0xff]
      %v2089 = vld [vmem:[%s14 + $0x58] sm:$0xff]
      %v2090 = vld [vmem:[%s14 + $0x60] sm:$0xff]
      %v2091 = vld [vmem:[%s14 + $0x68] sm:$0xff]
      %v2092 = vld [vmem:[%s14 + $0x70] sm:$0xff]
      %v2093 = vld [vmem:[%s14 + $0x78] sm:$0xff]
      %v2094 = vld [vmem:[%s14 + $0x80] sm:$0xff]
      %v2095 = vld [vmem:[%s14 + $0x88] sm:$0xff]
      %v2096 = vld [vmem:[%s14 + $0x90] sm:$0xff]
      %v2097 = vld [vmem:[%s14 + $0x98] sm:$0xff]
      %v2098 = vld [vmem:[%s14 + $0xa0] sm:$0xff]
      %v2099 = vld [vmem:[%s14 + $0xa8] sm:$0xff]
      %v2100 = vld [vmem:[%s14 + $0xb0] sm:$0xff]
      %v2101 = vld [vmem:[%s14 + $0xb8] sm:$0xff]
      %v2102 = vld [vmem:[%s14 + $0xc0] sm:$0xff]
      %v2103 = vld [vmem:[%s14 + $0xc8] sm:$0xff]
      %v2104 = vld [vmem:[%s14 + $0xd0] sm:$0xff]
      %v2105 = vld [vmem:[%s14 + $0xd8] sm:$0xff]
      %v2106 = vld [vmem:[%s14 + $0xe0] sm:$0xff]
      %v2107 = vld [vmem:[%s14 + $0xe8] sm:$0xff]
      %v2108 = vld [vmem:[%s14 + $0xf0] sm:$0xff]
      %v2109 = vld [vmem:[%s14 + $0xf8] sm:$0xff]
      %v2110 = vld [vmem:[%s14 + $0x100] sm:$0xff]
      %v2111 = vld [vmem:[%s14 + $0x108] sm:$0xff]
      %v2112 = vld [vmem:[%s14 + $0x110] sm:$0xff]
      %v2113 = vld [vmem:[%s14 + $0x118] sm:$0xff]
      %v2114 = vld [vmem:[%s14 + $0x120] sm:$0xff]
      %v2115 = vld [vmem:[%s14 + $0x128] sm:$0xff]
      %v2116 = vld [vmem:[%s14 + $0x130] sm:$0xff]
      %v2117 = vld [vmem:[%s14 + $0x138] sm:$0xff]
      %v2118 = vld [vmem:[%s14 + $0x140] sm:$0xff]
      %v2119 = vld [vmem:[%s14 + $0x148] sm:$0xff]
      %v2120 = vld [vmem:[%s14 + $0x150] sm:$0xff]
      %v2121 = vld [vmem:[%s14 + $0x158] sm:$0xff]
      %v2122 = vld [vmem:[%s14 + $0x160] sm:$0xff]
      %v2123 = vld [vmem:[%s14 + $0x168] sm:$0xff]
      %v2124 = vld [vmem:[%s14 + $0x170] sm:$0xff]
      %v2125 = vld [vmem:[%s14 + $0x178] sm:$0xff]
      %2126 = vmatprep.subr.mxu0 %v2079
      %2127 = vmatpush1.msra.mxu0 %v2078
      %2128 = vmatprep.subr.mxu0 %v2082
      %2129 = vmatpush1.msra.mxu0 %v2081
      %2130 = vmatprep.subr.mxu0 %v2085
      %2131 = vmatpush1.msra.mxu0 %v2084
      %2132 = vmatprep.subr.mxu0 %v2088
      %2133 = vmatpush1.msra.mxu0 %v2087
      %2134 = vmatprep.subr.mxu0 %v2091
      %2135 = vmatpush1.msra.mxu0 %v2090
      %2136 = vmatprep.subr.mxu0 %v2094
      %2137 = vmatpush1.msra.mxu0 %v2093
      %2138 = vmatprep.subr.mxu0 %v2097
      %2139 = vmatpush1.msra.mxu0 %v2096
      %2140 = vmatprep.subr.mxu0 %v2100
      %2141 = vmatpush1.msra.mxu0 %v2099
      %2142 = vmatprep.subr.mxu0 %v2103
      %2143 = vmatpush1.msra.mxu0 %v2102
      %2144 = vmatprep.subr.mxu0 %v2106
      %2145 = vmatpush1.msra.mxu0 %v2105
      %2146 = vmatprep.subr.mxu0 %v2109
      %2147 = vmatpush1.msra.mxu0 %v2108
      %2148 = vmatprep.subr.mxu0 %v2112
      %2149 = vmatpush1.msra.mxu0 %v2111
      %2150 = vmatprep.subr.mxu0 %v2115
      %2151 = vmatpush1.msra.mxu0 %v2114
      %2152 = vmatprep.subr.mxu0 %v2118
      %2153 = vmatpush1.msra.mxu0 %v2117
      %2154 = vmatprep.subr.mxu0 %v2121
      %2155 = vmatpush1.msra.mxu0 %v2120
      %2156 = vmatprep.subr.mxu0 %v2124
      %2157 = vmatpush1.msra.mxu0 %v2123
      %2158 = vmatprep.subr.mxu0 0.0
      %2159 = vmatpush1.msra.mxu0 0.0
      %2160 = vmatprep.subr.mxu0 0.0
      %2161 = vmatpush1.msra.mxu0 0.0
      %2162 = vmatprep.subr.mxu0 0.0
      %2163 = vmatpush1.msra.mxu0 0.0
      %2164 = vmatprep.subr.mxu0 0.0
      %2165 = vmatpush1.msra.mxu0 0.0
      %2166 = vmatprep.subr.mxu0 0.0
      %2167 = vmatpush1.msra.mxu0 0.0
      %2168 = vmatprep.subr.mxu0 0.0
      %2169 = vmatpush1.msra.mxu0 0.0
      %2170 = vmatprep.subr.mxu0 0.0
      %2171 = vmatpush1.msra.mxu0 0.0
      %2172 = vmatprep.subr.mxu0 0.0
      %2173 = vmatpush1.msra.mxu0 0.0
      %2174 = vmatprep.subr.mxu0 0.0
      %2175 = vmatpush1.msra.mxu0 0.0
      %2176 = vmatprep.subr.mxu0 0.0
      %2177 = vmatpush1.msra.mxu0 0.0
      %2178 = vmatprep.subr.mxu0 0.0
      %2179 = vmatpush1.msra.mxu0 0.0
      %2180 = vmatprep.subr.mxu0 0.0
      %2181 = vmatpush1.msra.mxu0 0.0
      %2182 = vmatprep.subr.mxu0 0.0
      %2183 = vmatpush1.msra.mxu0 0.0
      %2184 = vmatprep.subr.mxu0 0.0
      %2185 = vmatpush1.msra.mxu0 0.0
      %2186 = vmatprep.subr.mxu0 0.0
      %2187 = vmatpush1.msra.mxu0 0.0
      %2188 = vmatprep.subr.mxu0 0.0
      %2189 = vmatpush1.msra.mxu0 0.0
      %2190 = vmatprep.mubr.f32.mxu0 0.0
      %2191 = vmatmul.mubr.f32.gmra.mrb[0].mxu0 %v2076
      %v2192 = vpop.f32.mrb[0].mxu0
      %v2193 = vadd.f32 0.0, %v2192
      %v2194 = vpop.f32.mrb[0].mxu0
      %v2195 = vadd.f32 0.0, %v2194
      %2196 = vmatprep.mubr.f32.mxu0 0.0
      %2197 = vmatmul.mubr.f32.gmra.mrb[0].mxu0 %v2077
      %v2198 = vpop.f32.mrb[0].mxu0
      %v2199 = vadd.f32 0.0, %v2198
      %v2200 = vpop.f32.mrb[0].mxu0
      %v2201 = vadd.f32 0.0, %v2200
      %2202 = vdwg.mxu0
      %2203 = vmatprep.subr.mxu0 0.0
      %2204 = vmatpush1.msra.mxu0 %v2080
      %2205 = vmatprep.subr.mxu0 0.0
      %2206 = vmatpush1.msra.mxu0 %v2083
      %2207 = vmatprep.subr.mxu0 0.0
      %2208 = vmatpush1.msra.mxu0 %v2086
      %2209 = vmatprep.subr.mxu0 0.0
      %2210 = vmatpush1.msra.mxu0 %v2089
      %2211 = vmatprep.subr.mxu0 0.0
      %2212 = vmatpush1.msra.mxu0 %v2092
      %2213 = vmatprep.subr.mxu0 0.0
      %2214 = vmatpush1.msra.mxu0 %v2095
      %2215 = vmatprep.subr.mxu0 0.0
      %2216 = vmatpush1.msra.mxu0 %v2098
      %2217 = vmatprep.subr.mxu0 0.0
      %2218 = vmatpush1.msra.mxu0 %v2101
      %2219 = vmatprep.subr.mxu0 0.0
      %2220 = vmatpush1.msra.mxu0 %v2104
      %2221 = vmatprep.subr.mxu0 0.0
      %2222 = vmatpush1.msra.mxu0 %v2107
      %2223 = vmatprep.subr.mxu0 0.0
      %2224 = vmatpush1.msra.mxu0 %v2110
      %2225 = vmatprep.subr.mxu0 0.0
      %2226 = vmatpush1.msra.mxu0 %v2113
      %2227 = vmatprep.subr.mxu0 0.0
      %2228 = vmatpush1.msra.mxu0 %v2116
      %2229 = vmatprep.subr.mxu0 0.0
      %2230 = vmatpush1.msra.mxu0 %v2119
      %2231 = vmatprep.subr.mxu0 0.0
      %2232 = vmatpush1.msra.mxu0 %v2122
      %2233 = vmatprep.subr.mxu0 0.0
      %2234 = vmatpush1.msra.mxu0 %v2125
      %2235 = vmatprep.subr.mxu0 0.0
      %2236 = vmatpush1.msra.mxu0 0.0
      %2237 = vmatprep.subr.mxu0 0.0
      %2238 = vmatpush1.msra.mxu0 0.0
      %2239 = vmatprep.subr.mxu0 0.0
      %2240 = vmatpush1.msra.mxu0 0.0
      %2241 = vmatprep.subr.mxu0 0.0
      %2242 = vmatpush1.msra.mxu0 0.0
      %2243 = vmatprep.subr.mxu0 0.0
      %2244 = vmatpush1.msra.mxu0 0.0
      %2245 = vmatprep.subr.mxu0 0.0
      %2246 = vmatpush1.msra.mxu0 0.0
      %2247 = vmatprep.subr.mxu0 0.0
      %2248 = vmatpush1.msra.mxu0 0.0
      %2249 = vmatprep.subr.mxu0 0.0
      %2250 = vmatpush1.msra.mxu0 0.0
      %2251 = vmatprep.subr.mxu0 0.0
      %2252 = vmatpush1.msra.mxu0 0.0
      %2253 = vmatprep.subr.mxu0 0.0
      %2254 = vmatpush1.msra.mxu0 0.0
      %2255 = vmatprep.subr.mxu0 0.0
      %2256 = vmatpush1.msra.mxu0 0.0
      %2257 = vmatprep.subr.mxu0 0.0
      %2258 = vmatpush1.msra.mxu0 0.0
      %2259 = vmatprep.subr.mxu0 0.0
      %2260 = vmatpush1.msra.mxu0 0.0
      %2261 = vmatprep.subr.mxu0 0.0
      %2262 = vmatpush1.msra.mxu0 0.0
      %2263 = vmatprep.subr.mxu0 0.0
      %2264 = vmatpush1.msra.mxu0 0.0
      %2265 = vmatprep.subr.mxu0 0.0
      %2266 = vmatpush1.msra.mxu0 0.0
      %2267 = vmatprep.mubr.f32.mxu0 0.0
      %2268 = vmatmul.mubr.f32.gmra.mrb[0].mxu0 %v2076
      %v2269 = vpop.f32.mrb[0].mxu0
      %v2270 = vadd.f32 0.0, %v2269
      %v2271 = vpop.f32.mrb[0].mxu0
      %2272 = vmatprep.mubr.f32.mxu0 0.0
      %2273 = vmatmul.mubr.f32.gmra.mrb[0].mxu0 %v2077
      %v2274 = vpop.f32.mrb[0].mxu0
      %v2275 = vadd.f32 0.0, %v2274
      %v2276 = vpop.f32.mrb[0].mxu0
      %2277 = vdwg.mxu0
      %v2278 = vld [vmem:[%s15] sm:$0x1]
      %v2279 = vrot.slane %v2193, 4
      %v2280 = vrot.slane %v2199, 4
      %v2281 = vsel %vm1857, %v2279, %v2280
      %v2282 = vsel %vm1857, %v2280, %v2279
      %v2283 = vsel %vm1860, %v2282, 0.0
      %v2284 = vsel %vm1861, %v2281, 0.0
      %v2285 = vrot.slane %v2195, 6
      %v2286 = vrot.slane %v2201, 6
      %v2287 = vsel %vm868, %v2285, %v2286
      %v2288 = vsel %vm868, %v2286, %v2285
      %v2289 = vsel %vm871, %v2288, 0.0
      %v2290 = vsel %vm872, %v2287, 0.0
      %v2291 = vadd.f32 %v2283, %v2289
      %v2292 = vadd.f32 %v2284, %v2290
      %v2293 = vadd.f32 %v2291, %v2270
      %v2294 = vadd.f32 %v2292, %v2275
      %v2296 = vlaneseq
      %v2297 = vshrl.u32 %v2296, 7
      %v2298 = vsub.s32 0, %v2297
      %v2299 = vrot.slane %v2278, %v2298
      %v2301 = vadd.f32 %v2293, %v2299
      %v2302 = vadd.f32 %v2294, %v2299
      %v2303 = vld [vmem:[%s16] sm:$0x1]
      %v2304 = vld [vmem:[%s17] sm:$0x1]
      %v2305 = vadd.f32 %v2301, %v2302
      %v2306 = vrot.slane %v2305, 4
      %v2307 = vadd.f32 %v2305, %v2306
      %v2308 = vrot.slane %v2307, 2
      %v2309 = vadd.f32 %v2307, %v2308
      %v2310 = vrot.slane %v2309, 1
      %v2311 = vadd.f32 %v2309, %v2310
      %v2312 = vmul.f32 %v2301, %v2301
      %v2313 = vmul.f32 %v2302, %v2302
      %v2314 = vadd.f32 %v2312, %v2313
      %v2315 = vrot.slane %v2314, 4
      %v2316 = vadd.f32 %v2314, %v2315
      %v2317 = vrot.slane %v2316, 2
      %v2318 = vadd.f32 %v2316, %v2317
      %v2319 = vrot.slane %v2318, 1
      %v2320 = vadd.f32 %v2318, %v2319
      %2321 = vmatprep.subr.mxu0 %v924
      %2322 = vmatpush1.msra.mxu0 %v923
      %2323 = vmatprep.subr.mxu0 %v926
      %2324 = vmatpush1.msra.mxu0 %v925
      %2325 = vmatprep.subr.mxu0 %v928
      %2326 = vmatpush1.msra.mxu0 %v927
      %2327 = vmatprep.subr.mxu0 %v930
      %2328 = vmatpush1.msra.mxu0 %v929
      %2329 = vmatprep.subr.mxu0 %v932
      %2330 = vmatpush1.msra.mxu0 %v931
      %2331 = vmatprep.subr.mxu0 %v934
      %2332 = vmatpush1.msra.mxu0 %v933
      %2333 = vmatprep.subr.mxu0 %v936
      %2334 = vmatpush1.msra.mxu0 %v935
      %2335 = vmatprep.subr.mxu0 %v938
      %2336 = vmatpush1.msra.mxu0 %v937
      %2337 = vmatprep.subr.mxu0 %v940
      %2338 = vmatpush1.msra.mxu0 %v939
      %2339 = vmatprep.subr.mxu0 %v942
      %2340 = vmatpush1.msra.mxu0 %v941
      %2341 = vmatprep.subr.mxu0 %v944
      %2342 = vmatpush1.msra.mxu0 %v943
      %2343 = vmatprep.subr.mxu0 %v946
      %2344 = vmatpush1.msra.mxu0 %v945
      %2345 = vmatprep.subr.mxu0 %v948
      %2346 = vmatpush1.msra.mxu0 %v947
      %2347 = vmatprep.subr.mxu0 %v950
      %2348 = vmatpush1.msra.mxu0 %v949
      %2349 = vmatprep.subr.mxu0 %v952
      %2350 = vmatpush1.msra.mxu0 %v951
      %2351 = vmatprep.subr.mxu0 %v954
      %2352 = vmatpush1.msra.mxu0 %v953
      %2353 = vmatprep.subr.mxu0 %v956
      %2354 = vmatpush1.msra.mxu0 %v955
      %2355 = vmatprep.subr.mxu0 %v958
      %2356 = vmatpush1.msra.mxu0 %v957
      %2357 = vmatprep.subr.mxu0 %v960
      %2358 = vmatpush1.msra.mxu0 %v959
      %2359 = vmatprep.subr.mxu0 %v962
      %2360 = vmatpush1.msra.mxu0 %v961
      %2361 = vmatprep.subr.mxu0 %v964
      %2362 = vmatpush1.msra.mxu0 %v963
      %2363 = vmatprep.subr.mxu0 %v966
      %2364 = vmatpush1.msra.mxu0 %v965
      %2365 = vmatprep.subr.mxu0 %v968
      %2366 = vmatpush1.msra.mxu0 %v967
      %2367 = vmatprep.subr.mxu0 %v970
      %2368 = vmatpush1.msra.mxu0 %v969
      %2369 = vmatprep.subr.mxu0 %v972
      %2370 = vmatpush1.msra.mxu0 %v971
      %2371 = vmatprep.subr.mxu0 %v974
      %2372 = vmatpush1.msra.mxu0 %v973
      %2373 = vmatprep.subr.mxu0 %v976
      %2374 = vmatpush1.msra.mxu0 %v975
      %2375 = vmatprep.subr.mxu0 %v978
      %2376 = vmatpush1.msra.mxu0 %v977
      %2377 = vmatprep.subr.mxu0 %v980
      %2378 = vmatpush1.msra.mxu0 %v979
      %2379 = vmatprep.subr.mxu0 %v982
      %2380 = vmatpush1.msra.mxu0 %v981
      %2381 = vmatprep.subr.mxu0 %v984
      %2382 = vmatpush1.msra.mxu0 %v983
      %2383 = vmatprep.subr.mxu0 %v986
      %2384 = vmatpush1.msra.mxu0 %v985
      %2385 = vmatprep.mubr.f32.mxu0 %v2320
      %2386 = vmatmul.mubr.f32.gmra.mrb[0].mxu0 %v2311
      %v2387 = vpop.f32.mrb[0].mxu0
      %v2388 = vadd.f32 0.0, %v2387
      %v2389 = vpop.f32.mrb[0].mxu0
      %v2390 = vadd.f32 0.0, %v2389
      %2391 = vdwg.mxu0
      %v2392 = vmul.f32 %v2388, 0.015625
      %v2393 = vmul.f32 %v2390, 0.015625
      %v2394 = vmul.f32 %v2392, %v2392
      %v2395 = vsub.f32 %v2393, %v2394
      %v2396 = vadd.f32 %v2395, 1e-05
      %v2397 = vrsqrt.pop %v2396
      %2398 = vmatprep.subr.mxu0 %v1065
      %2399 = vmatpush1.msra.mxu0 %v1064
      %2400 = vmatprep.subr.mxu0 %v1067
      %2401 = vmatpush1.msra.mxu0 %v1066
      %2402 = vmatprep.subr.mxu0 %v1069
      %2403 = vmatpush1.msra.mxu0 %v1068
      %2404 = vmatprep.subr.mxu0 %v1071
      %2405 = vmatpush1.msra.mxu0 %v1070
      %2406 = vmatprep.subr.mxu0 %v1073
      %2407 = vmatpush1.msra.mxu0 %v1072
      %2408 = vmatprep.subr.mxu0 %v1075
      %2409 = vmatpush1.msra.mxu0 %v1074
      %2410 = vmatprep.subr.mxu0 %v1077
      %2411 = vmatpush1.msra.mxu0 %v1076
      %2412 = vmatprep.subr.mxu0 %v1079
      %2413 = vmatpush1.msra.mxu0 %v1078
      %2414 = vmatprep.subr.mxu0 %v1081
      %2415 = vmatpush1.msra.mxu0 %v1080
      %2416 = vmatprep.subr.mxu0 %v1083
      %2417 = vmatpush1.msra.mxu0 %v1082
      %2418 = vmatprep.subr.mxu0 %v1085
      %2419 = vmatpush1.msra.mxu0 %v1084
      %2420 = vmatprep.subr.mxu0 %v1087
      %2421 = vmatpush1.msra.mxu0 %v1086
      %2422 = vmatprep.subr.mxu0 %v1089
      %2423 = vmatpush1.msra.mxu0 %v1088
      %2424 = vmatprep.subr.mxu0 %v1091
      %2425 = vmatpush1.msra.mxu0 %v1090
      %2426 = vmatprep.subr.mxu0 %v1093
      %2427 = vmatpush1.msra.mxu0 %v1092
      %2428 = vmatprep.subr.mxu0 %v1095
      %2429 = vmatpush1.msra.mxu0 %v1094
      %2430 = vmatprep.subr.mxu0 %v1097
      %2431 = vmatpush1.msra.mxu0 %v1096
      %2432 = vmatprep.subr.mxu0 %v1099
      %2433 = vmatpush1.msra.mxu0 %v1098
      %2434 = vmatprep.subr.mxu0 %v1101
      %2435 = vmatpush1.msra.mxu0 %v1100
      %2436 = vmatprep.subr.mxu0 %v1103
      %2437 = vmatpush1.msra.mxu0 %v1102
      %2438 = vmatprep.subr.mxu0 %v1105
      %2439 = vmatpush1.msra.mxu0 %v1104
      %2440 = vmatprep.subr.mxu0 %v1107
      %2441 = vmatpush1.msra.mxu0 %v1106
      %2442 = vmatprep.subr.mxu0 %v1109
      %2443 = vmatpush1.msra.mxu0 %v1108
      %2444 = vmatprep.subr.mxu0 %v1111
      %2445 = vmatpush1.msra.mxu0 %v1110
      %2446 = vmatprep.subr.mxu0 %v1113
      %2447 = vmatpush1.msra.mxu0 %v1112
      %2448 = vmatprep.subr.mxu0 %v1115
      %2449 = vmatpush1.msra.mxu0 %v1114
      %2450 = vmatprep.subr.mxu0 %v1117
      %2451 = vmatpush1.msra.mxu0 %v1116
      %2452 = vmatprep.subr.mxu0 %v1119
      %2453 = vmatpush1.msra.mxu0 %v1118
      %2454 = vmatprep.subr.mxu0 %v1121
      %2455 = vmatpush1.msra.mxu0 %v1120
      %2456 = vmatprep.subr.mxu0 %v1123
      %2457 = vmatpush1.msra.mxu0 %v1122
      %2458 = vmatprep.subr.mxu0 %v1125
      %2459 = vmatpush1.msra.mxu0 %v1124
      %2460 = vmatprep.subr.mxu0 %v1127
      %2461 = vmatpush1.msra.mxu0 %v1126
      %2462 = vmatprep.mubr.f32.mxu0 %v2397
      %2463 = vmatmul.mubr.f32.gmra.mrb[0].mxu0 %v2392
      %v2464 = vpop.f32.mrb[0].mxu0
      %v2465 = vadd.f32 0.0, %v2464
      %v2466 = vpop.f32.mrb[0].mxu0
      %v2467 = vadd.f32 0.0, %v2466
      %2468 = vdwg.mxu0
      %v2469 = vlaneseq
      %v2470 = vshrl.u32 %v2469, 7
      %v2471 = vsub.s32 0, %v2470
      %v2472 = vrot.slane %v2465, %v2471
      %v2473 = vsub.f32 %v2301, %v2472
      %v2474 = vsub.f32 %v2302, %v2472
      %v2475 = vlaneseq
      %v2476 = vshrl.u32 %v2475, 7
      %v2477 = vsub.s32 0, %v2476
      %v2478 = vrot.slane %v2467, %v2477
      %v2479 = vmul.f32 %v2473, %v2478
      %v2480 = vmul.f32 %v2474, %v2478
      %v2482 = vlaneseq
      %v2483 = vshrl.u32 %v2482, 7
      %v2484 = vsub.s32 0, %v2483
      %v2485 = vrot.slane %v2303, %v2484
      %v2487 = vmul.f32 %v2479, %v2485
      %v2488 = vmul.f32 %v2480, %v2485
      %v2490 = vlaneseq
      %v2491 = vshrl.u32 %v2490, 7
      %v2492 = vsub.s32 0, %v2491
      %v2493 = vrot.slane %v2304, %v2492
      %v2495 = vadd.f32 %v2487, %v2493
      %v2496 = vadd.f32 %v2488, %v2493
      %v2497 = vmax.f32 %v2495, 0.0
      %v2498 = vmax.f32 %v2496, 0.0
      %v2499 = vadd.f32 %v2497, %v1652
      %v2500 = vadd.f32 %v2498, %v1653
      %v2501 = vmax.f32 %v2499, 0.0
      %v2502 = vmax.f32 %v2500, 0.0
      %v2503 = vld [vmem:[%s18] sm:$0xff]
      %v2504 = vld [vmem:[%s18 + $0x8] sm:$0xff]
      %v2505 = vld [vmem:[%s18 + $0x10] sm:$0xff]
      %v2506 = vld [vmem:[%s18 + $0x18] sm:$0xff]
      %v2507 = vld [vmem:[%s18 + $0x20] sm:$0xff]
      %v2508 = vld [vmem:[%s18 + $0x28] sm:$0xff]
      %v2509 = vld [vmem:[%s18 + $0x30] sm:$0xff]
      %v2510 = vld [vmem:[%s18 + $0x38] sm:$0xff]
      %v2511 = vld [vmem:[%s18 + $0x40] sm:$0xff]
      %v2512 = vld [vmem:[%s18 + $0x48] sm:$0xff]
      %v2513 = vld [vmem:[%s18 + $0x50] sm:$0xff]
      %v2514 = vld [vmem:[%s18 + $0x58] sm:$0xff]
      %v2515 = vld [vmem:[%s18 + $0x60] sm:$0xff]
      %v2516 = vld [vmem:[%s18 + $0x68] sm:$0xff]
      %v2517 = vld [vmem:[%s18 + $0x70] sm:$0xff]
      %v2518 = vld [vmem:[%s18 + $0x78] sm:$0xff]
      %v2519 = vld [vmem:[%s19] sm:$0x1]
      %v2521 = vlaneseq
      %v2522 = vshrl.u32 %v2521, 7
      %v2523 = vsub.s32 0, %v2522
      %v2524 = vrot.slane %v2519, %v2523
      %2526 = vmatprep.subr.mxu0 0.0
      %2527 = vmatpush1.msra.mxu0 %v2503
      %2528 = vmatprep.subr.mxu0 0.0
      %2529 = vmatpush1.msra.mxu0 %v2504
      %2530 = vmatprep.subr.mxu0 0.0
      %2531 = vmatpush1.msra.mxu0 %v2505
      %2532 = vmatprep.subr.mxu0 0.0
      %2533 = vmatpush1.msra.mxu0 %v2506
      %2534 = vmatprep.subr.mxu0 0.0
      %2535 = vmatpush1.msra.mxu0 %v2507
      %2536 = vmatprep.subr.mxu0 0.0
      %2537 = vmatpush1.msra.mxu0 %v2508
      %2538 = vmatprep.subr.mxu0 0.0
      %2539 = vmatpush1.msra.mxu0 %v2509
      %2540 = vmatprep.subr.mxu0 0.0
      %2541 = vmatpush1.msra.mxu0 %v2510
      %2542 = vmatprep.subr.mxu0 0.0
      %2543 = vmatpush1.msra.mxu0 %v2511
      %2544 = vmatprep.subr.mxu0 0.0
      %2545 = vmatpush1.msra.mxu0 %v2512
      %2546 = vmatprep.subr.mxu0 0.0
      %2547 = vmatpush1.msra.mxu0 %v2513
      %2548 = vmatprep.subr.mxu0 0.0
      %2549 = vmatpush1.msra.mxu0 %v2514
      %2550 = vmatprep.subr.mxu0 0.0
      %2551 = vmatpush1.msra.mxu0 %v2515
      %2552 = vmatprep.subr.mxu0 0.0
      %2553 = vmatpush1.msra.mxu0 %v2516
      %2554 = vmatprep.subr.mxu0 0.0
      %2555 = vmatpush1.msra.mxu0 %v2517
      %2556 = vmatprep.subr.mxu0 0.0
      %2557 = vmatpush1.msra.mxu0 %v2518
      %2558 = vmatprep.subr.mxu0 0.0
      %2559 = vmatpush1.msra.mxu0 0.0
      %2560 = vmatprep.subr.mxu0 0.0
      %2561 = vmatpush1.msra.mxu0 0.0
      %2562 = vmatprep.subr.mxu0 0.0
      %2563 = vmatpush1.msra.mxu0 0.0
      %2564 = vmatprep.subr.mxu0 0.0
      %2565 = vmatpush1.msra.mxu0 0.0
      %2566 = vmatprep.subr.mxu0 0.0
      %2567 = vmatpush1.msra.mxu0 0.0
      %2568 = vmatprep.subr.mxu0 0.0
      %2569 = vmatpush1.msra.mxu0 0.0
      %2570 = vmatprep.subr.mxu0 0.0
      %2571 = vmatpush1.msra.mxu0 0.0
      %2572 = vmatprep.subr.mxu0 0.0
      %2573 = vmatpush1.msra.mxu0 0.0
      %2574 = vmatprep.subr.mxu0 0.0
      %2575 = vmatpush1.msra.mxu0 0.0
      %2576 = vmatprep.subr.mxu0 0.0
      %2577 = vmatpush1.msra.mxu0 0.0
      %2578 = vmatprep.subr.mxu0 0.0
      %2579 = vmatpush1.msra.mxu0 0.0
      %2580 = vmatprep.subr.mxu0 0.0
      %2581 = vmatpush1.msra.mxu0 0.0
      %2582 = vmatprep.subr.mxu0 0.0
      %2583 = vmatpush1.msra.mxu0 0.0
      %2584 = vmatprep.subr.mxu0 0.0
      %2585 = vmatpush1.msra.mxu0 0.0
      %2586 = vmatprep.subr.mxu0 0.0
      %2587 = vmatpush1.msra.mxu0 0.0
      %2588 = vmatprep.subr.mxu0 0.0
      %2589 = vmatpush1.msra.mxu0 0.0
      %2590 = vmatprep.mubr.f32.mxu0 0.0
      %2591 = vmatmul.mubr.f32.gmra.mrb[0].mxu0 %v2501
      %v2592 = vpop.f32.mrb[0].mxu0
      %v2593 = vadd.f32 %v2524, %v2592
      %v2594 = vpop.f32.mrb[0].mxu0
      %2595 = vmatprep.mubr.f32.mxu0 0.0
      %2596 = vmatmul.mubr.f32.gmra.mrb[0].mxu0 %v2502
      %v2597 = vpop.f32.mrb[0].mxu0
      %v2598 = vadd.f32 %v2524, %v2597
      %v2599 = vpop.f32.mrb[0].mxu0
      %2600 = vdwg.mxu0
      %2601 = vst [vmem:[%s683] sm:$0xff] %v2593
      %2602 = vst [vmem:[%s683 + $0x8] sm:$0xff] %v2598
      %p2603 = scmp.lt.s32.totalorder %s33, 1
      %s2604 = scalar_select %p2603, %s33, 1
      %s2605 = smul.addr %s2604, 2
      %s2606 = smul.addr %s2605, 8
      %s2607 = scalar_lea.vmem %s22, %s2606
      // Predicated region
      $region109: #{tcn_forward.1} parent=107 // pred_check
        %p2608 = pneg %p518
      $region110: #{tcn_forward.1} parent=107 // pred_check_branch
        %2610 = sbr.rel (%p2608) target = $region112
      $region111: #{tcn_forward.1} parent=107 // pred_region
        _
      $region112: #{tcn_forward.1} parent=107 // pred_fallthru
        _
    $region108: #{tcn_forward.1} parent=5 // pred_fallthru
      _
    %p2611 = scmp.le.s32.totalorder 2, %s28
    // Predicated region
    $region113: #{tcn_forward.1} parent=5 // pred_check
      %p2612 = pneg %p2611
    $region114: #{tcn_forward.1} parent=5 // pred_check_branch
      %2614 = sbr.rel (%p2612) target = $region116
    $region115: #{tcn_forward.1} parent=5 // pred_region
      %s2615 = ssub.s32 %s28, 2
      // Predicated region
      $region117: #{tcn_forward.1} parent=115 // pred_check
        %p2616 = pneg %p524
      $region118: #{tcn_forward.1} parent=115 // pred_check_branch
        %2618 = sbr.rel (%p2616) target = $region120
      $region119: #{tcn_forward.1} parent=115 // pred_region
        %p2619 = scmp.lt.s32.totalorder %s34, 1
        %s2620 = scalar_select %p2619, %s34, 1
        %s2621 = smul.addr %s2620, 2
        %s2622 = smul.addr %s2621, 8
        %s2623 = scalar_lea.vmem %s22, %s2622
      $region120: #{tcn_forward.1} parent=115 // pred_fallthru
        _
    $region116: #{tcn_forward.1} parent=5 // pred_fallthru
      _
  $region6: #{tcn_forward.1} parent=0 // loop_footer
    %s32 = sadd.s32 1, %s28
  $region7: #{tcn_forward.1} parent=0 // loop_footer_branch
    %27 = sbr.rel target = $region3
  $region8: #{tcn_forward.1} parent=0 // loop_exit
    _

</llo_original>
